<compile_context>
chip_gen: v7x
topology: tpu7x:2x2x1
jax: 0.10.0
libtpu: 0.0.40
codegen_flags: <defaults>
</compile_context>

<pallas_src>
import math
import jax
import jax.numpy as jnp
from jax.experimental import pallas as pl
from jax.experimental.pallas import tpu as pltpu

LN_EPS = 1e-12
ROW_TILE_TARGET = 256


def _round_up(x, m):
    return ((x + m - 1) // m) * m


def _pick_row_tile(rows, target=ROW_TILE_TARGET):
    """As large as `target`, but keep >=2 grid steps when possible (v7x megacore)."""
    rp = _round_up(rows, 8)
    tm = min(target, rp)
    if rp > 8 and rp // tm < 2:
        tm = max(8, _round_up((rp + 1) // 2, 8))
    return tm


# ---------------- Pallas kernel: fused [LN] -> matmul(+bias) -> [ReLU] -> [+residual] ----------
def _make_dense_kernel(has_ln, act, has_res):
    def kernel(*refs):
        it = iter(refs)
        x_ref = next(it)
        if has_ln:
            g_ref = next(it)
            b_ref = next(it)
        w_ref = next(it)
        bias_ref = next(it)
        res_ref = next(it) if has_res else None
        o_ref = next(it)

        x = x_ref[...]
        if has_ln:
            mu = jnp.mean(x, axis=-1, keepdims=True)
            var = jnp.mean(jnp.square(x - mu), axis=-1, keepdims=True)
            x = (x - mu) * jax.lax.rsqrt(var + LN_EPS)
            x = x * g_ref[...] + b_ref[...]
        y = jnp.dot(x, w_ref[...], preferred_element_type=jnp.float32) + bias_ref[...]
        if act == "relu":
            y = jnp.maximum(y, 0.0)
        if has_res:
            y = y + res_ref[...]
        o_ref[...] = y

    return kernel


def dense(x, w, b, *, ln=None, act=None, residual=None):
    """y = [LayerNorm(x)] @ w + b, optional ReLU, optional fused residual add.
    x: (rows, K), w: (K, N), b: (N,). Row-tiled grid; full K and N per block."""
    rows, K = x.shape
    Kw, N = w.shape
    assert Kw == K
    tm = _pick_row_tile(rows)
    rows_pad = _round_up(rows, tm)
    pad = rows_pad - rows
    xp = jnp.pad(x, ((0, pad), (0, 0))) if pad else x

    args = [xp]
    in_specs = [pl.BlockSpec((tm, K), lambda i: (i, 0))]
    if ln is not None:
        g, be = ln
        args += [g.reshape(1, K), be.reshape(1, K)]
        in_specs += [pl.BlockSpec((1, K), lambda i: (0, 0)),
                     pl.BlockSpec((1, K), lambda i: (0, 0))]
    args += [w, b.reshape(1, N)]
    in_specs += [pl.BlockSpec((K, N), lambda i: (0, 0)),
                 pl.BlockSpec((1, N), lambda i: (0, 0))]
    if residual is not None:
        rp = jnp.pad(residual, ((0, pad), (0, 0))) if pad else residual
        args.append(rp)
        in_specs.append(pl.BlockSpec((tm, N), lambda i: (i, 0)))

    out = pl.pallas_call(
        _make_dense_kernel(ln is not None, act, residual is not None),
        out_shape=jax.ShapeDtypeStruct((rows_pad, N), jnp.float32),
        grid=(rows_pad // tm,),
        in_specs=in_specs,
        out_specs=pl.BlockSpec((tm, N), lambda i: (i, 0)),
        compiler_params=pltpu.CompilerParams(dimension_semantics=("parallel",)),
    )(*args)
    return out[:rows] if pad else out


# ---------------- Pallas kernel: standalone LayerNorm (after_norm) ----------------
def layernorm(x, g, b):
    rows, D = x.shape
    tm = _pick_row_tile(rows)
    rows_pad = _round_up(rows, tm)
    pad = rows_pad - rows
    xp = jnp.pad(x, ((0, pad), (0, 0))) if pad else x

    def kernel(x_ref, g_ref, b_ref, o_ref):
        xb = x_ref[...]
        mu = jnp.mean(xb, axis=-1, keepdims=True)
        var = jnp.mean(jnp.square(xb - mu), axis=-1, keepdims=True)
        o_ref[...] = (xb - mu) * jax.lax.rsqrt(var + LN_EPS) * g_ref[...] + b_ref[...]

    out = pl.pallas_call(
        kernel,
        out_shape=jax.ShapeDtypeStruct((rows_pad, D), jnp.float32),
        grid=(rows_pad // tm,),
        in_specs=[pl.BlockSpec((tm, D), lambda i: (i, 0)),
                  pl.BlockSpec((1, D), lambda i: (0, 0)),
                  pl.BlockSpec((1, D), lambda i: (0, 0))],
        out_specs=pl.BlockSpec((tm, D), lambda i: (i, 0)),
        compiler_params=pltpu.CompilerParams(dimension_semantics=("parallel",)),
    )(xp, g.reshape(1, D), b.reshape(1, D))
    return out[:rows] if pad else out


# ---------------- Pallas kernel: multi-head self-attention with padding mask ----------------
def mha(q, k, v, mask, heads):
    """q,k,v: (B, T, D) f32; mask: (B, T) f32 (1=valid, 0=pad). Returns (B, T, D)."""
    B, T, D = q.shape
    Dh = D // heads
    scale = 1.0 / math.sqrt(Dh)

    def split_heads(t):
        return t.reshape(B, T, heads, Dh).transpose(0, 2, 1, 3).reshape(B * heads, T, Dh)

    qh, kh, vh = split_heads(q), split_heads(k), split_heads(v)
    m3 = mask.reshape(B, 1, T)

    def kernel(q_ref, k_ref, v_ref, m_ref, o_ref):
        qb = q_ref[0] * scale                          # (T, Dh)
        kb = k_ref[0]
        vb = v_ref[0]
        m = m_ref[0]                                   # (1, T)
        s = jax.lax.dot_general(qb, kb, (((1,), (1,)), ((), ())),
                                preferred_element_type=jnp.float32)   # (T, T)
        s = s + (m - 1.0) * 1e9                        # -inf-ish at padded keys
        s = s - jnp.max(s, axis=-1, keepdims=True)
        e = jnp.exp(s)
        p = e / jnp.sum(e, axis=-1, keepdims=True)
        p = p * m                                      # zero attention to padded keys
        o_ref[0] = jnp.dot(p, vb, preferred_element_type=jnp.float32)

    out = pl.pallas_call(
        kernel,
        out_shape=jax.ShapeDtypeStruct((B * heads, T, Dh), jnp.float32),
        grid=(B * heads,),
        in_specs=[
            pl.BlockSpec((1, T, Dh), lambda i: (i, 0, 0)),
            pl.BlockSpec((1, T, Dh), lambda i: (i, 0, 0)),
            pl.BlockSpec((1, T, Dh), lambda i: (i, 0, 0)),
            pl.BlockSpec((1, 1, T), lambda i: (i // heads, 0, 0)),
        ],
        out_specs=pl.BlockSpec((1, T, Dh), lambda i: (i, 0, 0)),
        compiler_params=pltpu.CompilerParams(dimension_semantics=("parallel",)),
    )(qh, kh, vh, m3)
    return out.reshape(B, heads, T, Dh).transpose(0, 2, 1, 3).reshape(B, T, D)


# ---------------- Pallas kernel: FSMN block (depthwise conv over time + residual + mask) ------
def fsmn_block(v, mask, w):
    """v: (B, T, D); mask: (B, T); w: (K, D) depthwise taps (torch Conv1d weight[d,0,k] -> w[k,d])."""
    B, T, D = v.shape
    K = w.shape[0]
    left = (K - 1) // 2           # sanm_shfit = 0
    right = K - 1 - left
    vm = v * mask[:, :, None]                                 # inputs * mask
    vp = jnp.pad(vm, ((0, 0), (left, right), (0, 0)))          # ConstantPad1d
    m3 = mask.reshape(B, T, 1)
    Tp = T + K - 1

    def kernel(vp_ref, m_ref, w_ref, o_ref):
        vp_b = vp_ref[0]                                      # (Tp, D)
        acc = vp_b[left:left + T, :]                          # residual (masked v)
        for kk in range(K):                                   # 11 unrolled VPU FMAs
            acc = acc + w_ref[kk:kk + 1, :] * vp_b[kk:kk + T, :]
        o_ref[0] = acc * m_ref[0]                             # final mask

    return pl.pallas_call(
        kernel,
        out_shape=jax.ShapeDtypeStruct((B, T, D), jnp.float32),
        grid=(B,),
        in_specs=[
            pl.BlockSpec((1, Tp, D), lambda i: (i, 0, 0)),
            pl.BlockSpec((1, T, 1), lambda i: (i, 0, 0)),
            pl.BlockSpec((K, D), lambda i: (0, 0)),
        ],
        out_specs=pl.BlockSpec((1, T, D), lambda i: (i, 0, 0)),
        compiler_params=pltpu.CompilerParams(dimension_semantics=("parallel",)),
    )(vp, m3, w)


# ---------------- glue: sinusoidal position embedding ----------------
def sinusoidal_embedding(positions, dim, theta=10000.0, factor=1.0):
    half = dim // 2
    div_term = jnp.exp(jnp.arange(half, dtype=jnp.float32) * (-(math.log(theta) / (half - 1))))
    emb = (positions * factor)[:, None] * div_term[None, :]
    return jnp.concatenate([jnp.sin(emb), jnp.cos(emb)], axis=-1)


# ---------------- one SANMEncoderLayer (eval mode, norm_first=True, concat_after=False) -------
def encoder_layer(x, mask, p, heads):
    B, T, Din = x.shape
    D = p["Wout"].shape[0]
    in_eq_out = (Din == D)
    rows = B * T
    x2 = x.reshape(rows, Din)

    # norm1 + to_qkv (single fused matmul for q,k,v)
    qkv = dense(x2, p["Wqkv"], p["bqkv"], ln=(p["g1"], p["b1"]))        # (rows, 3D)
    q, k, v = jnp.split(qkv, 3, axis=-1)

    fsmn = fsmn_block(v.reshape(B, T, D), mask, p["fsmn_w"])             # (B, T, D)
    attn = mha(q.reshape(B, T, D), k.reshape(B, T, D), v.reshape(B, T, D), mask, heads)

    extra = fsmn.reshape(rows, D)
    if in_eq_out:
        extra = extra + x2                                               # encoder-layer residual
    x2 = dense(attn.reshape(rows, D), p["Wout"], p["bout"], residual=extra)

    # norm2 + FFN (Linear -> ReLU -> Linear) + residual
    h = dense(x2, p["Wff1"], p["bff1"], ln=(p["g2"], p["b2"]), act="relu")
    x2 = dense(h, p["Wff2"], p["bff2"], residual=x2)
    return x2.reshape(B, T, D)


# ---------------- full SANMEncoder.forward ----------------
def sanm_encoder_forward(x, seq_lens, layers, after_g, after_b, heads, output_size):
    B, T, Din = x.shape
    mask = (jnp.arange(T)[None, :] < seq_lens[:, None]).astype(jnp.float32)   # (B, T), 1=valid
    pos = jnp.arange(1, T + 1, dtype=jnp.float32)
    pe = sinusoidal_embedding(pos, Din)
    x = x * math.sqrt(output_size) + pe[None]
    for p in layers:
        x = encoder_layer(x, mask, p, heads)
    x = layernorm(x.reshape(B * T, output_size), after_g, after_b).reshape(B, T, output_size)
    olens = jnp.sum(mask, axis=1).astype(jnp.int32)
    return x, olens


# ---------------- deterministic parameter construction ----------------
def init_params(key, num_blocks, input_size, output_size, linear_units, kernel_size):
    layers = []
    in_size = input_size
    scale = 0.02
    for _ in range(num_blocks):
        key, k0, k1, k2, k3, k4 = jax.random.split(key, 6)
        layers.append(dict(
            g1=jnp.ones((in_size,), jnp.float32),
            b1=jnp.zeros((in_size,), jnp.float32),
            Wqkv=scale * jax.random.normal(k0, (in_size, 3 * output_size), jnp.float32),
            bqkv=jnp.zeros((3 * output_size,), jnp.float32),
            fsmn_w=scale * jax.random.normal(k1, (kernel_size, output_size), jnp.float32),
            Wout=scale * jax.random.normal(k2, (output_size, output_size), jnp.float32),
            bout=jnp.zeros((output_size,), jnp.float32),
            g2=jnp.ones((output_size,), jnp.float32),
            b2=jnp.zeros((output_size,), jnp.float32),
            Wff1=scale * jax.random.normal(k3, (output_size, linear_units), jnp.float32),
            bff1=jnp.zeros((linear_units,), jnp.float32),
            Wff2=scale * jax.random.normal(k4, (linear_units, output_size), jnp.float32),
            bff2=jnp.zeros((output_size,), jnp.float32),
        ))
        in_size = output_size
    after_g = jnp.ones((output_size,), jnp.float32)
    after_b = jnp.zeros((output_size,), jnp.float32)
    return layers, after_g, after_b


if __name__ == "__main__":
    key = jax.random.PRNGKey(0)
    B, T = 2, 16
    INPUT_SIZE, OUTPUT_SIZE = 560, 512
    HEADS, LINEAR_UNITS, KERNEL_SIZE = 4, 2048, 11
    NUM_BLOCKS = 2            # 1x encoders0 (560->512, no attn residual) + 1x encoders (512->512)

    kx, kp = jax.random.split(key)
    x = jax.random.normal(kx, (B, T, INPUT_SIZE), dtype=jnp.float32)
    seq_lens = jnp.array([T, T - 4], dtype=jnp.int32)

    layers, after_g, after_b = init_params(kp, NUM_BLOCKS, INPUT_SIZE, OUTPUT_SIZE,
                                           LINEAR_UNITS, KERNEL_SIZE)

    y, olens = sanm_encoder_forward(x, seq_lens, layers, after_g, after_b, HEADS, OUTPUT_SIZE)
    y = jax.block_until_ready(y)
    olens = jax.block_until_ready(olens)

    assert y.shape == (B, T, OUTPUT_SIZE), y.shape
    assert y.dtype == jnp.float32
    assert bool(jnp.all(jnp.isfinite(y)))
    assert [int(v) for v in jax.device_get(olens)] == [int(v) for v in jax.device_get(seq_lens)]
    print("KERNEL_OK")
</pallas_src>

<mosaic_0001>
module attributes {stable_mosaic.version = 11 : i64} {
  func.func @kernel(%arg0: i32, %arg1: memref<16x560xf32, #tpu.memory_space<vmem>>, %arg2: memref<1x560xf32, #tpu.memory_space<vmem>>, %arg3: memref<1x560xf32, #tpu.memory_space<vmem>>, %arg4: memref<560x1536xf32, #tpu.memory_space<vmem>>, %arg5: memref<1x1536xf32, #tpu.memory_space<vmem>>, %arg6: memref<16x1536xf32, #tpu.memory_space<vmem>>) attributes {dimension_semantics = [#tpu.dimension_semantics<parallel>], iteration_bounds = array<i64: 2>, scalar_prefetch = 0 : i64, scratch_operands = 0 : i64, tpu.core_type = #tpu.core_type<tc>, window_params = [{transform_indices = @transform_0, window_bounds = array<i64: 16, 560>}, {pipeline_mode = #tpu.pipeline_mode<synchronous>, transform_indices = @transform_1, window_bounds = array<i64: 1, 560>}, {pipeline_mode = #tpu.pipeline_mode<synchronous>, transform_indices = @transform_2, window_bounds = array<i64: 1, 560>}, {pipeline_mode = #tpu.pipeline_mode<synchronous>, transform_indices = @transform_3, window_bounds = array<i64: 560, 1536>}, {pipeline_mode = #tpu.pipeline_mode<synchronous>, transform_indices = @transform_4, window_bounds = array<i64: 1, 1536>}, {transform_indices = @transform_5, window_bounds = array<i64: 16, 1536>}]} {
    %c0 = arith.constant 0 : index
    %c0_0 = arith.constant 0 : index
    %0 = vector.load %arg1[%c0, %c0_0] : memref<16x560xf32, #tpu.memory_space<vmem>>, vector<16x560xf32>
    %cst = arith.constant dense<0.000000e+00> : vector<16xf32>
    %1 = vector.multi_reduction <add>, %0, %cst [1] : vector<16x560xf32> to vector<16xf32>
    %2 = vector.shape_cast %1 : vector<16xf32> to vector<16x1xf32>
    %cst_1 = arith.constant 5.600000e+02 : f32
    %3 = vector.broadcast %cst_1 : f32 to vector<16x1xf32>
    %4 = arith.divf %2, %3 : vector<16x1xf32>
    %5 = vector.broadcast %4 : vector<16x1xf32> to vector<16x560xf32>
    %6 = arith.subf %0, %5 : vector<16x560xf32>
    %7 = arith.mulf %6, %6 : vector<16x560xf32>
    %cst_2 = arith.constant dense<0.000000e+00> : vector<16xf32>
    %8 = vector.multi_reduction <add>, %7, %cst_2 [1] : vector<16x560xf32> to vector<16xf32>
    %9 = vector.shape_cast %8 : vector<16xf32> to vector<16x1xf32>
    %cst_3 = arith.constant 5.600000e+02 : f32
    %10 = vector.broadcast %cst_3 : f32 to vector<16x1xf32>
    %11 = arith.divf %9, %10 : vector<16x1xf32>
    %12 = vector.broadcast %4 : vector<16x1xf32> to vector<16x560xf32>
    %13 = arith.subf %0, %12 : vector<16x560xf32>
    %cst_4 = arith.constant 9.99999996E-13 : f32
    %14 = vector.broadcast %cst_4 : f32 to vector<16x1xf32>
    %15 = arith.addf %11, %14 : vector<16x1xf32>
    %16 = math.rsqrt %15 : vector<16x1xf32>
    %17 = vector.broadcast %16 : vector<16x1xf32> to vector<16x560xf32>
    %18 = arith.mulf %13, %17 : vector<16x560xf32>
    %c0_5 = arith.constant 0 : index
    %c0_6 = arith.constant 0 : index
    %19 = vector.load %arg2[%c0_5, %c0_6] : memref<1x560xf32, #tpu.memory_space<vmem>>, vector<1x560xf32>
    %20 = vector.broadcast %19 : vector<1x560xf32> to vector<16x560xf32>
    %21 = arith.mulf %18, %20 : vector<16x560xf32>
    %c0_7 = arith.constant 0 : index
    %c0_8 = arith.constant 0 : index
    %22 = vector.load %arg3[%c0_7, %c0_8] : memref<1x560xf32, #tpu.memory_space<vmem>>, vector<1x560xf32>
    %23 = vector.broadcast %22 : vector<1x560xf32> to vector<16x560xf32>
    %24 = arith.addf %21, %23 : vector<16x560xf32>
    %c0_9 = arith.constant 0 : index
    %c0_10 = arith.constant 0 : index
    %25 = vector.load %arg4[%c0_9, %c0_10] : memref<560x1536xf32, #tpu.memory_space<vmem>>, vector<560x1536xf32>
    %cst_11 = arith.constant dense<0.000000e+00> : vector<16x1536xf32>
    %26 = tpu.matmul %24, %25, %cst_11 {dimension_numbers = #tpu.dot_dimension_numbers<[1], [0], [0], [1], [0, 0, 1, 1], [], []>} : vector<16x560xf32>, vector<560x1536xf32>, vector<16x1536xf32> -> vector<16x1536xf32>
    %c0_12 = arith.constant 0 : index
    %c0_13 = arith.constant 0 : index
    %27 = vector.load %arg5[%c0_12, %c0_13] : memref<1x1536xf32, #tpu.memory_space<vmem>>, vector<1x1536xf32>
    %28 = vector.broadcast %27 : vector<1x1536xf32> to vector<16x1536xf32>
    %29 = arith.addf %26, %28 : vector<16x1536xf32>
    %c0_14 = arith.constant 0 : index
    %c0_15 = arith.constant 0 : index
    %30 = vector.load %arg6[%c0_14, %c0_15] : memref<16x1536xf32, #tpu.memory_space<vmem>>, vector<16x1536xf32>
    tpu.vector_store %arg6[%c0_14, %c0_15], %29 {strides = array<i32>} : memref<16x1536xf32, #tpu.memory_space<vmem>>, vector<16x1536xf32>,
    return
  }
  func.func @transform_0(%arg0: i32) -> (i32, i32) {
    %c0_i32 = arith.constant 0 : i32
    %c0_i32_0 = arith.constant 0 : i32
    return %arg0, %c0_i32 : i32, i32
  }
  func.func @transform_1(%arg0: i32) -> (i32, i32) {
    %c0_i32 = arith.constant 0 : i32
    %c0_i32_0 = arith.constant 0 : i32
    %c0_i32_1 = arith.constant 0 : i32
    return %c0_i32, %c0_i32_0 : i32, i32
  }
  func.func @transform_2(%arg0: i32) -> (i32, i32) {
    %c0_i32 = arith.constant 0 : i32
    %c0_i32_0 = arith.constant 0 : i32
    %c0_i32_1 = arith.constant 0 : i32
    return %c0_i32, %c0_i32_0 : i32, i32
  }
  func.func @transform_3(%arg0: i32) -> (i32, i32) {
    %c0_i32 = arith.constant 0 : i32
    %c0_i32_0 = arith.constant 0 : i32
    %c0_i32_1 = arith.constant 0 : i32
    return %c0_i32, %c0_i32_0 : i32, i32
  }
  func.func @transform_4(%arg0: i32) -> (i32, i32) {
    %c0_i32 = arith.constant 0 : i32
    %c0_i32_0 = arith.constant 0 : i32
    %c0_i32_1 = arith.constant 0 : i32
    return %c0_i32, %c0_i32_0 : i32, i32
  }
  func.func @transform_5(%arg0: i32) -> (i32, i32) {
    %c0_i32 = arith.constant 0 : i32
    %c0_i32_0 = arith.constant 0 : i32
    return %arg0, %c0_i32 : i32, i32
  }
}

</mosaic_0001>

<llo_original>
// kernel: tpu_custom_call.1
$region0: #{tpu_custom_call.1}
  #allocation0 [shape = 'u32[]', space=smem, size = 0x4, offset = 0x4, fixed_abs, tag = 'smem constant byte address 0x4 - core index']
  #allocation1 [shape = 'u32[144,128]{1,0:T(1,128)}', space=vmem, size = 0x12000, scoped, tag = 'internal scratch']
  %s0 = inlined_call_operand.hbm [shape: f32[32,560], index: 0, kind: input, shape index: {}]
  %s1 = inlined_call_operand.hbm [shape: f32[1,560], index: 1, kind: input, shape index: {}]
  %s2 = inlined_call_operand.hbm [shape: f32[1,560], index: 2, kind: input, shape index: {}]
  %s3 = inlined_call_operand.hbm [shape: f32[560,1536], index: 3, kind: input, shape index: {}]
  %s4 = inlined_call_operand.hbm [shape: f32[1,1536], index: 4, kind: input, shape index: {}]
  %s5 = inlined_call_operand.hbm [shape: f32[32,1536], index: 5, kind: output, shape index: {}]
  %s6 = sld [smem:[#allocation0]]
  $region73: #{tpu_custom_call.1} parent=0
    _
  %s8 = ssub.s32 1, %s6
  %s9 = scalar_select 0, %s8, %s6
  $region1: #{tpu_custom_call.1} parent=0
    #allocation2 [shape = 'u8[81920]{0}', space=vmem, size = 0x14000, scoped, tag = 'input window, operand 0']
    #allocation3 [shape = 's32[2]{0}', space=sflag, size = 0x8, scoped, tag = 'scoped memory for tpu_custom_call.1']
    #allocation4 [shape = 's32[2]{0}', space=sflag, size = 0x8, scoped, tag = 'scoped memory for tpu_custom_call.1']
    #allocation5 [shape = 'u8[2560]{0}', space=vmem, size = 0xc00, scoped, tag = 'input window, operand 1, single buffered']
    #allocation6 [shape = 's32[1]{0}', space=sflag, size = 0x4, scoped, tag = 'scoped memory for tpu_custom_call.1']
    #allocation7 [shape = 'u8[2560]{0}', space=vmem, size = 0xc00, scoped, tag = 'input window, operand 2, single buffered']
    #allocation8 [shape = 'u8[3440640]{0}', space=vmem, size = 0x348000, scoped, tag = 'input window, operand 3, single buffered']
    #allocation9 [shape = 's32[1]{0}', space=sflag, size = 0x4, scoped, tag = 'scoped memory for tpu_custom_call.1']
    #allocation10 [shape = 'u8[6144]{0}', space=vmem, size = 0x1800, scoped, tag = 'input window, operand 4, single buffered']
    #allocation11 [shape = 'u8[196608]{0}', space=vmem, size = 0x30000, scoped, tag = 'output window, operand 0']
    %10 = vsyncpa [#allocation3], 0
    %s11 = scalar_lea.sflag [#allocation3], 1
    %12 = vsyncpa %s11, 0
    %13 = vsyncpa [#allocation6], 0
    %14 = vsyncpa [#allocation9], 0
    %15 = vsyncpa [#allocation4], 0
    %s16 = scalar_lea.sflag [#allocation4], 1
    %17 = vsyncpa %s16, 0
    loop: start=0, step=1, limit=4
    $region2: #{tpu_custom_call.1} parent=1 // loop_pre_header
      _
    $region3: #{tpu_custom_call.1} parent=1 // loop_header
      %s19 = sphi 0, %s23
      %p20 = scmp.ge.s32.totalorder %s19, 4
      %s29 = sphi 0, %s31
      %s32 = sphi 0, %s29
      %s33 = sphi 0, %s32
      %s49 = sphi 0, %s33
      %s53 = sphi 0, %s53
      %s55 = sphi 0, %s53
      %s56 = sphi 0, %s55
      %s70 = sphi 0, %s56
      %s74 = sphi 0, %s74
      %s76 = sphi 0, %s74
      %s77 = sphi 0, %s76
      %s91 = sphi 0, %s77
      %s95 = sphi 0, %s95
      %s97 = sphi 0, %s95
      %s98 = sphi 0, %s97
      %s112 = sphi 0, %s98
      %s116 = sphi 0, %s116
      %s118 = sphi 0, %s116
      %s119 = sphi 0, %s118
      %s133 = sphi 0, %s119
      %s139 = sphi 0, %s141
      %s142 = sphi 0, %s139
      %s143 = sphi 0, %s142
      %s159 = sphi 0, %s143
    $region4: #{tpu_custom_call.1} parent=1 // loop_header_branch
      %22 = sbr.rel (%p20) target = $region8
    $region5: #{tpu_custom_call.1} parent=1 // loop_body
      %s24 = ssub.s32 %s19, 1
      %s25 = ssub.s32 %s19, 2
      %s26 = sadd.s32 %s19, 1
      %s27 = ssub.s32 %s19, %s26
      %p28 = scmp.eq.s32.totalorder %s27, 0
      %s30 = sadd.s32 %s29, 1
      %s31 = scalar_select %p28, %s29, %s30
      %p34 = pneg %p28
      %p35 = scmp.eq.s32.totalorder %s19, 1
      %p36 = por %p34, %p35
      %p37 = scmp.ne.s32.totalorder %s29, %s32
      %p38 = scmp.eq.s32.totalorder %s19, 0
      %p39 = por %p37, %p38
      %p40 = scmp.ne.s32.totalorder %s29, %s32
      %p41 = scmp.eq.s32.totalorder %s24, 1
      %p42 = por %p40, %p41
      %p43 = scmp.ne.s32.totalorder %s32, %s33
      %p44 = scmp.eq.s32.totalorder %s24, 0
      %p45 = por %p43, %p44
      %p46 = scmp.ne.s32.totalorder %s32, %s33
      %p47 = scmp.eq.s32.totalorder %s25, 1
      %p48 = por %p46, %p47
      %p50 = scmp.ne.s32.totalorder %s33, %s49
      %p51 = scmp.eq.s32.totalorder %s25, 0
      %p52 = por %p50, %p51
      %s54 = sadd.s32 %s53, 1
      %p57 = scmp.eq.s32.totalorder %s19, 1
      %p58 = scmp.ne.s32.totalorder %s53, %s55
      %p59 = scmp.eq.s32.totalorder %s19, 0
      %p60 = por %p58, %p59
      %p61 = scmp.ne.s32.totalorder %s53, %s55
      %p62 = scmp.eq.s32.totalorder %s24, 1
      %p63 = por %p61, %p62
      %p64 = scmp.ne.s32.totalorder %s55, %s56
      %p65 = scmp.eq.s32.totalorder %s24, 0
      %p66 = por %p64, %p65
      %p67 = scmp.ne.s32.totalorder %s55, %s56
      %p68 = scmp.eq.s32.totalorder %s25, 1
      %p69 = por %p67, %p68
      %p71 = scmp.ne.s32.totalorder %s56, %s70
      %p72 = scmp.eq.s32.totalorder %s25, 0
      %p73 = por %p71, %p72
      %s75 = sadd.s32 %s74, 1
      %p78 = scmp.eq.s32.totalorder %s19, 1
      %p79 = scmp.ne.s32.totalorder %s74, %s76
      %p80 = scmp.eq.s32.totalorder %s19, 0
      %p81 = por %p79, %p80
      %p82 = scmp.ne.s32.totalorder %s74, %s76
      %p83 = scmp.eq.s32.totalorder %s24, 1
      %p84 = por %p82, %p83
      %p85 = scmp.ne.s32.totalorder %s76, %s77
      %p86 = scmp.eq.s32.totalorder %s24, 0
      %p87 = por %p85, %p86
      %p88 = scmp.ne.s32.totalorder %s76, %s77
      %p89 = scmp.eq.s32.totalorder %s25, 1
      %p90 = por %p88, %p89
      %p92 = scmp.ne.s32.totalorder %s77, %s91
      %p93 = scmp.eq.s32.totalorder %s25, 0
      %p94 = por %p92, %p93
      %s96 = sadd.s32 %s95, 1
      %p99 = scmp.eq.s32.totalorder %s19, 1
      %p100 = scmp.ne.s32.totalorder %s95, %s97
      %p101 = scmp.eq.s32.totalorder %s19, 0
      %p102 = por %p100, %p101
      %p103 = scmp.ne.s32.totalorder %s95, %s97
      %p104 = scmp.eq.s32.totalorder %s24, 1
      %p105 = por %p103, %p104
      %p106 = scmp.ne.s32.totalorder %s97, %s98
      %p107 = scmp.eq.s32.totalorder %s24, 0
      %p108 = por %p106, %p107
      %p109 = scmp.ne.s32.totalorder %s97, %s98
      %p110 = scmp.eq.s32.totalorder %s25, 1
      %p111 = por %p109, %p110
      %p113 = scmp.ne.s32.totalorder %s98, %s112
      %p114 = scmp.eq.s32.totalorder %s25, 0
      %p115 = por %p113, %p114
      %s117 = sadd.s32 %s116, 1
      %p120 = scmp.eq.s32.totalorder %s19, 1
      %p121 = scmp.ne.s32.totalorder %s116, %s118
      %p122 = scmp.eq.s32.totalorder %s19, 0
      %p123 = por %p121, %p122
      %p124 = scmp.ne.s32.totalorder %s116, %s118
      %p125 = scmp.eq.s32.totalorder %s24, 1
      %p126 = por %p124, %p125
      %p127 = scmp.ne.s32.totalorder %s118, %s119
      %p128 = scmp.eq.s32.totalorder %s24, 0
      %p129 = por %p127, %p128
      %p130 = scmp.ne.s32.totalorder %s118, %s119
      %p131 = scmp.eq.s32.totalorder %s25, 1
      %p132 = por %p130, %p131
      %p134 = scmp.ne.s32.totalorder %s119, %s133
      %p135 = scmp.eq.s32.totalorder %s25, 0
      %p136 = por %p134, %p135
      %s137 = ssub.s32 %s19, %s26
      %p138 = scmp.eq.s32.totalorder %s137, 0
      %s140 = sadd.s32 %s139, 1
      %s141 = scalar_select %p138, %s139, %s140
      %p144 = pneg %p138
      %p145 = scmp.eq.s32.totalorder %s19, 1
      %p146 = por %p144, %p145
      %p147 = scmp.ne.s32.totalorder %s139, %s142
      %p148 = scmp.eq.s32.totalorder %s19, 0
      %p149 = por %p147, %p148
      %p150 = scmp.ne.s32.totalorder %s139, %s142
      %p151 = scmp.eq.s32.totalorder %s24, 1
      %p152 = por %p150, %p151
      %p153 = scmp.ne.s32.totalorder %s142, %s143
      %p154 = scmp.eq.s32.totalorder %s24, 0
      %p155 = por %p153, %p154
      %p156 = scmp.ne.s32.totalorder %s142, %s143
      %p157 = scmp.eq.s32.totalorder %s25, 1
      %p158 = por %p156, %p157
      %p160 = scmp.ne.s32.totalorder %s143, %s159
      %p161 = scmp.eq.s32.totalorder %s25, 0
      %p162 = por %p160, %p161
      %p163 = scmp.le.s32.totalorder 1, %s19
      %p164 = scmp.lt.s32.totalorder %s19, 3
      %p165 = pnand %p163, %p164
      %p166 = pneg %p165
      // Predicated region
      $region9: #{tpu_custom_call.1} parent=5 // pred_check
        _
      $region10: #{tpu_custom_call.1} parent=5 // pred_check_branch
        %168 = sbr.rel (%p165) target = $region12
      $region11: #{tpu_custom_call.1} parent=5 // pred_region
        %s169 = ssub.s32 %s19, 1
        // Predicated region
        $region13: #{tpu_custom_call.1} parent=11 // pred_check
          %p170 = pneg %p66
        $region14: #{tpu_custom_call.1} parent=11 // pred_check_branch
          %172 = sbr.rel (%p170) target = $region16
        $region15: #{tpu_custom_call.1} parent=11 // pred_region
          %s174 = ssub.s32 80, 80
          %175 = vsyncadd [#allocation6], %s174
          %s177 = sshll.u32 [#allocation5], 4
          %s178 = int_to_ptr.vmem [resolvable:$true] %s177
          %180 = dma.hbm_to_vmem [thread:$0]  %s1, 80, %s178, [#allocation6]
        $region16: #{tpu_custom_call.1} parent=11 // pred_fallthru
          _
        // Predicated region
        $region17: #{tpu_custom_call.1} parent=11 // pred_check
          %p181 = pneg %p87
        $region18: #{tpu_custom_call.1} parent=11 // pred_check_branch
          %183 = sbr.rel (%p181) target = $region20
        $region19: #{tpu_custom_call.1} parent=11 // pred_region
          %s185 = ssub.s32 80, 80
          %186 = vsyncadd [#allocation6], %s185
          %s188 = sshll.u32 [#allocation7], 4
          %s189 = int_to_ptr.vmem [resolvable:$true] %s188
          %191 = dma.hbm_to_vmem [thread:$0]  %s2, 80, %s189, [#allocation6]
        $region20: #{tpu_custom_call.1} parent=11 // pred_fallthru
          _
        // Predicated region
        $region21: #{tpu_custom_call.1} parent=11 // pred_check
          %p192 = pneg %p108
        $region22: #{tpu_custom_call.1} parent=11 // pred_check_branch
          %194 = sbr.rel (%p192) target = $region24
        $region23: #{tpu_custom_call.1} parent=11 // pred_region
          %s196 = ssub.s32 107520, 107520
          %197 = vsyncadd [#allocation9], %s196
          %s198 = sshll.u32 [#allocation8], 4
          %s199 = int_to_ptr.vmem [resolvable:$true] %s198
          %204 = dma.hbm_to_vmem [thread:$0]  %s3, 107520, %s199, [#allocation9], 1536, 1536, 96
        $region24: #{tpu_custom_call.1} parent=11 // pred_fallthru
          _
        // Predicated region
        $region25: #{tpu_custom_call.1} parent=11 // pred_check
          %p205 = pneg %p129
        $region26: #{tpu_custom_call.1} parent=11 // pred_check_branch
          %207 = sbr.rel (%p205) target = $region28
        $region27: #{tpu_custom_call.1} parent=11 // pred_region
          %s209 = ssub.s32 192, 192
          %210 = vsyncadd [#allocation9], %s209
          %s212 = sshll.u32 [#allocation10], 4
          %s213 = int_to_ptr.vmem [resolvable:$true] %s212
          %215 = dma.hbm_to_vmem [thread:$0]  %s4, 192, %s213, [#allocation9]
        $region28: #{tpu_custom_call.1} parent=11 // pred_fallthru
          _
      $region12: #{tpu_custom_call.1} parent=5 // pred_fallthru
        _
      %p216 = scmp.lt.s32.totalorder %s19, 2
      // Predicated region
      $region29: #{tpu_custom_call.1} parent=5 // pred_check
        %p217 = pneg %p216
      $region30: #{tpu_custom_call.1} parent=5 // pred_check_branch
        %219 = sbr.rel (%p217) target = $region32
      $region31: #{tpu_custom_call.1} parent=5 // pred_region
        // Predicated region
        $region33: #{tpu_custom_call.1} parent=31 // pred_check
          %p220 = pneg %p39
        $region34: #{tpu_custom_call.1} parent=31 // pred_check_branch
          %222 = sbr.rel (%p220) target = $region36
        $region35: #{tpu_custom_call.1} parent=31 // pred_region
          %s223 = sand.u32 %s29, 1
          %s224 = scalar_lea.sflag [#allocation3], %s223
          %s225 = sand.u32 %s29, 1
          %s226 = smul.addr %s225, 80
          %s227 = scalar_lea.vmem [#allocation2], %s226
          %s228 = smul.u32 2, %s19
          %s230 = ssub.s32 1280, 1280
          %231 = vsyncadd %s224, %s230
          %s232 = smul.addr %s228, 5
          %s233 = smul.addr %s232, 128
          %s234 = scalar_lea.hbm %s0, %s233
          %s235 = sshll.u32 %s227, 4
          %s236 = int_to_ptr.vmem [resolvable:$true] %s235
          %241 = dma.hbm_to_vmem [thread:$0]  %s234, 1280, %s236, %s224, 640, 640, 40
        $region36: #{tpu_custom_call.1} parent=31 // pred_fallthru
          _
      $region32: #{tpu_custom_call.1} parent=5 // pred_fallthru
        _
      %p242 = scmp.le.s32.totalorder 1, %s19
      %p243 = scmp.lt.s32.totalorder %s19, 3
      %p244 = pnand %p242, %p243
      %p245 = pneg %p244
      // Predicated region
      $region37: #{tpu_custom_call.1} parent=5 // pred_check
        _
      $region38: #{tpu_custom_call.1} parent=5 // pred_check_branch
        %247 = sbr.rel (%p244) target = $region40
      $region39: #{tpu_custom_call.1} parent=5 // pred_region
        %s248 = ssub.s32 %s19, 1
        %s249 = sand.u32 %s32, 1
        %s250 = scalar_lea.sflag [#allocation3], %s249
        %s251 = sand.u32 %s32, 1
        %s252 = smul.addr %s251, 80
        %s253 = scalar_lea.vmem [#allocation2], %s252
        // Predicated region
        $region41: #{tpu_custom_call.1} parent=39 // pred_check
          %p254 = pneg %p45
        $region42: #{tpu_custom_call.1} parent=39 // pred_check_branch
          %256 = sbr.rel (%p254) target = $region44
        $region43: #{tpu_custom_call.1} parent=39 // pred_region
          %257 = dma.done %s250, 1280
        $region44: #{tpu_custom_call.1} parent=39 // pred_fallthru
          _
        // Predicated region
        $region45: #{tpu_custom_call.1} parent=39 // pred_check
          %p258 = pneg %p66
        $region46: #{tpu_custom_call.1} parent=39 // pred_check_branch
          %260 = sbr.rel (%p258) target = $region48
        $region47: #{tpu_custom_call.1} parent=39 // pred_region
          %261 = dma.done [#allocation6], 80
        $region48: #{tpu_custom_call.1} parent=39 // pred_fallthru
          _
        // Predicated region
        $region49: #{tpu_custom_call.1} parent=39 // pred_check
          %p262 = pneg %p87
        $region50: #{tpu_custom_call.1} parent=39 // pred_check_branch
          %264 = sbr.rel (%p262) target = $region52
        $region51: #{tpu_custom_call.1} parent=39 // pred_region
          %265 = dma.done [#allocation6], 80
        $region52: #{tpu_custom_call.1} parent=39 // pred_fallthru
          _
        // Predicated region
        $region53: #{tpu_custom_call.1} parent=39 // pred_check
          %p266 = pneg %p108
        $region54: #{tpu_custom_call.1} parent=39 // pred_check_branch
          %268 = sbr.rel (%p266) target = $region56
        $region55: #{tpu_custom_call.1} parent=39 // pred_region
          %269 = dma.done [#allocation9], 107520
        $region56: #{tpu_custom_call.1} parent=39 // pred_fallthru
          _
        // Predicated region
        $region57: #{tpu_custom_call.1} parent=39 // pred_check
          %p270 = pneg %p129
        $region58: #{tpu_custom_call.1} parent=39 // pred_check_branch
          %272 = sbr.rel (%p270) target = $region60
        $region59: #{tpu_custom_call.1} parent=39 // pred_region
          %273 = dma.done [#allocation9], 192
        $region60: #{tpu_custom_call.1} parent=39 // pred_fallthru
          _
        %s274 = sand.u32 %s32, 1
        %s275 = scalar_lea.sflag [#allocation3], %s274
        %s276 = sand.u32 %s32, 1
        %s277 = smul.addr %s276, 80
        %s278 = scalar_lea.vmem [#allocation2], %s277
        %p279 = pneg %p45
        %p280 = pneg %p42
        %p281 = pneg %p66
        %p282 = pneg %p63
        %p283 = pneg %p87
        %p284 = pneg %p84
        %p285 = pneg %p108
        %p286 = pneg %p105
        %p287 = pneg %p129
        %p288 = pneg %p126
        %p289 = pneg %p155
        %p290 = pneg %p152
        %s291 = sand.u32 %s142, 1
        %s292 = scalar_lea.sflag [#allocation4], %s291
        %s293 = sand.u32 %s142, 1
        %s294 = smul.addr %s293, 192
        %s295 = scalar_lea.vmem [#allocation11], %s294
        %s296 = smul.u32 2, %s24
        %s297 = smul.u32 2, %s24
        %v298 = vld [vmem:[%s253] sm:$0xff]
        %v299 = vld [vmem:[%s253 + $0x8] sm:$0xff]
        %v300 = vld [vmem:[%s253 + $0x10] sm:$0xff]
        %v301 = vld [vmem:[%s253 + $0x18] sm:$0xff]
        %v302 = vld [vmem:[%s253 + $0x20] sm:$0xff]
        %v303 = vld [vmem:[%s253 + $0x28] sm:$0xff]
        %v304 = vld [vmem:[%s253 + $0x30] sm:$0xff]
        %v305 = vld [vmem:[%s253 + $0x38] sm:$0xff]
        %v306 = vld [vmem:[%s253 + $0x40] sm:$0xff]
        %v307 = vld [vmem:[%s253 + $0x48] sm:$0xff]
        %v308 = vadd.f32 %v298, %v299
        %v309 = vadd.f32 %v308, %v300
        %v310 = vadd.f32 %v309, %v301
        %vm311 = vcmask 392192
        %v312 = vsel %vm311, %v302, 0.0
        %v313 = vadd.f32 %v310, %v312
        %314 = vadd.xlane.f32.xlu0 %v313
        %v315 = vpop.xlane.xlu0 %314
        %v316 = vadd.f32 %v303, %v304
        %v317 = vadd.f32 %v316, %v305
        %v318 = vadd.f32 %v317, %v306
        %v319 = vsel %vm311, %v307, 0.0
        %v320 = vadd.f32 %v318, %v319
        %321 = vadd.xlane.f32.xlu0 %v320
        %v322 = vpop.xlane.xlu0 %321
        %v323 = vrcp.pop 560.0
        %v324 = vmul.f32 %v315, %v323
        %v325 = vmul.f32 %v322, %v323
        %v326 = vsub.f32 %v298, %v324
        %v327 = vsub.f32 %v299, %v324
        %v328 = vsub.f32 %v300, %v324
        %v329 = vsub.f32 %v301, %v324
        %v330 = vsub.f32 %v302, %v324
        %v331 = vsub.f32 %v303, %v325
        %v332 = vsub.f32 %v304, %v325
        %v333 = vsub.f32 %v305, %v325
        %v334 = vsub.f32 %v306, %v325
        %v335 = vsub.f32 %v307, %v325
        %v336 = vmul.f32 %v326, %v326
        %v337 = vmul.f32 %v327, %v327
        %v338 = vmul.f32 %v328, %v328
        %v339 = vmul.f32 %v329, %v329
        %v340 = vmul.f32 %v330, %v330
        %v341 = vmul.f32 %v331, %v331
        %v342 = vmul.f32 %v332, %v332
        %v343 = vmul.f32 %v333, %v333
        %v344 = vmul.f32 %v334, %v334
        %v345 = vmul.f32 %v335, %v335
        %v346 = vadd.f32 %v336, %v337
        %v347 = vadd.f32 %v346, %v338
        %v348 = vadd.f32 %v347, %v339
        %v349 = vsel %vm311, %v340, 0.0
        %v350 = vadd.f32 %v348, %v349
        %351 = vadd.xlane.f32.xlu0 %v350
        %v352 = vpop.xlane.xlu0 %351
        %v353 = vadd.f32 %v341, %v342
        %v354 = vadd.f32 %v353, %v343
        %v355 = vadd.f32 %v354, %v344
        %v356 = vsel %vm311, %v345, 0.0
        %v357 = vadd.f32 %v355, %v356
        %358 = vadd.xlane.f32.xlu0 %v357
        %v359 = vpop.xlane.xlu0 %358
        %v360 = vmul.f32 %v352, %v323
        %v361 = vmul.f32 %v359, %v323
        %v362 = vadd.f32 %v360, 1e-12
        %v363 = vadd.f32 %v361, 1e-12
        %v364 = vrsqrt.pop %v362
        %v365 = vrsqrt.pop %v363
        %v366 = vmul.f32 %v326, %v364
        %v367 = vmul.f32 %v327, %v364
        %v368 = vmul.f32 %v328, %v364
        %v369 = vmul.f32 %v329, %v364
        %v370 = vmul.f32 %v330, %v364
        %v371 = vmul.f32 %v331, %v365
        %v372 = vmul.f32 %v332, %v365
        %v373 = vmul.f32 %v333, %v365
        %v374 = vmul.f32 %v334, %v365
        %v375 = vmul.f32 %v335, %v365
        %v376 = vld [vmem:[#allocation5] sm:$0x1f]
        %v378 = vlaneseq
        %v379 = vshrl.u32 %v378, 7
        %v380 = vsub.s32 0, %v379
        %v381 = vrot.slane %v376, %v380
        %v382 = vlaneseq
        %v383 = vshrl.u32 %v382, 7
        %v384 = vsub.s32 1, %v383
        %v385 = vrot.slane %v376, %v384
        %v386 = vlaneseq
        %v387 = vshrl.u32 %v386, 7
        %v388 = vsub.s32 2, %v387
        %v389 = vrot.slane %v376, %v388
        %v390 = vlaneseq
        %v391 = vshrl.u32 %v390, 7
        %v392 = vsub.s32 3, %v391
        %v393 = vrot.slane %v376, %v392
        %v394 = vlaneseq
        %v395 = vshrl.u32 %v394, 7
        %v396 = vsub.s32 4, %v395
        %v397 = vrot.slane %v376, %v396
        %v403 = vmul.f32 %v366, %v381
        %v404 = vmul.f32 %v367, %v385
        %v405 = vmul.f32 %v368, %v389
        %v406 = vmul.f32 %v369, %v393
        %v407 = vmul.f32 %v370, %v397
        %v408 = vmul.f32 %v371, %v381
        %v409 = vmul.f32 %v372, %v385
        %v410 = vmul.f32 %v373, %v389
        %v411 = vmul.f32 %v374, %v393
        %v412 = vmul.f32 %v375, %v397
        %v413 = vld [vmem:[#allocation7] sm:$0x1f]
        %v415 = vlaneseq
        %v416 = vshrl.u32 %v415, 7
        %v417 = vsub.s32 0, %v416
        %v418 = vrot.slane %v413, %v417
        %v419 = vlaneseq
        %v420 = vshrl.u32 %v419, 7
        %v421 = vsub.s32 1, %v420
        %v422 = vrot.slane %v413, %v421
        %v423 = vlaneseq
        %v424 = vshrl.u32 %v423, 7
        %v425 = vsub.s32 2, %v424
        %v426 = vrot.slane %v413, %v425
        %v427 = vlaneseq
        %v428 = vshrl.u32 %v427, 7
        %v429 = vsub.s32 3, %v428
        %v430 = vrot.slane %v413, %v429
        %v431 = vlaneseq
        %v432 = vshrl.u32 %v431, 7
        %v433 = vsub.s32 4, %v432
        %v434 = vrot.slane %v413, %v433
        %v440 = vadd.f32 %v403, %v418
        %v441 = vadd.f32 %v404, %v422
        %v442 = vadd.f32 %v405, %v426
        %v443 = vadd.f32 %v406, %v430
        %v444 = vadd.f32 %v407, %v434
        %v445 = vadd.f32 %v408, %v418
        %v446 = vadd.f32 %v409, %v422
        %v447 = vadd.f32 %v410, %v426
        %v448 = vadd.f32 %v411, %v430
        %v449 = vadd.f32 %v412, %v434
        %v450 = vld [vmem:[#allocation8] sm:$0xff]
        %v451 = vld [vmem:[#allocation8 + $0x8] sm:$0xff]
        %v452 = vld [vmem:[#allocation8 + $0x10] sm:$0xff]
        %v453 = vld [vmem:[#allocation8 + $0x18] sm:$0xff]
        %v454 = vld [vmem:[#allocation8 + $0x20] sm:$0xff]
        %v455 = vld [vmem:[#allocation8 + $0x28] sm:$0xff]
        %v456 = vld [vmem:[#allocation8 + $0x30] sm:$0xff]
        %v457 = vld [vmem:[#allocation8 + $0x38] sm:$0xff]
        %v458 = vld [vmem:[#allocation8 + $0x40] sm:$0xff]
        %v459 = vld [vmem:[#allocation8 + $0x48] sm:$0xff]
        %v460 = vld [vmem:[#allocation8 + $0x50] sm:$0xff]
        %v461 = vld [vmem:[#allocation8 + $0x58] sm:$0xff]
        %v462 = vld [vmem:[#allocation8 + $0x60] sm:$0xff]
        %v463 = vld [vmem:[#allocation8 + $0x68] sm:$0xff]
        %v464 = vld [vmem:[#allocation8 + $0x70] sm:$0xff]
        %v465 = vld [vmem:[#allocation8 + $0x78] sm:$0xff]
        %v466 = vld [vmem:[#allocation8 + $0x80] sm:$0xff]
        %v467 = vld [vmem:[#allocation8 + $0x88] sm:$0xff]
        %v468 = vld [vmem:[#allocation8 + $0x90] sm:$0xff]
        %v469 = vld [vmem:[#allocation8 + $0x98] sm:$0xff]
        %v470 = vld [vmem:[#allocation8 + $0xa0] sm:$0xff]
        %v471 = vld [vmem:[#allocation8 + $0xa8] sm:$0xff]
        %v472 = vld [vmem:[#allocation8 + $0xb0] sm:$0xff]
        %v473 = vld [vmem:[#allocation8 + $0xb8] sm:$0xff]
        %v474 = vld [vmem:[#allocation8 + $0xc0] sm:$0xff]
        %v475 = vld [vmem:[#allocation8 + $0xc8] sm:$0xff]
        %v476 = vld [vmem:[#allocation8 + $0xd0] sm:$0xff]
        %v477 = vld [vmem:[#allocation8 + $0xd8] sm:$0xff]
        %v478 = vld [vmem:[#allocation8 + $0xe0] sm:$0xff]
        %v479 = vld [vmem:[#allocation8 + $0xe8] sm:$0xff]
        %v480 = vld [vmem:[#allocation8 + $0xf0] sm:$0xff]
        %v481 = vld [vmem:[#allocation8 + $0xf8] sm:$0xff]
        %v482 = vld [vmem:[#allocation8 + $0x100] sm:$0xff]
        %v483 = vld [vmem:[#allocation8 + $0x108] sm:$0xff]
        %v484 = vld [vmem:[#allocation8 + $0x110] sm:$0xff]
        %v485 = vld [vmem:[#allocation8 + $0x118] sm:$0xff]
        %v486 = vld [vmem:[#allocation8 + $0x120] sm:$0xff]
        %v487 = vld [vmem:[#allocation8 + $0x128] sm:$0xff]
        %v488 = vld [vmem:[#allocation8 + $0x130] sm:$0xff]
        %v489 = vld [vmem:[#allocation8 + $0x138] sm:$0xff]
        %v490 = vld [vmem:[#allocation8 + $0x140] sm:$0xff]
        %v491 = vld [vmem:[#allocation8 + $0x148] sm:$0xff]
        %v492 = vld [vmem:[#allocation8 + $0x150] sm:$0xff]
        %v493 = vld [vmem:[#allocation8 + $0x158] sm:$0xff]
        %v494 = vld [vmem:[#allocation8 + $0x160] sm:$0xff]
        %v495 = vld [vmem:[#allocation8 + $0x168] sm:$0xff]
        %v496 = vld [vmem:[#allocation8 + $0x170] sm:$0xff]
        %v497 = vld [vmem:[#allocation8 + $0x178] sm:$0xff]
        %v498 = vld [vmem:[#allocation8 + $0x180] sm:$0xff]
        %v499 = vld [vmem:[#allocation8 + $0x188] sm:$0xff]
        %v500 = vld [vmem:[#allocation8 + $0x190] sm:$0xff]
        %v501 = vld [vmem:[#allocation8 + $0x198] sm:$0xff]
        %v502 = vld [vmem:[#allocation8 + $0x1a0] sm:$0xff]
        %v503 = vld [vmem:[#allocation8 + $0x1a8] sm:$0xff]
        %v504 = vld [vmem:[#allocation8 + $0x1b0] sm:$0xff]
        %v505 = vld [vmem:[#allocation8 + $0x1b8] sm:$0xff]
        %v506 = vld [vmem:[#allocation8 + $0x1c0] sm:$0xff]
        %v507 = vld [vmem:[#allocation8 + $0x1c8] sm:$0xff]
        %v508 = vld [vmem:[#allocation8 + $0x1d0] sm:$0xff]
        %v509 = vld [vmem:[#allocation8 + $0x1d8] sm:$0xff]
        %v510 = vld [vmem:[#allocation8 + $0x1e0] sm:$0xff]
        %v511 = vld [vmem:[#allocation8 + $0x1e8] sm:$0xff]
        %v512 = vld [vmem:[#allocation8 + $0x1f0] sm:$0xff]
        %v513 = vld [vmem:[#allocation8 + $0x1f8] sm:$0xff]
        %v514 = vld [vmem:[#allocation8 + $0x200] sm:$0xff]
        %v515 = vld [vmem:[#allocation8 + $0x208] sm:$0xff]
        %v516 = vld [vmem:[#allocation8 + $0x210] sm:$0xff]
        %v517 = vld [vmem:[#allocation8 + $0x218] sm:$0xff]
        %v518 = vld [vmem:[#allocation8 + $0x220] sm:$0xff]
        %v519 = vld [vmem:[#allocation8 + $0x228] sm:$0xff]
        %v520 = vld [vmem:[#allocation8 + $0x230] sm:$0xff]
        %v521 = vld [vmem:[#allocation8 + $0x238] sm:$0xff]
        %v522 = vld [vmem:[#allocation8 + $0x240] sm:$0xff]
        %v523 = vld [vmem:[#allocation8 + $0x248] sm:$0xff]
        %v524 = vld [vmem:[#allocation8 + $0x250] sm:$0xff]
        %v525 = vld [vmem:[#allocation8 + $0x258] sm:$0xff]
        %v526 = vld [vmem:[#allocation8 + $0x260] sm:$0xff]
        %v527 = vld [vmem:[#allocation8 + $0x268] sm:$0xff]
        %v528 = vld [vmem:[#allocation8 + $0x270] sm:$0xff]
        %v529 = vld [vmem:[#allocation8 + $0x278] sm:$0xff]
        %v530 = vld [vmem:[#allocation8 + $0x280] sm:$0xff]
        %v531 = vld [vmem:[#allocation8 + $0x288] sm:$0xff]
        %v532 = vld [vmem:[#allocation8 + $0x290] sm:$0xff]
        %v533 = vld [vmem:[#allocation8 + $0x298] sm:$0xff]
        %v534 = vld [vmem:[#allocation8 + $0x2a0] sm:$0xff]
        %v535 = vld [vmem:[#allocation8 + $0x2a8] sm:$0xff]
        %v536 = vld [vmem:[#allocation8 + $0x2b0] sm:$0xff]
        %v537 = vld [vmem:[#allocation8 + $0x2b8] sm:$0xff]
        %v538 = vld [vmem:[#allocation8 + $0x2c0] sm:$0xff]
        %v539 = vld [vmem:[#allocation8 + $0x2c8] sm:$0xff]
        %v540 = vld [vmem:[#allocation8 + $0x2d0] sm:$0xff]
        %v541 = vld [vmem:[#allocation8 + $0x2d8] sm:$0xff]
        %v542 = vld [vmem:[#allocation8 + $0x2e0] sm:$0xff]
        %v543 = vld [vmem:[#allocation8 + $0x2e8] sm:$0xff]
        %v544 = vld [vmem:[#allocation8 + $0x2f0] sm:$0xff]
        %v545 = vld [vmem:[#allocation8 + $0x2f8] sm:$0xff]
        %v546 = vld [vmem:[#allocation8 + $0x300] sm:$0xff]
        %v547 = vld [vmem:[#allocation8 + $0x308] sm:$0xff]
        %v548 = vld [vmem:[#allocation8 + $0x310] sm:$0xff]
        %v549 = vld [vmem:[#allocation8 + $0x318] sm:$0xff]
        %v550 = vld [vmem:[#allocation8 + $0x320] sm:$0xff]
        %v551 = vld [vmem:[#allocation8 + $0x328] sm:$0xff]
        %v552 = vld [vmem:[#allocation8 + $0x330] sm:$0xff]
        %v553 = vld [vmem:[#allocation8 + $0x338] sm:$0xff]
        %v554 = vld [vmem:[#allocation8 + $0x340] sm:$0xff]
        %v555 = vld [vmem:[#allocation8 + $0x348] sm:$0xff]
        %v556 = vld [vmem:[#allocation8 + $0x350] sm:$0xff]
        %v557 = vld [vmem:[#allocation8 + $0x358] sm:$0xff]
        %v558 = vld [vmem:[#allocation8 + $0x360] sm:$0xff]
        %v559 = vld [vmem:[#allocation8 + $0x368] sm:$0xff]
        %v560 = vld [vmem:[#allocation8 + $0x370] sm:$0xff]
        %v561 = vld [vmem:[#allocation8 + $0x378] sm:$0xff]
        %v562 = vld [vmem:[#allocation8 + $0x380] sm:$0xff]
        %v563 = vld [vmem:[#allocation8 + $0x388] sm:$0xff]
        %v564 = vld [vmem:[#allocation8 + $0x390] sm:$0xff]
        %v565 = vld [vmem:[#allocation8 + $0x398] sm:$0xff]
        %v566 = vld [vmem:[#allocation8 + $0x3a0] sm:$0xff]
        %v567 = vld [vmem:[#allocation8 + $0x3a8] sm:$0xff]
        %v568 = vld [vmem:[#allocation8 + $0x3b0] sm:$0xff]
        %v569 = vld [vmem:[#allocation8 + $0x3b8] sm:$0xff]
        %v570 = vld [vmem:[#allocation8 + $0x3c0] sm:$0xff]
        %v571 = vld [vmem:[#allocation8 + $0x3c8] sm:$0xff]
        %v572 = vld [vmem:[#allocation8 + $0x3d0] sm:$0xff]
        %v573 = vld [vmem:[#allocation8 + $0x3d8] sm:$0xff]
        %v574 = vld [vmem:[#allocation8 + $0x3e0] sm:$0xff]
        %v575 = vld [vmem:[#allocation8 + $0x3e8] sm:$0xff]
        %v576 = vld [vmem:[#allocation8 + $0x3f0] sm:$0xff]
        %v577 = vld [vmem:[#allocation8 + $0x3f8] sm:$0xff]
        %v578 = vld [vmem:[#allocation8 + $0x400] sm:$0xff]
        %v579 = vld [vmem:[#allocation8 + $0x408] sm:$0xff]
        %v580 = vld [vmem:[#allocation8 + $0x410] sm:$0xff]
        %v581 = vld [vmem:[#allocation8 + $0x418] sm:$0xff]
        %v582 = vld [vmem:[#allocation8 + $0x420] sm:$0xff]
        %v583 = vld [vmem:[#allocation8 + $0x428] sm:$0xff]
        %v584 = vld [vmem:[#allocation8 + $0x430] sm:$0xff]
        %v585 = vld [vmem:[#allocation8 + $0x438] sm:$0xff]
        %v586 = vld [vmem:[#allocation8 + $0x440] sm:$0xff]
        %v587 = vld [vmem:[#allocation8 + $0x448] sm:$0xff]
        %v588 = vld [vmem:[#allocation8 + $0x450] sm:$0xff]
        %v589 = vld [vmem:[#allocation8 + $0x458] sm:$0xff]
        %v590 = vld [vmem:[#allocation8 + $0x460] sm:$0xff]
        %v591 = vld [vmem:[#allocation8 + $0x468] sm:$0xff]
        %v592 = vld [vmem:[#allocation8 + $0x470] sm:$0xff]
        %v593 = vld [vmem:[#allocation8 + $0x478] sm:$0xff]
        %v594 = vld [vmem:[#allocation8 + $0x480] sm:$0xff]
        %v595 = vld [vmem:[#allocation8 + $0x488] sm:$0xff]
        %v596 = vld [vmem:[#allocation8 + $0x490] sm:$0xff]
        %v597 = vld [vmem:[#allocation8 + $0x498] sm:$0xff]
        %v598 = vld [vmem:[#allocation8 + $0x4a0] sm:$0xff]
        %v599 = vld [vmem:[#allocation8 + $0x4a8] sm:$0xff]
        %v600 = vld [vmem:[#allocation8 + $0x4b0] sm:$0xff]
        %v601 = vld [vmem:[#allocation8 + $0x4b8] sm:$0xff]
        %v602 = vld [vmem:[#allocation8 + $0x4c0] sm:$0xff]
        %v603 = vld [vmem:[#allocation8 + $0x4c8] sm:$0xff]
        %v604 = vld [vmem:[#allocation8 + $0x4d0] sm:$0xff]
        %v605 = vld [vmem:[#allocation8 + $0x4d8] sm:$0xff]
        %v606 = vld [vmem:[#allocation8 + $0x4e0] sm:$0xff]
        %v607 = vld [vmem:[#allocation8 + $0x4e8] sm:$0xff]
        %v608 = vld [vmem:[#allocation8 + $0x4f0] sm:$0xff]
        %v609 = vld [vmem:[#allocation8 + $0x4f8] sm:$0xff]
        %v610 = vld [vmem:[#allocation8 + $0x500] sm:$0xff]
        %v611 = vld [vmem:[#allocation8 + $0x508] sm:$0xff]
        %v612 = vld [vmem:[#allocation8 + $0x510] sm:$0xff]
        %v613 = vld [vmem:[#allocation8 + $0x518] sm:$0xff]
        %v614 = vld [vmem:[#allocation8 + $0x520] sm:$0xff]
        %v615 = vld [vmem:[#allocation8 + $0x528] sm:$0xff]
        %v616 = vld [vmem:[#allocation8 + $0x530] sm:$0xff]
        %v617 = vld [vmem:[#allocation8 + $0x538] sm:$0xff]
        %v618 = vld [vmem:[#allocation8 + $0x540] sm:$0xff]
        %v619 = vld [vmem:[#allocation8 + $0x548] sm:$0xff]
        %v620 = vld [vmem:[#allocation8 + $0x550] sm:$0xff]
        %v621 = vld [vmem:[#allocation8 + $0x558] sm:$0xff]
        %v622 = vld [vmem:[#allocation8 + $0x560] sm:$0xff]
        %v623 = vld [vmem:[#allocation8 + $0x568] sm:$0xff]
        %v624 = vld [vmem:[#allocation8 + $0x570] sm:$0xff]
        %v625 = vld [vmem:[#allocation8 + $0x578] sm:$0xff]
        %v626 = vld [vmem:[#allocation8 + $0x580] sm:$0xff]
        %v627 = vld [vmem:[#allocation8 + $0x588] sm:$0xff]
        %v628 = vld [vmem:[#allocation8 + $0x590] sm:$0xff]
        %v629 = vld [vmem:[#allocation8 + $0x598] sm:$0xff]
        %v630 = vld [vmem:[#allocation8 + $0x5a0] sm:$0xff]
        %v631 = vld [vmem:[#allocation8 + $0x5a8] sm:$0xff]
        %v632 = vld [vmem:[#allocation8 + $0x5b0] sm:$0xff]
        %v633 = vld [vmem:[#allocation8 + $0x5b8] sm:$0xff]
        %v634 = vld [vmem:[#allocation8 + $0x5c0] sm:$0xff]
        %v635 = vld [vmem:[#allocation8 + $0x5c8] sm:$0xff]
        %v636 = vld [vmem:[#allocation8 + $0x5d0] sm:$0xff]
        %v637 = vld [vmem:[#allocation8 + $0x5d8] sm:$0xff]
        %v638 = vld [vmem:[#allocation8 + $0x5e0] sm:$0xff]
        %v639 = vld [vmem:[#allocation8 + $0x5e8] sm:$0xff]
        %v640 = vld [vmem:[#allocation8 + $0x5f0] sm:$0xff]
        %v641 = vld [vmem:[#allocation8 + $0x5f8] sm:$0xff]
        %v642 = vld [vmem:[#allocation8 + $0x600] sm:$0xff]
        %v643 = vld [vmem:[#allocation8 + $0x608] sm:$0xff]
        %v644 = vld [vmem:[#allocation8 + $0x610] sm:$0xff]
        %v645 = vld [vmem:[#allocation8 + $0x618] sm:$0xff]
        %v646 = vld [vmem:[#allocation8 + $0x620] sm:$0xff]
        %v647 = vld [vmem:[#allocation8 + $0x628] sm:$0xff]
        %v648 = vld [vmem:[#allocation8 + $0x630] sm:$0xff]
        %v649 = vld [vmem:[#allocation8 + $0x638] sm:$0xff]
        %v650 = vld [vmem:[#allocation8 + $0x640] sm:$0xff]
        %v651 = vld [vmem:[#allocation8 + $0x648] sm:$0xff]
        %v652 = vld [vmem:[#allocation8 + $0x650] sm:$0xff]
        %v653 = vld [vmem:[#allocation8 + $0x658] sm:$0xff]
        %v654 = vld [vmem:[#allocation8 + $0x660] sm:$0xff]
        %v655 = vld [vmem:[#allocation8 + $0x668] sm:$0xff]
        %v656 = vld [vmem:[#allocation8 + $0x670] sm:$0xff]
        %v657 = vld [vmem:[#allocation8 + $0x678] sm:$0xff]
        %v658 = vld [vmem:[#allocation8 + $0x680] sm:$0xff]
        %v659 = vld [vmem:[#allocation8 + $0x688] sm:$0xff]
        %v660 = vld [vmem:[#allocation8 + $0x690] sm:$0xff]
        %v661 = vld [vmem:[#allocation8 + $0x698] sm:$0xff]
        %v662 = vld [vmem:[#allocation8 + $0x6a0] sm:$0xff]
        %v663 = vld [vmem:[#allocation8 + $0x6a8] sm:$0xff]
        %v664 = vld [vmem:[#allocation8 + $0x6b0] sm:$0xff]
        %v665 = vld [vmem:[#allocation8 + $0x6b8] sm:$0xff]
        %v666 = vld [vmem:[#allocation8 + $0x6c0] sm:$0xff]
        %v667 = vld [vmem:[#allocation8 + $0x6c8] sm:$0xff]
        %v668 = vld [vmem:[#allocation8 + $0x6d0] sm:$0xff]
        %v669 = vld [vmem:[#allocation8 + $0x6d8] sm:$0xff]
        %v670 = vld [vmem:[#allocation8 + $0x6e0] sm:$0xff]
        %v671 = vld [vmem:[#allocation8 + $0x6e8] sm:$0xff]
        %v672 = vld [vmem:[#allocation8 + $0x6f0] sm:$0xff]
        %v673 = vld [vmem:[#allocation8 + $0x6f8] sm:$0xff]
        %v674 = vld [vmem:[#allocation8 + $0x700] sm:$0xff]
        %v675 = vld [vmem:[#allocation8 + $0x708] sm:$0xff]
        %v676 = vld [vmem:[#allocation8 + $0x710] sm:$0xff]
        %v677 = vld [vmem:[#allocation8 + $0x718] sm:$0xff]
        %v678 = vld [vmem:[#allocation8 + $0x720] sm:$0xff]
        %v679 = vld [vmem:[#allocation8 + $0x728] sm:$0xff]
        %v680 = vld [vmem:[#allocation8 + $0x730] sm:$0xff]
        %v681 = vld [vmem:[#allocation8 + $0x738] sm:$0xff]
        %v682 = vld [vmem:[#allocation8 + $0x740] sm:$0xff]
        %v683 = vld [vmem:[#allocation8 + $0x748] sm:$0xff]
        %v684 = vld [vmem:[#allocation8 + $0x750] sm:$0xff]
        %v685 = vld [vmem:[#allocation8 + $0x758] sm:$0xff]
        %v686 = vld [vmem:[#allocation8 + $0x760] sm:$0xff]
        %v687 = vld [vmem:[#allocation8 + $0x768] sm:$0xff]
        %v688 = vld [vmem:[#allocation8 + $0x770] sm:$0xff]
        %v689 = vld [vmem:[#allocation8 + $0x778] sm:$0xff]
        %v690 = vld [vmem:[#allocation8 + $0x780] sm:$0xff]
        %v691 = vld [vmem:[#allocation8 + $0x788] sm:$0xff]
        %v692 = vld [vmem:[#allocation8 + $0x790] sm:$0xff]
        %v693 = vld [vmem:[#allocation8 + $0x798] sm:$0xff]
        %v694 = vld [vmem:[#allocation8 + $0x7a0] sm:$0xff]
        %v695 = vld [vmem:[#allocation8 + $0x7a8] sm:$0xff]
        %v696 = vld [vmem:[#allocation8 + $0x7b0] sm:$0xff]
        %v697 = vld [vmem:[#allocation8 + $0x7b8] sm:$0xff]
        %v698 = vld [vmem:[#allocation8 + $0x7c0] sm:$0xff]
        %v699 = vld [vmem:[#allocation8 + $0x7c8] sm:$0xff]
        %v700 = vld [vmem:[#allocation8 + $0x7d0] sm:$0xff]
        %v701 = vld [vmem:[#allocation8 + $0x7d8] sm:$0xff]
        %v702 = vld [vmem:[#allocation8 + $0x7e0] sm:$0xff]
        %v703 = vld [vmem:[#allocation8 + $0x7e8] sm:$0xff]
        %v704 = vld [vmem:[#allocation8 + $0x7f0] sm:$0xff]
        %v705 = vld [vmem:[#allocation8 + $0x7f8] sm:$0xff]
        %v706 = vld [vmem:[#allocation8 + $0x800] sm:$0xff]
        %v707 = vld [vmem:[#allocation8 + $0x808] sm:$0xff]
        %v708 = vld [vmem:[#allocation8 + $0x810] sm:$0xff]
        %v709 = vld [vmem:[#allocation8 + $0x818] sm:$0xff]
        %v710 = vld [vmem:[#allocation8 + $0x820] sm:$0xff]
        %v711 = vld [vmem:[#allocation8 + $0x828] sm:$0xff]
        %v712 = vld [vmem:[#allocation8 + $0x830] sm:$0xff]
        %v713 = vld [vmem:[#allocation8 + $0x838] sm:$0xff]
        %v714 = vld [vmem:[#allocation8 + $0x840] sm:$0xff]
        %v715 = vld [vmem:[#allocation8 + $0x848] sm:$0xff]
        %v716 = vld [vmem:[#allocation8 + $0x850] sm:$0xff]
        %v717 = vld [vmem:[#allocation8 + $0x858] sm:$0xff]
        %v718 = vld [vmem:[#allocation8 + $0x860] sm:$0xff]
        %v719 = vld [vmem:[#allocation8 + $0x868] sm:$0xff]
        %v720 = vld [vmem:[#allocation8 + $0x870] sm:$0xff]
        %v721 = vld [vmem:[#allocation8 + $0x878] sm:$0xff]
        %v722 = vld [vmem:[#allocation8 + $0x880] sm:$0xff]
        %v723 = vld [vmem:[#allocation8 + $0x888] sm:$0xff]
        %v724 = vld [vmem:[#allocation8 + $0x890] sm:$0xff]
        %v725 = vld [vmem:[#allocation8 + $0x898] sm:$0xff]
        %v726 = vld [vmem:[#allocation8 + $0x8a0] sm:$0xff]
        %v727 = vld [vmem:[#allocation8 + $0x8a8] sm:$0xff]
        %v728 = vld [vmem:[#allocation8 + $0x8b0] sm:$0xff]
        %v729 = vld [vmem:[#allocation8 + $0x8b8] sm:$0xff]
        %v730 = vld [vmem:[#allocation8 + $0x8c0] sm:$0xff]
        %v731 = vld [vmem:[#allocation8 + $0x8c8] sm:$0xff]
        %v732 = vld [vmem:[#allocation8 + $0x8d0] sm:$0xff]
        %v733 = vld [vmem:[#allocation8 + $0x8d8] sm:$0xff]
        %v734 = vld [vmem:[#allocation8 + $0x8e0] sm:$0xff]
        %v735 = vld [vmem:[#allocation8 + $0x8e8] sm:$0xff]
        %v736 = vld [vmem:[#allocation8 + $0x8f0] sm:$0xff]
        %v737 = vld [vmem:[#allocation8 + $0x8f8] sm:$0xff]
        %v738 = vld [vmem:[#allocation8 + $0x900] sm:$0xff]
        %v739 = vld [vmem:[#allocation8 + $0x908] sm:$0xff]
        %v740 = vld [vmem:[#allocation8 + $0x910] sm:$0xff]
        %v741 = vld [vmem:[#allocation8 + $0x918] sm:$0xff]
        %v742 = vld [vmem:[#allocation8 + $0x920] sm:$0xff]
        %v743 = vld [vmem:[#allocation8 + $0x928] sm:$0xff]
        %v744 = vld [vmem:[#allocation8 + $0x930] sm:$0xff]
        %v745 = vld [vmem:[#allocation8 + $0x938] sm:$0xff]
        %v746 = vld [vmem:[#allocation8 + $0x940] sm:$0xff]
        %v747 = vld [vmem:[#allocation8 + $0x948] sm:$0xff]
        %v748 = vld [vmem:[#allocation8 + $0x950] sm:$0xff]
        %v749 = vld [vmem:[#allocation8 + $0x958] sm:$0xff]
        %v750 = vld [vmem:[#allocation8 + $0x960] sm:$0xff]
        %v751 = vld [vmem:[#allocation8 + $0x968] sm:$0xff]
        %v752 = vld [vmem:[#allocation8 + $0x970] sm:$0xff]
        %v753 = vld [vmem:[#allocation8 + $0x978] sm:$0xff]
        %v754 = vld [vmem:[#allocation8 + $0x980] sm:$0xff]
        %v755 = vld [vmem:[#allocation8 + $0x988] sm:$0xff]
        %v756 = vld [vmem:[#allocation8 + $0x990] sm:$0xff]
        %v757 = vld [vmem:[#allocation8 + $0x998] sm:$0xff]
        %v758 = vld [vmem:[#allocation8 + $0x9a0] sm:$0xff]
        %v759 = vld [vmem:[#allocation8 + $0x9a8] sm:$0xff]
        %v760 = vld [vmem:[#allocation8 + $0x9b0] sm:$0xff]
        %v761 = vld [vmem:[#allocation8 + $0x9b8] sm:$0xff]
        %v762 = vld [vmem:[#allocation8 + $0x9c0] sm:$0xff]
        %v763 = vld [vmem:[#allocation8 + $0x9c8] sm:$0xff]
        %v764 = vld [vmem:[#allocation8 + $0x9d0] sm:$0xff]
        %v765 = vld [vmem:[#allocation8 + $0x9d8] sm:$0xff]
        %v766 = vld [vmem:[#allocation8 + $0x9e0] sm:$0xff]
        %v767 = vld [vmem:[#allocation8 + $0x9e8] sm:$0xff]
        %v768 = vld [vmem:[#allocation8 + $0x9f0] sm:$0xff]
        %v769 = vld [vmem:[#allocation8 + $0x9f8] sm:$0xff]
        %v770 = vld [vmem:[#allocation8 + $0xa00] sm:$0xff]
        %v771 = vld [vmem:[#allocation8 + $0xa08] sm:$0xff]
        %v772 = vld [vmem:[#allocation8 + $0xa10] sm:$0xff]
        %v773 = vld [vmem:[#allocation8 + $0xa18] sm:$0xff]
        %v774 = vld [vmem:[#allocation8 + $0xa20] sm:$0xff]
        %v775 = vld [vmem:[#allocation8 + $0xa28] sm:$0xff]
        %v776 = vld [vmem:[#allocation8 + $0xa30] sm:$0xff]
        %v777 = vld [vmem:[#allocation8 + $0xa38] sm:$0xff]
        %v778 = vld [vmem:[#allocation8 + $0xa40] sm:$0xff]
        %v779 = vld [vmem:[#allocation8 + $0xa48] sm:$0xff]
        %v780 = vld [vmem:[#allocation8 + $0xa50] sm:$0xff]
        %v781 = vld [vmem:[#allocation8 + $0xa58] sm:$0xff]
        %v782 = vld [vmem:[#allocation8 + $0xa60] sm:$0xff]
        %v783 = vld [vmem:[#allocation8 + $0xa68] sm:$0xff]
        %v784 = vld [vmem:[#allocation8 + $0xa70] sm:$0xff]
        %v785 = vld [vmem:[#allocation8 + $0xa78] sm:$0xff]
        %v786 = vld [vmem:[#allocation8 + $0xa80] sm:$0xff]
        %v787 = vld [vmem:[#allocation8 + $0xa88] sm:$0xff]
        %v788 = vld [vmem:[#allocation8 + $0xa90] sm:$0xff]
        %v789 = vld [vmem:[#allocation8 + $0xa98] sm:$0xff]
        %v790 = vld [vmem:[#allocation8 + $0xaa0] sm:$0xff]
        %v791 = vld [vmem:[#allocation8 + $0xaa8] sm:$0xff]
        %v792 = vld [vmem:[#allocation8 + $0xab0] sm:$0xff]
        %v793 = vld [vmem:[#allocation8 + $0xab8] sm:$0xff]
        %v794 = vld [vmem:[#allocation8 + $0xac0] sm:$0xff]
        %v795 = vld [vmem:[#allocation8 + $0xac8] sm:$0xff]
        %v796 = vld [vmem:[#allocation8 + $0xad0] sm:$0xff]
        %v797 = vld [vmem:[#allocation8 + $0xad8] sm:$0xff]
        %v798 = vld [vmem:[#allocation8 + $0xae0] sm:$0xff]
        %v799 = vld [vmem:[#allocation8 + $0xae8] sm:$0xff]
        %v800 = vld [vmem:[#allocation8 + $0xaf0] sm:$0xff]
        %v801 = vld [vmem:[#allocation8 + $0xaf8] sm:$0xff]
        %v802 = vld [vmem:[#allocation8 + $0xb00] sm:$0xff]
        %v803 = vld [vmem:[#allocation8 + $0xb08] sm:$0xff]
        %v804 = vld [vmem:[#allocation8 + $0xb10] sm:$0xff]
        %v805 = vld [vmem:[#allocation8 + $0xb18] sm:$0xff]
        %v806 = vld [vmem:[#allocation8 + $0xb20] sm:$0xff]
        %v807 = vld [vmem:[#allocation8 + $0xb28] sm:$0xff]
        %v808 = vld [vmem:[#allocation8 + $0xb30] sm:$0xff]
        %v809 = vld [vmem:[#allocation8 + $0xb38] sm:$0xff]
        %v810 = vld [vmem:[#allocation8 + $0xb40] sm:$0xff]
        %v811 = vld [vmem:[#allocation8 + $0xb48] sm:$0xff]
        %v812 = vld [vmem:[#allocation8 + $0xb50] sm:$0xff]
        %v813 = vld [vmem:[#allocation8 + $0xb58] sm:$0xff]
        %v814 = vld [vmem:[#allocation8 + $0xb60] sm:$0xff]
        %v815 = vld [vmem:[#allocation8 + $0xb68] sm:$0xff]
        %v816 = vld [vmem:[#allocation8 + $0xb70] sm:$0xff]
        %v817 = vld [vmem:[#allocation8 + $0xb78] sm:$0xff]
        %v818 = vld [vmem:[#allocation8 + $0xb80] sm:$0xff]
        %v819 = vld [vmem:[#allocation8 + $0xb88] sm:$0xff]
        %v820 = vld [vmem:[#allocation8 + $0xb90] sm:$0xff]
        %v821 = vld [vmem:[#allocation8 + $0xb98] sm:$0xff]
        %v822 = vld [vmem:[#allocation8 + $0xba0] sm:$0xff]
        %v823 = vld [vmem:[#allocation8 + $0xba8] sm:$0xff]
        %v824 = vld [vmem:[#allocation8 + $0xbb0] sm:$0xff]
        %v825 = vld [vmem:[#allocation8 + $0xbb8] sm:$0xff]
        %v826 = vld [vmem:[#allocation8 + $0xbc0] sm:$0xff]
        %v827 = vld [vmem:[#allocation8 + $0xbc8] sm:$0xff]
        %v828 = vld [vmem:[#allocation8 + $0xbd0] sm:$0xff]
        %v829 = vld [vmem:[#allocation8 + $0xbd8] sm:$0xff]
        %v830 = vld [vmem:[#allocation8 + $0xbe0] sm:$0xff]
        %v831 = vld [vmem:[#allocation8 + $0xbe8] sm:$0xff]
        %v832 = vld [vmem:[#allocation8 + $0xbf0] sm:$0xff]
        %v833 = vld [vmem:[#allocation8 + $0xbf8] sm:$0xff]
        %v834 = vld [vmem:[#allocation8 + $0xc00] sm:$0xff]
        %v835 = vld [vmem:[#allocation8 + $0xc08] sm:$0xff]
        %v836 = vld [vmem:[#allocation8 + $0xc10] sm:$0xff]
        %v837 = vld [vmem:[#allocation8 + $0xc18] sm:$0xff]
        %v838 = vld [vmem:[#allocation8 + $0xc20] sm:$0xff]
        %v839 = vld [vmem:[#allocation8 + $0xc28] sm:$0xff]
        %v840 = vld [vmem:[#allocation8 + $0xc30] sm:$0xff]
        %v841 = vld [vmem:[#allocation8 + $0xc38] sm:$0xff]
        %v842 = vld [vmem:[#allocation8 + $0xc40] sm:$0xff]
        %v843 = vld [vmem:[#allocation8 + $0xc48] sm:$0xff]
        %v844 = vld [vmem:[#allocation8 + $0xc50] sm:$0xff]
        %v845 = vld [vmem:[#allocation8 + $0xc58] sm:$0xff]
        %v846 = vld [vmem:[#allocation8 + $0xc60] sm:$0xff]
        %v847 = vld [vmem:[#allocation8 + $0xc68] sm:$0xff]
        %v848 = vld [vmem:[#allocation8 + $0xc70] sm:$0xff]
        %v849 = vld [vmem:[#allocation8 + $0xc78] sm:$0xff]
        %v850 = vld [vmem:[#allocation8 + $0xc80] sm:$0xff]
        %v851 = vld [vmem:[#allocation8 + $0xc88] sm:$0xff]
        %v852 = vld [vmem:[#allocation8 + $0xc90] sm:$0xff]
        %v853 = vld [vmem:[#allocation8 + $0xc98] sm:$0xff]
        %v854 = vld [vmem:[#allocation8 + $0xca0] sm:$0xff]
        %v855 = vld [vmem:[#allocation8 + $0xca8] sm:$0xff]
        %v856 = vld [vmem:[#allocation8 + $0xcb0] sm:$0xff]
        %v857 = vld [vmem:[#allocation8 + $0xcb8] sm:$0xff]
        %v858 = vld [vmem:[#allocation8 + $0xcc0] sm:$0xff]
        %v859 = vld [vmem:[#allocation8 + $0xcc8] sm:$0xff]
        %v860 = vld [vmem:[#allocation8 + $0xcd0] sm:$0xff]
        %v861 = vld [vmem:[#allocation8 + $0xcd8] sm:$0xff]
        %v862 = vld [vmem:[#allocation8 + $0xce0] sm:$0xff]
        %v863 = vld [vmem:[#allocation8 + $0xce8] sm:$0xff]
        %v864 = vld [vmem:[#allocation8 + $0xcf0] sm:$0xff]
        %v865 = vld [vmem:[#allocation8 + $0xcf8] sm:$0xff]
        %v866 = vld [vmem:[#allocation8 + $0xd00] sm:$0xff]
        %v867 = vld [vmem:[#allocation8 + $0xd08] sm:$0xff]
        %v868 = vld [vmem:[#allocation8 + $0xd10] sm:$0xff]
        %v869 = vld [vmem:[#allocation8 + $0xd18] sm:$0xff]
        %v870 = vld [vmem:[#allocation8 + $0xd20] sm:$0xff]
        %v871 = vld [vmem:[#allocation8 + $0xd28] sm:$0xff]
        %v872 = vld [vmem:[#allocation8 + $0xd30] sm:$0xff]
        %v873 = vld [vmem:[#allocation8 + $0xd38] sm:$0xff]
        %v874 = vld [vmem:[#allocation8 + $0xd40] sm:$0xff]
        %v875 = vld [vmem:[#allocation8 + $0xd48] sm:$0xff]
        %v876 = vld [vmem:[#allocation8 + $0xd50] sm:$0xff]
        %v877 = vld [vmem:[#allocation8 + $0xd58] sm:$0xff]
        %v878 = vld [vmem:[#allocation8 + $0xd60] sm:$0xff]
        %v879 = vld [vmem:[#allocation8 + $0xd68] sm:$0xff]
        %v880 = vld [vmem:[#allocation8 + $0xd70] sm:$0xff]
        %v881 = vld [vmem:[#allocation8 + $0xd78] sm:$0xff]
        %v882 = vld [vmem:[#allocation8 + $0xd80] sm:$0xff]
        %v883 = vld [vmem:[#allocation8 + $0xd88] sm:$0xff]
        %v884 = vld [vmem:[#allocation8 + $0xd90] sm:$0xff]
        %v885 = vld [vmem:[#allocation8 + $0xd98] sm:$0xff]
        %v886 = vld [vmem:[#allocation8 + $0xda0] sm:$0xff]
        %v887 = vld [vmem:[#allocation8 + $0xda8] sm:$0xff]
        %v888 = vld [vmem:[#allocation8 + $0xdb0] sm:$0xff]
        %v889 = vld [vmem:[#allocation8 + $0xdb8] sm:$0xff]
        %v890 = vld [vmem:[#allocation8 + $0xdc0] sm:$0xff]
        %v891 = vld [vmem:[#allocation8 + $0xdc8] sm:$0xff]
        %v892 = vld [vmem:[#allocation8 + $0xdd0] sm:$0xff]
        %v893 = vld [vmem:[#allocation8 + $0xdd8] sm:$0xff]
        %v894 = vld [vmem:[#allocation8 + $0xde0] sm:$0xff]
        %v895 = vld [vmem:[#allocation8 + $0xde8] sm:$0xff]
        %v896 = vld [vmem:[#allocation8 + $0xdf0] sm:$0xff]
        %v897 = vld [vmem:[#allocation8 + $0xdf8] sm:$0xff]
        %v898 = vld [vmem:[#allocation8 + $0xe00] sm:$0xff]
        %v899 = vld [vmem:[#allocation8 + $0xe08] sm:$0xff]
        %v900 = vld [vmem:[#allocation8 + $0xe10] sm:$0xff]
        %v901 = vld [vmem:[#allocation8 + $0xe18] sm:$0xff]
        %v902 = vld [vmem:[#allocation8 + $0xe20] sm:$0xff]
        %v903 = vld [vmem:[#allocation8 + $0xe28] sm:$0xff]
        %v904 = vld [vmem:[#allocation8 + $0xe30] sm:$0xff]
        %v905 = vld [vmem:[#allocation8 + $0xe38] sm:$0xff]
        %v906 = vld [vmem:[#allocation8 + $0xe40] sm:$0xff]
        %v907 = vld [vmem:[#allocation8 + $0xe48] sm:$0xff]
        %v908 = vld [vmem:[#allocation8 + $0xe50] sm:$0xff]
        %v909 = vld [vmem:[#allocation8 + $0xe58] sm:$0xff]
        %v910 = vld [vmem:[#allocation8 + $0xe60] sm:$0xff]
        %v911 = vld [vmem:[#allocation8 + $0xe68] sm:$0xff]
        %v912 = vld [vmem:[#allocation8 + $0xe70] sm:$0xff]
        %v913 = vld [vmem:[#allocation8 + $0xe78] sm:$0xff]
        %v914 = vld [vmem:[#allocation8 + $0xe80] sm:$0xff]
        %v915 = vld [vmem:[#allocation8 + $0xe88] sm:$0xff]
        %v916 = vld [vmem:[#allocation8 + $0xe90] sm:$0xff]
        %v917 = vld [vmem:[#allocation8 + $0xe98] sm:$0xff]
        %v918 = vld [vmem:[#allocation8 + $0xea0] sm:$0xff]
        %v919 = vld [vmem:[#allocation8 + $0xea8] sm:$0xff]
        %v920 = vld [vmem:[#allocation8 + $0xeb0] sm:$0xff]
        %v921 = vld [vmem:[#allocation8 + $0xeb8] sm:$0xff]
        %v922 = vld [vmem:[#allocation8 + $0xec0] sm:$0xff]
        %v923 = vld [vmem:[#allocation8 + $0xec8] sm:$0xff]
        %v924 = vld [vmem:[#allocation8 + $0xed0] sm:$0xff]
        %v925 = vld [vmem:[#allocation8 + $0xed8] sm:$0xff]
        %v926 = vld [vmem:[#allocation8 + $0xee0] sm:$0xff]
        %v927 = vld [vmem:[#allocation8 + $0xee8] sm:$0xff]
        %v928 = vld [vmem:[#allocation8 + $0xef0] sm:$0xff]
        %v929 = vld [vmem:[#allocation8 + $0xef8] sm:$0xff]
        %v930 = vld [vmem:[#allocation8 + $0xf00] sm:$0xff]
        %v931 = vld [vmem:[#allocation8 + $0xf08] sm:$0xff]
        %v932 = vld [vmem:[#allocation8 + $0xf10] sm:$0xff]
        %v933 = vld [vmem:[#allocation8 + $0xf18] sm:$0xff]
        %v934 = vld [vmem:[#allocation8 + $0xf20] sm:$0xff]
        %v935 = vld [vmem:[#allocation8 + $0xf28] sm:$0xff]
        %v936 = vld [vmem:[#allocation8 + $0xf30] sm:$0xff]
        %v937 = vld [vmem:[#allocation8 + $0xf38] sm:$0xff]
        %v938 = vld [vmem:[#allocation8 + $0xf40] sm:$0xff]
        %v939 = vld [vmem:[#allocation8 + $0xf48] sm:$0xff]
        %v940 = vld [vmem:[#allocation8 + $0xf50] sm:$0xff]
        %v941 = vld [vmem:[#allocation8 + $0xf58] sm:$0xff]
        %v942 = vld [vmem:[#allocation8 + $0xf60] sm:$0xff]
        %v943 = vld [vmem:[#allocation8 + $0xf68] sm:$0xff]
        %v944 = vld [vmem:[#allocation8 + $0xf70] sm:$0xff]
        %v945 = vld [vmem:[#allocation8 + $0xf78] sm:$0xff]
        %v946 = vld [vmem:[#allocation8 + $0xf80] sm:$0xff]
        %v947 = vld [vmem:[#allocation8 + $0xf88] sm:$0xff]
        %v948 = vld [vmem:[#allocation8 + $0xf90] sm:$0xff]
        %v949 = vld [vmem:[#allocation8 + $0xf98] sm:$0xff]
        %v950 = vld [vmem:[#allocation8 + $0xfa0] sm:$0xff]
        %v951 = vld [vmem:[#allocation8 + $0xfa8] sm:$0xff]
        %v952 = vld [vmem:[#allocation8 + $0xfb0] sm:$0xff]
        %v953 = vld [vmem:[#allocation8 + $0xfb8] sm:$0xff]
        %v954 = vld [vmem:[#allocation8 + $0xfc0] sm:$0xff]
        %v955 = vld [vmem:[#allocation8 + $0xfc8] sm:$0xff]
        %v956 = vld [vmem:[#allocation8 + $0xfd0] sm:$0xff]
        %v957 = vld [vmem:[#allocation8 + $0xfd8] sm:$0xff]
        %v958 = vld [vmem:[#allocation8 + $0xfe0] sm:$0xff]
        %v959 = vld [vmem:[#allocation8 + $0xfe8] sm:$0xff]
        %v960 = vld [vmem:[#allocation8 + $0xff0] sm:$0xff]
        %v961 = vld [vmem:[#allocation8 + $0xff8] sm:$0xff]
        %v962 = vld [vmem:[#allocation8 + $0x1000] sm:$0xff]
        %v963 = vld [vmem:[#allocation8 + $0x1008] sm:$0xff]
        %v964 = vld [vmem:[#allocation8 + $0x1010] sm:$0xff]
        %v965 = vld [vmem:[#allocation8 + $0x1018] sm:$0xff]
        %v966 = vld [vmem:[#allocation8 + $0x1020] sm:$0xff]
        %v967 = vld [vmem:[#allocation8 + $0x1028] sm:$0xff]
        %v968 = vld [vmem:[#allocation8 + $0x1030] sm:$0xff]
        %v969 = vld [vmem:[#allocation8 + $0x1038] sm:$0xff]
        %v970 = vld [vmem:[#allocation8 + $0x1040] sm:$0xff]
        %v971 = vld [vmem:[#allocation8 + $0x1048] sm:$0xff]
        %v972 = vld [vmem:[#allocation8 + $0x1050] sm:$0xff]
        %v973 = vld [vmem:[#allocation8 + $0x1058] sm:$0xff]
        %v974 = vld [vmem:[#allocation8 + $0x1060] sm:$0xff]
        %v975 = vld [vmem:[#allocation8 + $0x1068] sm:$0xff]
        %v976 = vld [vmem:[#allocation8 + $0x1070] sm:$0xff]
        %v977 = vld [vmem:[#allocation8 + $0x1078] sm:$0xff]
        %v978 = vld [vmem:[#allocation8 + $0x1080] sm:$0xff]
        %v979 = vld [vmem:[#allocation8 + $0x1088] sm:$0xff]
        %v980 = vld [vmem:[#allocation8 + $0x1090] sm:$0xff]
        %v981 = vld [vmem:[#allocation8 + $0x1098] sm:$0xff]
        %v982 = vld [vmem:[#allocation8 + $0x10a0] sm:$0xff]
        %v983 = vld [vmem:[#allocation8 + $0x10a8] sm:$0xff]
        %v984 = vld [vmem:[#allocation8 + $0x10b0] sm:$0xff]
        %v985 = vld [vmem:[#allocation8 + $0x10b8] sm:$0xff]
        %v986 = vld [vmem:[#allocation8 + $0x10c0] sm:$0xff]
        %v987 = vld [vmem:[#allocation8 + $0x10c8] sm:$0xff]
        %v988 = vld [vmem:[#allocation8 + $0x10d0] sm:$0xff]
        %v989 = vld [vmem:[#allocation8 + $0x10d8] sm:$0xff]
        %v990 = vld [vmem:[#allocation8 + $0x10e0] sm:$0xff]
        %v991 = vld [vmem:[#allocation8 + $0x10e8] sm:$0xff]
        %v992 = vld [vmem:[#allocation8 + $0x10f0] sm:$0xff]
        %v993 = vld [vmem:[#allocation8 + $0x10f8] sm:$0xff]
        %v994 = vld [vmem:[#allocation8 + $0x1100] sm:$0xff]
        %v995 = vld [vmem:[#allocation8 + $0x1108] sm:$0xff]
        %v996 = vld [vmem:[#allocation8 + $0x1110] sm:$0xff]
        %v997 = vld [vmem:[#allocation8 + $0x1118] sm:$0xff]
        %v998 = vld [vmem:[#allocation8 + $0x1120] sm:$0xff]
        %v999 = vld [vmem:[#allocation8 + $0x1128] sm:$0xff]
        %v1000 = vld [vmem:[#allocation8 + $0x1130] sm:$0xff]
        %v1001 = vld [vmem:[#allocation8 + $0x1138] sm:$0xff]
        %v1002 = vld [vmem:[#allocation8 + $0x1140] sm:$0xff]
        %v1003 = vld [vmem:[#allocation8 + $0x1148] sm:$0xff]
        %v1004 = vld [vmem:[#allocation8 + $0x1150] sm:$0xff]
        %v1005 = vld [vmem:[#allocation8 + $0x1158] sm:$0xff]
        %v1006 = vld [vmem:[#allocation8 + $0x1160] sm:$0xff]
        %v1007 = vld [vmem:[#allocation8 + $0x1168] sm:$0xff]
        %v1008 = vld [vmem:[#allocation8 + $0x1170] sm:$0xff]
        %v1009 = vld [vmem:[#allocation8 + $0x1178] sm:$0xff]
        %v1010 = vld [vmem:[#allocation8 + $0x1180] sm:$0xff]
        %v1011 = vld [vmem:[#allocation8 + $0x1188] sm:$0xff]
        %v1012 = vld [vmem:[#allocation8 + $0x1190] sm:$0xff]
        %v1013 = vld [vmem:[#allocation8 + $0x1198] sm:$0xff]
        %v1014 = vld [vmem:[#allocation8 + $0x11a0] sm:$0xff]
        %v1015 = vld [vmem:[#allocation8 + $0x11a8] sm:$0xff]
        %v1016 = vld [vmem:[#allocation8 + $0x11b0] sm:$0xff]
        %v1017 = vld [vmem:[#allocation8 + $0x11b8] sm:$0xff]
        %v1018 = vld [vmem:[#allocation8 + $0x11c0] sm:$0xff]
        %v1019 = vld [vmem:[#allocation8 + $0x11c8] sm:$0xff]
        %v1020 = vld [vmem:[#allocation8 + $0x11d0] sm:$0xff]
        %v1021 = vld [vmem:[#allocation8 + $0x11d8] sm:$0xff]
        %v1022 = vld [vmem:[#allocation8 + $0x11e0] sm:$0xff]
        %v1023 = vld [vmem:[#allocation8 + $0x11e8] sm:$0xff]
        %v1024 = vld [vmem:[#allocation8 + $0x11f0] sm:$0xff]
        %v1025 = vld [vmem:[#allocation8 + $0x11f8] sm:$0xff]
        %v1026 = vld [vmem:[#allocation8 + $0x1200] sm:$0xff]
        %v1027 = vld [vmem:[#allocation8 + $0x1208] sm:$0xff]
        %v1028 = vld [vmem:[#allocation8 + $0x1210] sm:$0xff]
        %v1029 = vld [vmem:[#allocation8 + $0x1218] sm:$0xff]
        %v1030 = vld [vmem:[#allocation8 + $0x1220] sm:$0xff]
        %v1031 = vld [vmem:[#allocation8 + $0x1228] sm:$0xff]
        %v1032 = vld [vmem:[#allocation8 + $0x1230] sm:$0xff]
        %v1033 = vld [vmem:[#allocation8 + $0x1238] sm:$0xff]
        %v1034 = vld [vmem:[#allocation8 + $0x1240] sm:$0xff]
        %v1035 = vld [vmem:[#allocation8 + $0x1248] sm:$0xff]
        %v1036 = vld [vmem:[#allocation8 + $0x1250] sm:$0xff]
        %v1037 = vld [vmem:[#allocation8 + $0x1258] sm:$0xff]
        %v1038 = vld [vmem:[#allocation8 + $0x1260] sm:$0xff]
        %v1039 = vld [vmem:[#allocation8 + $0x1268] sm:$0xff]
        %v1040 = vld [vmem:[#allocation8 + $0x1270] sm:$0xff]
        %v1041 = vld [vmem:[#allocation8 + $0x1278] sm:$0xff]
        %v1042 = vld [vmem:[#allocation8 + $0x1280] sm:$0xff]
        %v1043 = vld [vmem:[#allocation8 + $0x1288] sm:$0xff]
        %v1044 = vld [vmem:[#allocation8 + $0x1290] sm:$0xff]
        %v1045 = vld [vmem:[#allocation8 + $0x1298] sm:$0xff]
        %v1046 = vld [vmem:[#allocation8 + $0x12a0] sm:$0xff]
        %v1047 = vld [vmem:[#allocation8 + $0x12a8] sm:$0xff]
        %v1048 = vld [vmem:[#allocation8 + $0x12b0] sm:$0xff]
        %v1049 = vld [vmem:[#allocation8 + $0x12b8] sm:$0xff]
        %v1050 = vld [vmem:[#allocation8 + $0x12c0] sm:$0xff]
        %v1051 = vld [vmem:[#allocation8 + $0x12c8] sm:$0xff]
        %v1052 = vld [vmem:[#allocation8 + $0x12d0] sm:$0xff]
        %v1053 = vld [vmem:[#allocation8 + $0x12d8] sm:$0xff]
        %v1054 = vld [vmem:[#allocation8 + $0x12e0] sm:$0xff]
        %v1055 = vld [vmem:[#allocation8 + $0x12e8] sm:$0xff]
        %v1056 = vld [vmem:[#allocation8 + $0x12f0] sm:$0xff]
        %v1057 = vld [vmem:[#allocation8 + $0x12f8] sm:$0xff]
        %v1058 = vld [vmem:[#allocation8 + $0x1300] sm:$0xff]
        %v1059 = vld [vmem:[#allocation8 + $0x1308] sm:$0xff]
        %v1060 = vld [vmem:[#allocation8 + $0x1310] sm:$0xff]
        %v1061 = vld [vmem:[#allocation8 + $0x1318] sm:$0xff]
        %v1062 = vld [vmem:[#allocation8 + $0x1320] sm:$0xff]
        %v1063 = vld [vmem:[#allocation8 + $0x1328] sm:$0xff]
        %v1064 = vld [vmem:[#allocation8 + $0x1330] sm:$0xff]
        %v1065 = vld [vmem:[#allocation8 + $0x1338] sm:$0xff]
        %v1066 = vld [vmem:[#allocation8 + $0x1340] sm:$0xff]
        %v1067 = vld [vmem:[#allocation8 + $0x1348] sm:$0xff]
        %v1068 = vld [vmem:[#allocation8 + $0x1350] sm:$0xff]
        %v1069 = vld [vmem:[#allocation8 + $0x1358] sm:$0xff]
        %v1070 = vld [vmem:[#allocation8 + $0x1360] sm:$0xff]
        %v1071 = vld [vmem:[#allocation8 + $0x1368] sm:$0xff]
        %v1072 = vld [vmem:[#allocation8 + $0x1370] sm:$0xff]
        %v1073 = vld [vmem:[#allocation8 + $0x1378] sm:$0xff]
        %v1074 = vld [vmem:[#allocation8 + $0x1380] sm:$0xff]
        %v1075 = vld [vmem:[#allocation8 + $0x1388] sm:$0xff]
        %v1076 = vld [vmem:[#allocation8 + $0x1390] sm:$0xff]
        %v1077 = vld [vmem:[#allocation8 + $0x1398] sm:$0xff]
        %v1078 = vld [vmem:[#allocation8 + $0x13a0] sm:$0xff]
        %v1079 = vld [vmem:[#allocation8 + $0x13a8] sm:$0xff]
        %v1080 = vld [vmem:[#allocation8 + $0x13b0] sm:$0xff]
        %v1081 = vld [vmem:[#allocation8 + $0x13b8] sm:$0xff]
        %v1082 = vld [vmem:[#allocation8 + $0x13c0] sm:$0xff]
        %v1083 = vld [vmem:[#allocation8 + $0x13c8] sm:$0xff]
        %v1084 = vld [vmem:[#allocation8 + $0x13d0] sm:$0xff]
        %v1085 = vld [vmem:[#allocation8 + $0x13d8] sm:$0xff]
        %v1086 = vld [vmem:[#allocation8 + $0x13e0] sm:$0xff]
        %v1087 = vld [vmem:[#allocation8 + $0x13e8] sm:$0xff]
        %v1088 = vld [vmem:[#allocation8 + $0x13f0] sm:$0xff]
        %v1089 = vld [vmem:[#allocation8 + $0x13f8] sm:$0xff]
        %v1090 = vld [vmem:[#allocation8 + $0x1400] sm:$0xff]
        %v1091 = vld [vmem:[#allocation8 + $0x1408] sm:$0xff]
        %v1092 = vld [vmem:[#allocation8 + $0x1410] sm:$0xff]
        %v1093 = vld [vmem:[#allocation8 + $0x1418] sm:$0xff]
        %v1094 = vld [vmem:[#allocation8 + $0x1420] sm:$0xff]
        %v1095 = vld [vmem:[#allocation8 + $0x1428] sm:$0xff]
        %v1096 = vld [vmem:[#allocation8 + $0x1430] sm:$0xff]
        %v1097 = vld [vmem:[#allocation8 + $0x1438] sm:$0xff]
        %v1098 = vld [vmem:[#allocation8 + $0x1440] sm:$0xff]
        %v1099 = vld [vmem:[#allocation8 + $0x1448] sm:$0xff]
        %v1100 = vld [vmem:[#allocation8 + $0x1450] sm:$0xff]
        %v1101 = vld [vmem:[#allocation8 + $0x1458] sm:$0xff]
        %v1102 = vld [vmem:[#allocation8 + $0x1460] sm:$0xff]
        %v1103 = vld [vmem:[#allocation8 + $0x1468] sm:$0xff]
        %v1104 = vld [vmem:[#allocation8 + $0x1470] sm:$0xff]
        %v1105 = vld [vmem:[#allocation8 + $0x1478] sm:$0xff]
        %v1106 = vld [vmem:[#allocation8 + $0x1480] sm:$0xff]
        %v1107 = vld [vmem:[#allocation8 + $0x1488] sm:$0xff]
        %v1108 = vld [vmem:[#allocation8 + $0x1490] sm:$0xff]
        %v1109 = vld [vmem:[#allocation8 + $0x1498] sm:$0xff]
        %v1110 = vld [vmem:[#allocation8 + $0x14a0] sm:$0xff]
        %v1111 = vld [vmem:[#allocation8 + $0x14a8] sm:$0xff]
        %v1112 = vld [vmem:[#allocation8 + $0x14b0] sm:$0xff]
        %v1113 = vld [vmem:[#allocation8 + $0x14b8] sm:$0xff]
        %v1114 = vld [vmem:[#allocation8 + $0x14c0] sm:$0xff]
        %v1115 = vld [vmem:[#allocation8 + $0x14c8] sm:$0xff]
        %v1116 = vld [vmem:[#allocation8 + $0x14d0] sm:$0xff]
        %v1117 = vld [vmem:[#allocation8 + $0x14d8] sm:$0xff]
        %v1118 = vld [vmem:[#allocation8 + $0x14e0] sm:$0xff]
        %v1119 = vld [vmem:[#allocation8 + $0x14e8] sm:$0xff]
        %v1120 = vld [vmem:[#allocation8 + $0x14f0] sm:$0xff]
        %v1121 = vld [vmem:[#allocation8 + $0x14f8] sm:$0xff]
        %v1122 = vld [vmem:[#allocation8 + $0x1500] sm:$0xff]
        %v1123 = vld [vmem:[#allocation8 + $0x1508] sm:$0xff]
        %v1124 = vld [vmem:[#allocation8 + $0x1510] sm:$0xff]
        %v1125 = vld [vmem:[#allocation8 + $0x1518] sm:$0xff]
        %v1126 = vld [vmem:[#allocation8 + $0x1520] sm:$0xff]
        %v1127 = vld [vmem:[#allocation8 + $0x1528] sm:$0xff]
        %v1128 = vld [vmem:[#allocation8 + $0x1530] sm:$0xff]
        %v1129 = vld [vmem:[#allocation8 + $0x1538] sm:$0xff]
        %v1130 = vld [vmem:[#allocation8 + $0x1540] sm:$0xff]
        %v1131 = vld [vmem:[#allocation8 + $0x1548] sm:$0xff]
        %v1132 = vld [vmem:[#allocation8 + $0x1550] sm:$0xff]
        %v1133 = vld [vmem:[#allocation8 + $0x1558] sm:$0xff]
        %v1134 = vld [vmem:[#allocation8 + $0x1560] sm:$0xff]
        %v1135 = vld [vmem:[#allocation8 + $0x1568] sm:$0xff]
        %v1136 = vld [vmem:[#allocation8 + $0x1570] sm:$0xff]
        %v1137 = vld [vmem:[#allocation8 + $0x1578] sm:$0xff]
        %v1138 = vld [vmem:[#allocation8 + $0x1580] sm:$0xff]
        %v1139 = vld [vmem:[#allocation8 + $0x1588] sm:$0xff]
        %v1140 = vld [vmem:[#allocation8 + $0x1590] sm:$0xff]
        %v1141 = vld [vmem:[#allocation8 + $0x1598] sm:$0xff]
        %v1142 = vld [vmem:[#allocation8 + $0x15a0] sm:$0xff]
        %v1143 = vld [vmem:[#allocation8 + $0x15a8] sm:$0xff]
        %v1144 = vld [vmem:[#allocation8 + $0x15b0] sm:$0xff]
        %v1145 = vld [vmem:[#allocation8 + $0x15b8] sm:$0xff]
        %v1146 = vld [vmem:[#allocation8 + $0x15c0] sm:$0xff]
        %v1147 = vld [vmem:[#allocation8 + $0x15c8] sm:$0xff]
        %v1148 = vld [vmem:[#allocation8 + $0x15d0] sm:$0xff]
        %v1149 = vld [vmem:[#allocation8 + $0x15d8] sm:$0xff]
        %v1150 = vld [vmem:[#allocation8 + $0x15e0] sm:$0xff]
        %v1151 = vld [vmem:[#allocation8 + $0x15e8] sm:$0xff]
        %v1152 = vld [vmem:[#allocation8 + $0x15f0] sm:$0xff]
        %v1153 = vld [vmem:[#allocation8 + $0x15f8] sm:$0xff]
        %v1154 = vld [vmem:[#allocation8 + $0x1600] sm:$0xff]
        %v1155 = vld [vmem:[#allocation8 + $0x1608] sm:$0xff]
        %v1156 = vld [vmem:[#allocation8 + $0x1610] sm:$0xff]
        %v1157 = vld [vmem:[#allocation8 + $0x1618] sm:$0xff]
        %v1158 = vld [vmem:[#allocation8 + $0x1620] sm:$0xff]
        %v1159 = vld [vmem:[#allocation8 + $0x1628] sm:$0xff]
        %v1160 = vld [vmem:[#allocation8 + $0x1630] sm:$0xff]
        %v1161 = vld [vmem:[#allocation8 + $0x1638] sm:$0xff]
        %v1162 = vld [vmem:[#allocation8 + $0x1640] sm:$0xff]
        %v1163 = vld [vmem:[#allocation8 + $0x1648] sm:$0xff]
        %v1164 = vld [vmem:[#allocation8 + $0x1650] sm:$0xff]
        %v1165 = vld [vmem:[#allocation8 + $0x1658] sm:$0xff]
        %v1166 = vld [vmem:[#allocation8 + $0x1660] sm:$0xff]
        %v1167 = vld [vmem:[#allocation8 + $0x1668] sm:$0xff]
        %v1168 = vld [vmem:[#allocation8 + $0x1670] sm:$0xff]
        %v1169 = vld [vmem:[#allocation8 + $0x1678] sm:$0xff]
        %v1170 = vld [vmem:[#allocation8 + $0x1680] sm:$0xff]
        %v1171 = vld [vmem:[#allocation8 + $0x1688] sm:$0xff]
        %v1172 = vld [vmem:[#allocation8 + $0x1690] sm:$0xff]
        %v1173 = vld [vmem:[#allocation8 + $0x1698] sm:$0xff]
        %v1174 = vld [vmem:[#allocation8 + $0x16a0] sm:$0xff]
        %v1175 = vld [vmem:[#allocation8 + $0x16a8] sm:$0xff]
        %v1176 = vld [vmem:[#allocation8 + $0x16b0] sm:$0xff]
        %v1177 = vld [vmem:[#allocation8 + $0x16b8] sm:$0xff]
        %v1178 = vld [vmem:[#allocation8 + $0x16c0] sm:$0xff]
        %v1179 = vld [vmem:[#allocation8 + $0x16c8] sm:$0xff]
        %v1180 = vld [vmem:[#allocation8 + $0x16d0] sm:$0xff]
        %v1181 = vld [vmem:[#allocation8 + $0x16d8] sm:$0xff]
        %v1182 = vld [vmem:[#allocation8 + $0x16e0] sm:$0xff]
        %v1183 = vld [vmem:[#allocation8 + $0x16e8] sm:$0xff]
        %v1184 = vld [vmem:[#allocation8 + $0x16f0] sm:$0xff]
        %v1185 = vld [vmem:[#allocation8 + $0x16f8] sm:$0xff]
        %v1186 = vld [vmem:[#allocation8 + $0x1700] sm:$0xff]
        %v1187 = vld [vmem:[#allocation8 + $0x1708] sm:$0xff]
        %v1188 = vld [vmem:[#allocation8 + $0x1710] sm:$0xff]
        %v1189 = vld [vmem:[#allocation8 + $0x1718] sm:$0xff]
        %v1190 = vld [vmem:[#allocation8 + $0x1720] sm:$0xff]
        %v1191 = vld [vmem:[#allocation8 + $0x1728] sm:$0xff]
        %v1192 = vld [vmem:[#allocation8 + $0x1730] sm:$0xff]
        %v1193 = vld [vmem:[#allocation8 + $0x1738] sm:$0xff]
        %v1194 = vld [vmem:[#allocation8 + $0x1740] sm:$0xff]
        %v1195 = vld [vmem:[#allocation8 + $0x1748] sm:$0xff]
        %v1196 = vld [vmem:[#allocation8 + $0x1750] sm:$0xff]
        %v1197 = vld [vmem:[#allocation8 + $0x1758] sm:$0xff]
        %v1198 = vld [vmem:[#allocation8 + $0x1760] sm:$0xff]
        %v1199 = vld [vmem:[#allocation8 + $0x1768] sm:$0xff]
        %v1200 = vld [vmem:[#allocation8 + $0x1770] sm:$0xff]
        %v1201 = vld [vmem:[#allocation8 + $0x1778] sm:$0xff]
        %v1202 = vld [vmem:[#allocation8 + $0x1780] sm:$0xff]
        %v1203 = vld [vmem:[#allocation8 + $0x1788] sm:$0xff]
        %v1204 = vld [vmem:[#allocation8 + $0x1790] sm:$0xff]
        %v1205 = vld [vmem:[#allocation8 + $0x1798] sm:$0xff]
        %v1206 = vld [vmem:[#allocation8 + $0x17a0] sm:$0xff]
        %v1207 = vld [vmem:[#allocation8 + $0x17a8] sm:$0xff]
        %v1208 = vld [vmem:[#allocation8 + $0x17b0] sm:$0xff]
        %v1209 = vld [vmem:[#allocation8 + $0x17b8] sm:$0xff]
        %v1210 = vld [vmem:[#allocation8 + $0x17c0] sm:$0xff]
        %v1211 = vld [vmem:[#allocation8 + $0x17c8] sm:$0xff]
        %v1212 = vld [vmem:[#allocation8 + $0x17d0] sm:$0xff]
        %v1213 = vld [vmem:[#allocation8 + $0x17d8] sm:$0xff]
        %v1214 = vld [vmem:[#allocation8 + $0x17e0] sm:$0xff]
        %v1215 = vld [vmem:[#allocation8 + $0x17e8] sm:$0xff]
        %v1216 = vld [vmem:[#allocation8 + $0x17f0] sm:$0xff]
        %v1217 = vld [vmem:[#allocation8 + $0x17f8] sm:$0xff]
        %v1218 = vld [vmem:[#allocation8 + $0x1800] sm:$0xff]
        %v1219 = vld [vmem:[#allocation8 + $0x1808] sm:$0xff]
        %v1220 = vld [vmem:[#allocation8 + $0x1810] sm:$0xff]
        %v1221 = vld [vmem:[#allocation8 + $0x1818] sm:$0xff]
        %v1222 = vld [vmem:[#allocation8 + $0x1820] sm:$0xff]
        %v1223 = vld [vmem:[#allocation8 + $0x1828] sm:$0xff]
        %v1224 = vld [vmem:[#allocation8 + $0x1830] sm:$0xff]
        %v1225 = vld [vmem:[#allocation8 + $0x1838] sm:$0xff]
        %v1226 = vld [vmem:[#allocation8 + $0x1840] sm:$0xff]
        %v1227 = vld [vmem:[#allocation8 + $0x1848] sm:$0xff]
        %v1228 = vld [vmem:[#allocation8 + $0x1850] sm:$0xff]
        %v1229 = vld [vmem:[#allocation8 + $0x1858] sm:$0xff]
        %v1230 = vld [vmem:[#allocation8 + $0x1860] sm:$0xff]
        %v1231 = vld [vmem:[#allocation8 + $0x1868] sm:$0xff]
        %v1232 = vld [vmem:[#allocation8 + $0x1870] sm:$0xff]
        %v1233 = vld [vmem:[#allocation8 + $0x1878] sm:$0xff]
        %v1234 = vld [vmem:[#allocation8 + $0x1880] sm:$0xff]
        %v1235 = vld [vmem:[#allocation8 + $0x1888] sm:$0xff]
        %v1236 = vld [vmem:[#allocation8 + $0x1890] sm:$0xff]
        %v1237 = vld [vmem:[#allocation8 + $0x1898] sm:$0xff]
        %v1238 = vld [vmem:[#allocation8 + $0x18a0] sm:$0xff]
        %v1239 = vld [vmem:[#allocation8 + $0x18a8] sm:$0xff]
        %v1240 = vld [vmem:[#allocation8 + $0x18b0] sm:$0xff]
        %v1241 = vld [vmem:[#allocation8 + $0x18b8] sm:$0xff]
        %v1242 = vld [vmem:[#allocation8 + $0x18c0] sm:$0xff]
        %v1243 = vld [vmem:[#allocation8 + $0x18c8] sm:$0xff]
        %v1244 = vld [vmem:[#allocation8 + $0x18d0] sm:$0xff]
        %v1245 = vld [vmem:[#allocation8 + $0x18d8] sm:$0xff]
        %v1246 = vld [vmem:[#allocation8 + $0x18e0] sm:$0xff]
        %v1247 = vld [vmem:[#allocation8 + $0x18e8] sm:$0xff]
        %v1248 = vld [vmem:[#allocation8 + $0x18f0] sm:$0xff]
        %v1249 = vld [vmem:[#allocation8 + $0x18f8] sm:$0xff]
        %v1250 = vld [vmem:[#allocation8 + $0x1900] sm:$0xff]
        %v1251 = vld [vmem:[#allocation8 + $0x1908] sm:$0xff]
        %v1252 = vld [vmem:[#allocation8 + $0x1910] sm:$0xff]
        %v1253 = vld [vmem:[#allocation8 + $0x1918] sm:$0xff]
        %v1254 = vld [vmem:[#allocation8 + $0x1920] sm:$0xff]
        %v1255 = vld [vmem:[#allocation8 + $0x1928] sm:$0xff]
        %v1256 = vld [vmem:[#allocation8 + $0x1930] sm:$0xff]
        %v1257 = vld [vmem:[#allocation8 + $0x1938] sm:$0xff]
        %v1258 = vld [vmem:[#allocation8 + $0x1940] sm:$0xff]
        %v1259 = vld [vmem:[#allocation8 + $0x1948] sm:$0xff]
        %v1260 = vld [vmem:[#allocation8 + $0x1950] sm:$0xff]
        %v1261 = vld [vmem:[#allocation8 + $0x1958] sm:$0xff]
        %v1262 = vld [vmem:[#allocation8 + $0x1960] sm:$0xff]
        %v1263 = vld [vmem:[#allocation8 + $0x1968] sm:$0xff]
        %v1264 = vld [vmem:[#allocation8 + $0x1970] sm:$0xff]
        %v1265 = vld [vmem:[#allocation8 + $0x1978] sm:$0xff]
        %v1266 = vld [vmem:[#allocation8 + $0x1980] sm:$0xff]
        %v1267 = vld [vmem:[#allocation8 + $0x1988] sm:$0xff]
        %v1268 = vld [vmem:[#allocation8 + $0x1990] sm:$0xff]
        %v1269 = vld [vmem:[#allocation8 + $0x1998] sm:$0xff]
        %v1270 = vld [vmem:[#allocation8 + $0x19a0] sm:$0xff]
        %v1271 = vld [vmem:[#allocation8 + $0x19a8] sm:$0xff]
        %v1272 = vld [vmem:[#allocation8 + $0x19b0] sm:$0xff]
        %v1273 = vld [vmem:[#allocation8 + $0x19b8] sm:$0xff]
        %v1274 = vld [vmem:[#allocation8 + $0x19c0] sm:$0xff]
        %v1275 = vld [vmem:[#allocation8 + $0x19c8] sm:$0xff]
        %v1276 = vld [vmem:[#allocation8 + $0x19d0] sm:$0xff]
        %v1277 = vld [vmem:[#allocation8 + $0x19d8] sm:$0xff]
        %v1278 = vld [vmem:[#allocation8 + $0x19e0] sm:$0xff]
        %v1279 = vld [vmem:[#allocation8 + $0x19e8] sm:$0xff]
        %v1280 = vld [vmem:[#allocation8 + $0x19f0] sm:$0xff]
        %v1281 = vld [vmem:[#allocation8 + $0x19f8] sm:$0xff]
        %v1282 = vld [vmem:[#allocation8 + $0x1a00] sm:$0xff]
        %v1283 = vld [vmem:[#allocation8 + $0x1a08] sm:$0xff]
        %v1284 = vld [vmem:[#allocation8 + $0x1a10] sm:$0xff]
        %v1285 = vld [vmem:[#allocation8 + $0x1a18] sm:$0xff]
        %v1286 = vld [vmem:[#allocation8 + $0x1a20] sm:$0xff]
        %v1287 = vld [vmem:[#allocation8 + $0x1a28] sm:$0xff]
        %v1288 = vld [vmem:[#allocation8 + $0x1a30] sm:$0xff]
        %v1289 = vld [vmem:[#allocation8 + $0x1a38] sm:$0xff]
        %v1290 = vld [vmem:[#allocation10] sm:$0xff]
        %v1291 = vld [vmem:[#allocation10 + $0x8] sm:$0xf]
        %v1294 = vlaneseq
        %v1295 = vshrl.u32 %v1294, 7
        %v1296 = vsub.s32 0, %v1295
        %v1297 = vrot.slane %v1290, %v1296
        %v1298 = vlaneseq
        %v1299 = vshrl.u32 %v1298, 7
        %v1300 = vsub.s32 1, %v1299
        %v1301 = vrot.slane %v1290, %v1300
        %v1302 = vlaneseq
        %v1303 = vshrl.u32 %v1302, 7
        %v1304 = vsub.s32 2, %v1303
        %v1305 = vrot.slane %v1290, %v1304
        %v1306 = vlaneseq
        %v1307 = vshrl.u32 %v1306, 7
        %v1308 = vsub.s32 3, %v1307
        %v1309 = vrot.slane %v1290, %v1308
        %v1310 = vlaneseq
        %v1311 = vshrl.u32 %v1310, 7
        %v1312 = vsub.s32 4, %v1311
        %v1313 = vrot.slane %v1290, %v1312
        %v1314 = vlaneseq
        %v1315 = vshrl.u32 %v1314, 7
        %v1316 = vsub.s32 5, %v1315
        %v1317 = vrot.slane %v1290, %v1316
        %v1318 = vlaneseq
        %v1319 = vshrl.u32 %v1318, 7
        %v1320 = vsub.s32 6, %v1319
        %v1321 = vrot.slane %v1290, %v1320
        %v1322 = vlaneseq
        %v1323 = vshrl.u32 %v1322, 7
        %v1324 = vsub.s32 7, %v1323
        %v1325 = vrot.slane %v1290, %v1324
        %v1326 = vlaneseq
        %v1327 = vshrl.u32 %v1326, 7
        %v1328 = vsub.s32 0, %v1327
        %v1329 = vrot.slane %v1291, %v1328
        %v1330 = vlaneseq
        %v1331 = vshrl.u32 %v1330, 7
        %v1332 = vsub.s32 1, %v1331
        %v1333 = vrot.slane %v1291, %v1332
        %v1334 = vlaneseq
        %v1335 = vshrl.u32 %v1334, 7
        %v1336 = vsub.s32 2, %v1335
        %v1337 = vrot.slane %v1291, %v1336
        %v1338 = vlaneseq
        %v1339 = vshrl.u32 %v1338, 7
        %v1340 = vsub.s32 3, %v1339
        %v1341 = vrot.slane %v1291, %v1340
        %v1355 = vsel %vm311, %v444, 0
        %v1358 = vsel %vm311, %v449, 0
        %1360 = vmatprep.subr.mxu0 %v451
        %1361 = vmatpush1.msra.mxu0 %v450
        %1362 = vmatprep.subr.mxu0 %v463
        %1363 = vmatpush1.msra.mxu0 %v462
        %1364 = vmatprep.subr.mxu0 %v475
        %1365 = vmatpush1.msra.mxu0 %v474
        %1366 = vmatprep.subr.mxu0 %v487
        %1367 = vmatpush1.msra.mxu0 %v486
        %1368 = vmatprep.subr.mxu0 %v499
        %1369 = vmatpush1.msra.mxu0 %v498
        %1370 = vmatprep.subr.mxu0 %v511
        %1371 = vmatpush1.msra.mxu0 %v510
        %1372 = vmatprep.subr.mxu0 %v523
        %1373 = vmatpush1.msra.mxu0 %v522
        %1374 = vmatprep.subr.mxu0 %v535
        %1375 = vmatpush1.msra.mxu0 %v534
        %1376 = vmatprep.subr.mxu0 %v547
        %1377 = vmatpush1.msra.mxu0 %v546
        %1378 = vmatprep.subr.mxu0 %v559
        %1379 = vmatpush1.msra.mxu0 %v558
        %1380 = vmatprep.subr.mxu0 %v571
        %1381 = vmatpush1.msra.mxu0 %v570
        %1382 = vmatprep.subr.mxu0 %v583
        %1383 = vmatpush1.msra.mxu0 %v582
        %1384 = vmatprep.subr.mxu0 %v595
        %1385 = vmatpush1.msra.mxu0 %v594
        %1386 = vmatprep.subr.mxu0 %v607
        %1387 = vmatpush1.msra.mxu0 %v606
        %1388 = vmatprep.subr.mxu0 %v619
        %1389 = vmatpush1.msra.mxu0 %v618
        %1390 = vmatprep.subr.mxu0 %v631
        %1391 = vmatpush1.msra.mxu0 %v630
        %1392 = vmatprep.subr.mxu0 %v643
        %1393 = vmatpush1.msra.mxu0 %v642
        %1394 = vmatprep.subr.mxu0 %v655
        %1395 = vmatpush1.msra.mxu0 %v654
        %1396 = vmatprep.subr.mxu0 %v667
        %1397 = vmatpush1.msra.mxu0 %v666
        %1398 = vmatprep.subr.mxu0 %v679
        %1399 = vmatpush1.msra.mxu0 %v678
        %1400 = vmatprep.subr.mxu0 %v691
        %1401 = vmatpush1.msra.mxu0 %v690
        %1402 = vmatprep.subr.mxu0 %v703
        %1403 = vmatpush1.msra.mxu0 %v702
        %1404 = vmatprep.subr.mxu0 %v715
        %1405 = vmatpush1.msra.mxu0 %v714
        %1406 = vmatprep.subr.mxu0 %v727
        %1407 = vmatpush1.msra.mxu0 %v726
        %1408 = vmatprep.subr.mxu0 %v739
        %1409 = vmatpush1.msra.mxu0 %v738
        %1410 = vmatprep.subr.mxu0 %v751
        %1411 = vmatpush1.msra.mxu0 %v750
        %1412 = vmatprep.subr.mxu0 %v763
        %1413 = vmatpush1.msra.mxu0 %v762
        %1414 = vmatprep.subr.mxu0 %v775
        %1415 = vmatpush1.msra.mxu0 %v774
        %1416 = vmatprep.subr.mxu0 %v787
        %1417 = vmatpush1.msra.mxu0 %v786
        %1418 = vmatprep.subr.mxu0 %v799
        %1419 = vmatpush1.msra.mxu0 %v798
        %1420 = vmatprep.subr.mxu0 %v811
        %1421 = vmatpush1.msra.mxu0 %v810
        %1422 = vmatprep.subr.mxu0 %v823
        %1423 = vmatpush1.msra.mxu0 %v822
        %1424 = vmatprep.mubr.f32.mxu0 %v441
        %1425 = vmatmul.mubr.f32.gmra.mrb[0].mxu0 %v440
        %v1426 = vpop.f32.mrb[0].mxu0
        %v1427 = vadd.f32 %v1297, %v1426
        %v1428 = vpop.f32.mrb[0].mxu0
        %v1429 = vadd.f32 %v1301, %v1428
        %1430 = vmatprep.mubr.f32.mxu0 %v446
        %1431 = vmatmul.mubr.f32.gmra.mrb[0].mxu0 %v445
        %v1432 = vpop.f32.mrb[0].mxu0
        %v1433 = vadd.f32 %v1297, %v1432
        %v1434 = vpop.f32.mrb[0].mxu0
        %v1435 = vadd.f32 %v1301, %v1434
        %1436 = vdwg.mxu0
        %1437 = vmatprep.subr.mxu0 %v835
        %1438 = vmatpush1.msra.mxu0 %v834
        %1439 = vmatprep.subr.mxu0 %v847
        %1440 = vmatpush1.msra.mxu0 %v846
        %1441 = vmatprep.subr.mxu0 %v859
        %1442 = vmatpush1.msra.mxu0 %v858
        %1443 = vmatprep.subr.mxu0 %v871
        %1444 = vmatpush1.msra.mxu0 %v870
        %1445 = vmatprep.subr.mxu0 %v883
        %1446 = vmatpush1.msra.mxu0 %v882
        %1447 = vmatprep.subr.mxu0 %v895
        %1448 = vmatpush1.msra.mxu0 %v894
        %1449 = vmatprep.subr.mxu0 %v907
        %1450 = vmatpush1.msra.mxu0 %v906
        %1451 = vmatprep.subr.mxu0 %v919
        %1452 = vmatpush1.msra.mxu0 %v918
        %1453 = vmatprep.subr.mxu0 %v931
        %1454 = vmatpush1.msra.mxu0 %v930
        %1455 = vmatprep.subr.mxu0 %v943
        %1456 = vmatpush1.msra.mxu0 %v942
        %1457 = vmatprep.subr.mxu0 %v955
        %1458 = vmatpush1.msra.mxu0 %v954
        %1459 = vmatprep.subr.mxu0 %v967
        %1460 = vmatpush1.msra.mxu0 %v966
        %1461 = vmatprep.subr.mxu0 %v979
        %1462 = vmatpush1.msra.mxu0 %v978
        %1463 = vmatprep.subr.mxu0 %v991
        %1464 = vmatpush1.msra.mxu0 %v990
        %1465 = vmatprep.subr.mxu0 %v1003
        %1466 = vmatpush1.msra.mxu0 %v1002
        %1467 = vmatprep.subr.mxu0 %v1015
        %1468 = vmatpush1.msra.mxu0 %v1014
        %1469 = vmatprep.subr.mxu0 %v1027
        %1470 = vmatpush1.msra.mxu0 %v1026
        %1471 = vmatprep.subr.mxu0 %v1039
        %1472 = vmatpush1.msra.mxu0 %v1038
        %1473 = vmatprep.subr.mxu0 %v1051
        %1474 = vmatpush1.msra.mxu0 %v1050
        %1475 = vmatprep.subr.mxu0 %v1063
        %1476 = vmatpush1.msra.mxu0 %v1062
        %1477 = vmatprep.subr.mxu0 %v1075
        %1478 = vmatpush1.msra.mxu0 %v1074
        %1479 = vmatprep.subr.mxu0 %v1087
        %1480 = vmatpush1.msra.mxu0 %v1086
        %1481 = vmatprep.subr.mxu0 %v1099
        %1482 = vmatpush1.msra.mxu0 %v1098
        %1483 = vmatprep.subr.mxu0 %v1111
        %1484 = vmatpush1.msra.mxu0 %v1110
        %1485 = vmatprep.subr.mxu0 %v1123
        %1486 = vmatpush1.msra.mxu0 %v1122
        %1487 = vmatprep.subr.mxu0 %v1135
        %1488 = vmatpush1.msra.mxu0 %v1134
        %1489 = vmatprep.subr.mxu0 %v1147
        %1490 = vmatpush1.msra.mxu0 %v1146
        %1491 = vmatprep.subr.mxu0 %v1159
        %1492 = vmatpush1.msra.mxu0 %v1158
        %1493 = vmatprep.subr.mxu0 %v1171
        %1494 = vmatpush1.msra.mxu0 %v1170
        %1495 = vmatprep.subr.mxu0 %v1183
        %1496 = vmatpush1.msra.mxu0 %v1182
        %1497 = vmatprep.subr.mxu0 %v1195
        %1498 = vmatpush1.msra.mxu0 %v1194
        %1499 = vmatprep.subr.mxu0 %v1207
        %1500 = vmatpush1.msra.mxu0 %v1206
        %1501 = vmatprep.mubr.f32.mxu0 %v443
        %1502 = vmatmul.mubr.f32.gmra.mrb[0].mxu0 %v442
        %v1503 = vpop.f32.mrb[0].mxu0
        %v1504 = vadd.f32 %v1427, %v1503
        %v1505 = vpop.f32.mrb[0].mxu0
        %v1506 = vadd.f32 %v1429, %v1505
        %1507 = vmatprep.mubr.f32.mxu0 %v448
        %1508 = vmatmul.mubr.f32.gmra.mrb[0].mxu0 %v447
        %v1509 = vpop.f32.mrb[0].mxu0
        %v1510 = vadd.f32 %v1433, %v1509
        %v1511 = vpop.f32.mrb[0].mxu0
        %v1512 = vadd.f32 %v1435, %v1511
        %1513 = vdwg.mxu0
        %1514 = vmatprep.subr.mxu0 %v1219
        %1515 = vmatpush1.msra.mxu0 %v1218
        %1516 = vmatprep.subr.mxu0 %v1231
        %1517 = vmatpush1.msra.mxu0 %v1230
        %1518 = vmatprep.subr.mxu0 %v1243
        %1519 = vmatpush1.msra.mxu0 %v1242
        %1520 = vmatprep.subr.mxu0 %v1255
        %1521 = vmatpush1.msra.mxu0 %v1254
        %1522 = vmatprep.subr.mxu0 %v1267
        %1523 = vmatpush1.msra.mxu0 %v1266
        %1524 = vmatprep.subr.mxu0 %v1279
        %1525 = vmatpush1.msra.mxu0 %v1278
        %1526 = vmatprep.subr.mxu0 0.0
        %1527 = vmatpush1.msra.mxu0 0.0
        %1528 = vmatprep.subr.mxu0 0.0
        %1529 = vmatpush1.msra.mxu0 0.0
        %1530 = vmatprep.subr.mxu0 0.0
        %1531 = vmatpush1.msra.mxu0 0.0
        %1532 = vmatprep.subr.mxu0 0.0
        %1533 = vmatpush1.msra.mxu0 0.0
        %1534 = vmatprep.subr.mxu0 0.0
        %1535 = vmatpush1.msra.mxu0 0.0
        %1536 = vmatprep.subr.mxu0 0.0
        %1537 = vmatpush1.msra.mxu0 0.0
        %1538 = vmatprep.subr.mxu0 0.0
        %1539 = vmatpush1.msra.mxu0 0.0
        %1540 = vmatprep.subr.mxu0 0.0
        %1541 = vmatpush1.msra.mxu0 0.0
        %1542 = vmatprep.subr.mxu0 0.0
        %1543 = vmatpush1.msra.mxu0 0.0
        %1544 = vmatprep.subr.mxu0 0.0
        %1545 = vmatpush1.msra.mxu0 0.0
        %1546 = vmatprep.subr.mxu0 0.0
        %1547 = vmatpush1.msra.mxu0 0.0
        %1548 = vmatprep.subr.mxu0 0.0
        %1549 = vmatpush1.msra.mxu0 0.0
        %1550 = vmatprep.subr.mxu0 0.0
        %1551 = vmatpush1.msra.mxu0 0.0
        %1552 = vmatprep.subr.mxu0 0.0
        %1553 = vmatpush1.msra.mxu0 0.0
        %1554 = vmatprep.subr.mxu0 0.0
        %1555 = vmatpush1.msra.mxu0 0.0
        %1556 = vmatprep.subr.mxu0 0.0
        %1557 = vmatpush1.msra.mxu0 0.0
        %1558 = vmatprep.subr.mxu0 0.0
        %1559 = vmatpush1.msra.mxu0 0.0
        %1560 = vmatprep.subr.mxu0 0.0
        %1561 = vmatpush1.msra.mxu0 0.0
        %1562 = vmatprep.subr.mxu0 0.0
        %1563 = vmatpush1.msra.mxu0 0.0
        %1564 = vmatprep.subr.mxu0 0.0
        %1565 = vmatpush1.msra.mxu0 0.0
        %1566 = vmatprep.subr.mxu0 0.0
        %1567 = vmatpush1.msra.mxu0 0.0
        %1568 = vmatprep.subr.mxu0 0.0
        %1569 = vmatpush1.msra.mxu0 0.0
        %1570 = vmatprep.subr.mxu0 0.0
        %1571 = vmatpush1.msra.mxu0 0.0
        %1572 = vmatprep.subr.mxu0 0.0
        %1573 = vmatpush1.msra.mxu0 0.0
        %1574 = vmatprep.subr.mxu0 0.0
        %1575 = vmatpush1.msra.mxu0 0.0
        %1576 = vmatprep.subr.mxu0 0.0
        %1577 = vmatpush1.msra.mxu0 0.0
        %1578 = vmatprep.mubr.f32.mxu0 0.0
        %1579 = vmatmul.mubr.f32.gmra.mrb[0].mxu0 %v1355
        %v1580 = vpop.f32.mrb[0].mxu0
        %v1581 = vadd.f32 %v1504, %v1580
        %v1582 = vpop.f32.mrb[0].mxu0
        %v1583 = vadd.f32 %v1506, %v1582
        %1584 = vmatprep.mubr.f32.mxu0 0.0
        %1585 = vmatmul.mubr.f32.gmra.mrb[0].mxu0 %v1358
        %v1586 = vpop.f32.mrb[0].mxu0
        %v1587 = vadd.f32 %v1510, %v1586
        %v1588 = vpop.f32.mrb[0].mxu0
        %v1589 = vadd.f32 %v1512, %v1588
        %1590 = vdwg.mxu0
        %1591 = vmatprep.subr.mxu0 %v453
        %1592 = vmatpush1.msra.mxu0 %v452
        %1593 = vmatprep.subr.mxu0 %v465
        %1594 = vmatpush1.msra.mxu0 %v464
        %1595 = vmatprep.subr.mxu0 %v477
        %1596 = vmatpush1.msra.mxu0 %v476
        %1597 = vmatprep.subr.mxu0 %v489
        %1598 = vmatpush1.msra.mxu0 %v488
        %1599 = vmatprep.subr.mxu0 %v501
        %1600 = vmatpush1.msra.mxu0 %v500
        %1601 = vmatprep.subr.mxu0 %v513
        %1602 = vmatpush1.msra.mxu0 %v512
        %1603 = vmatprep.subr.mxu0 %v525
        %1604 = vmatpush1.msra.mxu0 %v524
        %1605 = vmatprep.subr.mxu0 %v537
        %1606 = vmatpush1.msra.mxu0 %v536
        %1607 = vmatprep.subr.mxu0 %v549
        %1608 = vmatpush1.msra.mxu0 %v548
        %1609 = vmatprep.subr.mxu0 %v561
        %1610 = vmatpush1.msra.mxu0 %v560
        %1611 = vmatprep.subr.mxu0 %v573
        %1612 = vmatpush1.msra.mxu0 %v572
        %1613 = vmatprep.subr.mxu0 %v585
        %1614 = vmatpush1.msra.mxu0 %v584
        %1615 = vmatprep.subr.mxu0 %v597
        %1616 = vmatpush1.msra.mxu0 %v596
        %1617 = vmatprep.subr.mxu0 %v609
        %1618 = vmatpush1.msra.mxu0 %v608
        %1619 = vmatprep.subr.mxu0 %v621
        %1620 = vmatpush1.msra.mxu0 %v620
        %1621 = vmatprep.subr.mxu0 %v633
        %1622 = vmatpush1.msra.mxu0 %v632
        %1623 = vmatprep.subr.mxu0 %v645
        %1624 = vmatpush1.msra.mxu0 %v644
        %1625 = vmatprep.subr.mxu0 %v657
        %1626 = vmatpush1.msra.mxu0 %v656
        %1627 = vmatprep.subr.mxu0 %v669
        %1628 = vmatpush1.msra.mxu0 %v668
        %1629 = vmatprep.subr.mxu0 %v681
        %1630 = vmatpush1.msra.mxu0 %v680
        %1631 = vmatprep.subr.mxu0 %v693
        %1632 = vmatpush1.msra.mxu0 %v692
        %1633 = vmatprep.subr.mxu0 %v705
        %1634 = vmatpush1.msra.mxu0 %v704
        %1635 = vmatprep.subr.mxu0 %v717
        %1636 = vmatpush1.msra.mxu0 %v716
        %1637 = vmatprep.subr.mxu0 %v729
        %1638 = vmatpush1.msra.mxu0 %v728
        %1639 = vmatprep.subr.mxu0 %v741
        %1640 = vmatpush1.msra.mxu0 %v740
        %1641 = vmatprep.subr.mxu0 %v753
        %1642 = vmatpush1.msra.mxu0 %v752
        %1643 = vmatprep.subr.mxu0 %v765
        %1644 = vmatpush1.msra.mxu0 %v764
        %1645 = vmatprep.subr.mxu0 %v777
        %1646 = vmatpush1.msra.mxu0 %v776
        %1647 = vmatprep.subr.mxu0 %v789
        %1648 = vmatpush1.msra.mxu0 %v788
        %1649 = vmatprep.subr.mxu0 %v801
        %1650 = vmatpush1.msra.mxu0 %v800
        %1651 = vmatprep.subr.mxu0 %v813
        %1652 = vmatpush1.msra.mxu0 %v812
        %1653 = vmatprep.subr.mxu0 %v825
        %1654 = vmatpush1.msra.mxu0 %v824
        %1655 = vmatprep.mubr.f32.mxu0 %v441
        %1656 = vmatmul.mubr.f32.gmra.mrb[0].mxu0 %v440
        %v1657 = vpop.f32.mrb[0].mxu0
        %v1658 = vadd.f32 %v1305, %v1657
        %v1659 = vpop.f32.mrb[0].mxu0
        %v1660 = vadd.f32 %v1309, %v1659
        %1661 = vmatprep.mubr.f32.mxu0 %v446
        %1662 = vmatmul.mubr.f32.gmra.mrb[0].mxu0 %v445
        %v1663 = vpop.f32.mrb[0].mxu0
        %v1664 = vadd.f32 %v1305, %v1663
        %v1665 = vpop.f32.mrb[0].mxu0
        %v1666 = vadd.f32 %v1309, %v1665
        %1667 = vdwg.mxu0
        %1668 = vmatprep.subr.mxu0 %v837
        %1669 = vmatpush1.msra.mxu0 %v836
        %1670 = vmatprep.subr.mxu0 %v849
        %1671 = vmatpush1.msra.mxu0 %v848
        %1672 = vmatprep.subr.mxu0 %v861
        %1673 = vmatpush1.msra.mxu0 %v860
        %1674 = vmatprep.subr.mxu0 %v873
        %1675 = vmatpush1.msra.mxu0 %v872
        %1676 = vmatprep.subr.mxu0 %v885
        %1677 = vmatpush1.msra.mxu0 %v884
        %1678 = vmatprep.subr.mxu0 %v897
        %1679 = vmatpush1.msra.mxu0 %v896
        %1680 = vmatprep.subr.mxu0 %v909
        %1681 = vmatpush1.msra.mxu0 %v908
        %1682 = vmatprep.subr.mxu0 %v921
        %1683 = vmatpush1.msra.mxu0 %v920
        %1684 = vmatprep.subr.mxu0 %v933
        %1685 = vmatpush1.msra.mxu0 %v932
        %1686 = vmatprep.subr.mxu0 %v945
        %1687 = vmatpush1.msra.mxu0 %v944
        %1688 = vmatprep.subr.mxu0 %v957
        %1689 = vmatpush1.msra.mxu0 %v956
        %1690 = vmatprep.subr.mxu0 %v969
        %1691 = vmatpush1.msra.mxu0 %v968
        %1692 = vmatprep.subr.mxu0 %v981
        %1693 = vmatpush1.msra.mxu0 %v980
        %1694 = vmatprep.subr.mxu0 %v993
        %1695 = vmatpush1.msra.mxu0 %v992
        %1696 = vmatprep.subr.mxu0 %v1005
        %1697 = vmatpush1.msra.mxu0 %v1004
        %1698 = vmatprep.subr.mxu0 %v1017
        %1699 = vmatpush1.msra.mxu0 %v1016
        %1700 = vmatprep.subr.mxu0 %v1029
        %1701 = vmatpush1.msra.mxu0 %v1028
        %1702 = vmatprep.subr.mxu0 %v1041
        %1703 = vmatpush1.msra.mxu0 %v1040
        %1704 = vmatprep.subr.mxu0 %v1053
        %1705 = vmatpush1.msra.mxu0 %v1052
        %1706 = vmatprep.subr.mxu0 %v1065
        %1707 = vmatpush1.msra.mxu0 %v1064
        %1708 = vmatprep.subr.mxu0 %v1077
        %1709 = vmatpush1.msra.mxu0 %v1076
        %1710 = vmatprep.subr.mxu0 %v1089
        %1711 = vmatpush1.msra.mxu0 %v1088
        %1712 = vmatprep.subr.mxu0 %v1101
        %1713 = vmatpush1.msra.mxu0 %v1100
        %1714 = vmatprep.subr.mxu0 %v1113
        %1715 = vmatpush1.msra.mxu0 %v1112
        %1716 = vmatprep.subr.mxu0 %v1125
        %1717 = vmatpush1.msra.mxu0 %v1124
        %1718 = vmatprep.subr.mxu0 %v1137
        %1719 = vmatpush1.msra.mxu0 %v1136
        %1720 = vmatprep.subr.mxu0 %v1149
        %1721 = vmatpush1.msra.mxu0 %v1148
        %1722 = vmatprep.subr.mxu0 %v1161
        %1723 = vmatpush1.msra.mxu0 %v1160
        %1724 = vmatprep.subr.mxu0 %v1173
        %1725 = vmatpush1.msra.mxu0 %v1172
        %1726 = vmatprep.subr.mxu0 %v1185
        %1727 = vmatpush1.msra.mxu0 %v1184
        %1728 = vmatprep.subr.mxu0 %v1197
        %1729 = vmatpush1.msra.mxu0 %v1196
        %1730 = vmatprep.subr.mxu0 %v1209
        %1731 = vmatpush1.msra.mxu0 %v1208
        %1732 = vmatprep.mubr.f32.mxu0 %v443
        %1733 = vmatmul.mubr.f32.gmra.mrb[0].mxu0 %v442
        %v1734 = vpop.f32.mrb[0].mxu0
        %v1735 = vadd.f32 %v1658, %v1734
        %v1736 = vpop.f32.mrb[0].mxu0
        %v1737 = vadd.f32 %v1660, %v1736
        %1738 = vmatprep.mubr.f32.mxu0 %v448
        %1739 = vmatmul.mubr.f32.gmra.mrb[0].mxu0 %v447
        %v1740 = vpop.f32.mrb[0].mxu0
        %v1741 = vadd.f32 %v1664, %v1740
        %v1742 = vpop.f32.mrb[0].mxu0
        %v1743 = vadd.f32 %v1666, %v1742
        %1744 = vdwg.mxu0
        %1745 = vmatprep.subr.mxu0 %v1221
        %1746 = vmatpush1.msra.mxu0 %v1220
        %1747 = vmatprep.subr.mxu0 %v1233
        %1748 = vmatpush1.msra.mxu0 %v1232
        %1749 = vmatprep.subr.mxu0 %v1245
        %1750 = vmatpush1.msra.mxu0 %v1244
        %1751 = vmatprep.subr.mxu0 %v1257
        %1752 = vmatpush1.msra.mxu0 %v1256
        %1753 = vmatprep.subr.mxu0 %v1269
        %1754 = vmatpush1.msra.mxu0 %v1268
        %1755 = vmatprep.subr.mxu0 %v1281
        %1756 = vmatpush1.msra.mxu0 %v1280
        %1757 = vmatprep.subr.mxu0 0.0
        %1758 = vmatpush1.msra.mxu0 0.0
        %1759 = vmatprep.subr.mxu0 0.0
        %1760 = vmatpush1.msra.mxu0 0.0
        %1761 = vmatprep.subr.mxu0 0.0
        %1762 = vmatpush1.msra.mxu0 0.0
        %1763 = vmatprep.subr.mxu0 0.0
        %1764 = vmatpush1.msra.mxu0 0.0
        %1765 = vmatprep.subr.mxu0 0.0
        %1766 = vmatpush1.msra.mxu0 0.0
        %1767 = vmatprep.subr.mxu0 0.0
        %1768 = vmatpush1.msra.mxu0 0.0
        %1769 = vmatprep.subr.mxu0 0.0
        %1770 = vmatpush1.msra.mxu0 0.0
        %1771 = vmatprep.subr.mxu0 0.0
        %1772 = vmatpush1.msra.mxu0 0.0
        %1773 = vmatprep.subr.mxu0 0.0
        %1774 = vmatpush1.msra.mxu0 0.0
        %1775 = vmatprep.subr.mxu0 0.0
        %1776 = vmatpush1.msra.mxu0 0.0
        %1777 = vmatprep.subr.mxu0 0.0
        %1778 = vmatpush1.msra.mxu0 0.0
        %1779 = vmatprep.subr.mxu0 0.0
        %1780 = vmatpush1.msra.mxu0 0.0
        %1781 = vmatprep.subr.mxu0 0.0
        %1782 = vmatpush1.msra.mxu0 0.0
        %1783 = vmatprep.subr.mxu0 0.0
        %1784 = vmatpush1.msra.mxu0 0.0
        %1785 = vmatprep.subr.mxu0 0.0
        %1786 = vmatpush1.msra.mxu0 0.0
        %1787 = vmatprep.subr.mxu0 0.0
        %1788 = vmatpush1.msra.mxu0 0.0
        %1789 = vmatprep.subr.mxu0 0.0
        %1790 = vmatpush1.msra.mxu0 0.0
        %1791 = vmatprep.subr.mxu0 0.0
        %1792 = vmatpush1.msra.mxu0 0.0
        %1793 = vmatprep.subr.mxu0 0.0
        %1794 = vmatpush1.msra.mxu0 0.0
        %1795 = vmatprep.subr.mxu0 0.0
        %1796 = vmatpush1.msra.mxu0 0.0
        %1797 = vmatprep.subr.mxu0 0.0
        %1798 = vmatpush1.msra.mxu0 0.0
        %1799 = vmatprep.subr.mxu0 0.0
        %1800 = vmatpush1.msra.mxu0 0.0
        %1801 = vmatprep.subr.mxu0 0.0
        %1802 = vmatpush1.msra.mxu0 0.0
        %1803 = vmatprep.subr.mxu0 0.0
        %1804 = vmatpush1.msra.mxu0 0.0
        %1805 = vmatprep.subr.mxu0 0.0
        %1806 = vmatpush1.msra.mxu0 0.0
        %1807 = vmatprep.subr.mxu0 0.0
        %1808 = vmatpush1.msra.mxu0 0.0
        %1809 = vmatprep.mubr.f32.mxu0 0.0
        %1810 = vmatmul.mubr.f32.gmra.mrb[0].mxu0 %v1355
        %v1811 = vpop.f32.mrb[0].mxu0
        %v1812 = vadd.f32 %v1735, %v1811
        %v1813 = vpop.f32.mrb[0].mxu0
        %v1814 = vadd.f32 %v1737, %v1813
        %1815 = vmatprep.mubr.f32.mxu0 0.0
        %1816 = vmatmul.mubr.f32.gmra.mrb[0].mxu0 %v1358
        %v1817 = vpop.f32.mrb[0].mxu0
        %v1818 = vadd.f32 %v1741, %v1817
        %v1819 = vpop.f32.mrb[0].mxu0
        %v1820 = vadd.f32 %v1743, %v1819
        %1821 = vdwg.mxu0
        %1822 = vmatprep.subr.mxu0 %v455
        %1823 = vmatpush1.msra.mxu0 %v454
        %1824 = vmatprep.subr.mxu0 %v467
        %1825 = vmatpush1.msra.mxu0 %v466
        %1826 = vmatprep.subr.mxu0 %v479
        %1827 = vmatpush1.msra.mxu0 %v478
        %1828 = vmatprep.subr.mxu0 %v491
        %1829 = vmatpush1.msra.mxu0 %v490
        %1830 = vmatprep.subr.mxu0 %v503
        %1831 = vmatpush1.msra.mxu0 %v502
        %1832 = vmatprep.subr.mxu0 %v515
        %1833 = vmatpush1.msra.mxu0 %v514
        %1834 = vmatprep.subr.mxu0 %v527
        %1835 = vmatpush1.msra.mxu0 %v526
        %1836 = vmatprep.subr.mxu0 %v539
        %1837 = vmatpush1.msra.mxu0 %v538
        %1838 = vmatprep.subr.mxu0 %v551
        %1839 = vmatpush1.msra.mxu0 %v550
        %1840 = vmatprep.subr.mxu0 %v563
        %1841 = vmatpush1.msra.mxu0 %v562
        %1842 = vmatprep.subr.mxu0 %v575
        %1843 = vmatpush1.msra.mxu0 %v574
        %1844 = vmatprep.subr.mxu0 %v587
        %1845 = vmatpush1.msra.mxu0 %v586
        %1846 = vmatprep.subr.mxu0 %v599
        %1847 = vmatpush1.msra.mxu0 %v598
        %1848 = vmatprep.subr.mxu0 %v611
        %1849 = vmatpush1.msra.mxu0 %v610
        %1850 = vmatprep.subr.mxu0 %v623
        %1851 = vmatpush1.msra.mxu0 %v622
        %1852 = vmatprep.subr.mxu0 %v635
        %1853 = vmatpush1.msra.mxu0 %v634
        %1854 = vmatprep.subr.mxu0 %v647
        %1855 = vmatpush1.msra.mxu0 %v646
        %1856 = vmatprep.subr.mxu0 %v659
        %1857 = vmatpush1.msra.mxu0 %v658
        %1858 = vmatprep.subr.mxu0 %v671
        %1859 = vmatpush1.msra.mxu0 %v670
        %1860 = vmatprep.subr.mxu0 %v683
        %1861 = vmatpush1.msra.mxu0 %v682
        %1862 = vmatprep.subr.mxu0 %v695
        %1863 = vmatpush1.msra.mxu0 %v694
        %1864 = vmatprep.subr.mxu0 %v707
        %1865 = vmatpush1.msra.mxu0 %v706
        %1866 = vmatprep.subr.mxu0 %v719
        %1867 = vmatpush1.msra.mxu0 %v718
        %1868 = vmatprep.subr.mxu0 %v731
        %1869 = vmatpush1.msra.mxu0 %v730
        %1870 = vmatprep.subr.mxu0 %v743
        %1871 = vmatpush1.msra.mxu0 %v742
        %1872 = vmatprep.subr.mxu0 %v755
        %1873 = vmatpush1.msra.mxu0 %v754
        %1874 = vmatprep.subr.mxu0 %v767
        %1875 = vmatpush1.msra.mxu0 %v766
        %1876 = vmatprep.subr.mxu0 %v779
        %1877 = vmatpush1.msra.mxu0 %v778
        %1878 = vmatprep.subr.mxu0 %v791
        %1879 = vmatpush1.msra.mxu0 %v790
        %1880 = vmatprep.subr.mxu0 %v803
        %1881 = vmatpush1.msra.mxu0 %v802
        %1882 = vmatprep.subr.mxu0 %v815
        %1883 = vmatpush1.msra.mxu0 %v814
        %1884 = vmatprep.subr.mxu0 %v827
        %1885 = vmatpush1.msra.mxu0 %v826
        %1886 = vmatprep.mubr.f32.mxu0 %v441
        %1887 = vmatmul.mubr.f32.gmra.mrb[0].mxu0 %v440
        %v1888 = vpop.f32.mrb[0].mxu0
        %v1889 = vadd.f32 %v1313, %v1888
        %v1890 = vpop.f32.mrb[0].mxu0
        %v1891 = vadd.f32 %v1317, %v1890
        %1892 = vmatprep.mubr.f32.mxu0 %v446
        %1893 = vmatmul.mubr.f32.gmra.mrb[0].mxu0 %v445
        %v1894 = vpop.f32.mrb[0].mxu0
        %v1895 = vadd.f32 %v1313, %v1894
        %v1896 = vpop.f32.mrb[0].mxu0
        %v1897 = vadd.f32 %v1317, %v1896
        %1898 = vdwg.mxu0
        %1899 = vmatprep.subr.mxu0 %v839
        %1900 = vmatpush1.msra.mxu0 %v838
        %1901 = vmatprep.subr.mxu0 %v851
        %1902 = vmatpush1.msra.mxu0 %v850
        %1903 = vmatprep.subr.mxu0 %v863
        %1904 = vmatpush1.msra.mxu0 %v862
        %1905 = vmatprep.subr.mxu0 %v875
        %1906 = vmatpush1.msra.mxu0 %v874
        %1907 = vmatprep.subr.mxu0 %v887
        %1908 = vmatpush1.msra.mxu0 %v886
        %1909 = vmatprep.subr.mxu0 %v899
        %1910 = vmatpush1.msra.mxu0 %v898
        %1911 = vmatprep.subr.mxu0 %v911
        %1912 = vmatpush1.msra.mxu0 %v910
        %1913 = vmatprep.subr.mxu0 %v923
        %1914 = vmatpush1.msra.mxu0 %v922
        %1915 = vmatprep.subr.mxu0 %v935
        %1916 = vmatpush1.msra.mxu0 %v934
        %1917 = vmatprep.subr.mxu0 %v947
        %1918 = vmatpush1.msra.mxu0 %v946
        %1919 = vmatprep.subr.mxu0 %v959
        %1920 = vmatpush1.msra.mxu0 %v958
        %1921 = vmatprep.subr.mxu0 %v971
        %1922 = vmatpush1.msra.mxu0 %v970
        %1923 = vmatprep.subr.mxu0 %v983
        %1924 = vmatpush1.msra.mxu0 %v982
        %1925 = vmatprep.subr.mxu0 %v995
        %1926 = vmatpush1.msra.mxu0 %v994
        %1927 = vmatprep.subr.mxu0 %v1007
        %1928 = vmatpush1.msra.mxu0 %v1006
        %1929 = vmatprep.subr.mxu0 %v1019
        %1930 = vmatpush1.msra.mxu0 %v1018
        %1931 = vmatprep.subr.mxu0 %v1031
        %1932 = vmatpush1.msra.mxu0 %v1030
        %1933 = vmatprep.subr.mxu0 %v1043
        %1934 = vmatpush1.msra.mxu0 %v1042
        %1935 = vmatprep.subr.mxu0 %v1055
        %1936 = vmatpush1.msra.mxu0 %v1054
        %1937 = vmatprep.subr.mxu0 %v1067
        %1938 = vmatpush1.msra.mxu0 %v1066
        %1939 = vmatprep.subr.mxu0 %v1079
        %1940 = vmatpush1.msra.mxu0 %v1078
        %1941 = vmatprep.subr.mxu0 %v1091
        %1942 = vmatpush1.msra.mxu0 %v1090
        %1943 = vmatprep.subr.mxu0 %v1103
        %1944 = vmatpush1.msra.mxu0 %v1102
        %1945 = vmatprep.subr.mxu0 %v1115
        %1946 = vmatpush1.msra.mxu0 %v1114
        %1947 = vmatprep.subr.mxu0 %v1127
        %1948 = vmatpush1.msra.mxu0 %v1126
        %1949 = vmatprep.subr.mxu0 %v1139
        %1950 = vmatpush1.msra.mxu0 %v1138
        %1951 = vmatprep.subr.mxu0 %v1151
        %1952 = vmatpush1.msra.mxu0 %v1150
        %1953 = vmatprep.subr.mxu0 %v1163
        %1954 = vmatpush1.msra.mxu0 %v1162
        %1955 = vmatprep.subr.mxu0 %v1175
        %1956 = vmatpush1.msra.mxu0 %v1174
        %1957 = vmatprep.subr.mxu0 %v1187
        %1958 = vmatpush1.msra.mxu0 %v1186
        %1959 = vmatprep.subr.mxu0 %v1199
        %1960 = vmatpush1.msra.mxu0 %v1198
        %1961 = vmatprep.subr.mxu0 %v1211
        %1962 = vmatpush1.msra.mxu0 %v1210
        %1963 = vmatprep.mubr.f32.mxu0 %v443
        %1964 = vmatmul.mubr.f32.gmra.mrb[0].mxu0 %v442
        %v1965 = vpop.f32.mrb[0].mxu0
        %v1966 = vadd.f32 %v1889, %v1965
        %v1967 = vpop.f32.mrb[0].mxu0
        %v1968 = vadd.f32 %v1891, %v1967
        %1969 = vmatprep.mubr.f32.mxu0 %v448
        %1970 = vmatmul.mubr.f32.gmra.mrb[0].mxu0 %v447
        %v1971 = vpop.f32.mrb[0].mxu0
        %v1972 = vadd.f32 %v1895, %v1971
        %v1973 = vpop.f32.mrb[0].mxu0
        %v1974 = vadd.f32 %v1897, %v1973
        %1975 = vdwg.mxu0
        %1976 = vmatprep.subr.mxu0 %v1223
        %1977 = vmatpush1.msra.mxu0 %v1222
        %1978 = vmatprep.subr.mxu0 %v1235
        %1979 = vmatpush1.msra.mxu0 %v1234
        %1980 = vmatprep.subr.mxu0 %v1247
        %1981 = vmatpush1.msra.mxu0 %v1246
        %1982 = vmatprep.subr.mxu0 %v1259
        %1983 = vmatpush1.msra.mxu0 %v1258
        %1984 = vmatprep.subr.mxu0 %v1271
        %1985 = vmatpush1.msra.mxu0 %v1270
        %1986 = vmatprep.subr.mxu0 %v1283
        %1987 = vmatpush1.msra.mxu0 %v1282
        %1988 = vmatprep.subr.mxu0 0.0
        %1989 = vmatpush1.msra.mxu0 0.0
        %1990 = vmatprep.subr.mxu0 0.0
        %1991 = vmatpush1.msra.mxu0 0.0
        %1992 = vmatprep.subr.mxu0 0.0
        %1993 = vmatpush1.msra.mxu0 0.0
        %1994 = vmatprep.subr.mxu0 0.0
        %1995 = vmatpush1.msra.mxu0 0.0
        %1996 = vmatprep.subr.mxu0 0.0
        %1997 = vmatpush1.msra.mxu0 0.0
        %1998 = vmatprep.subr.mxu0 0.0
        %1999 = vmatpush1.msra.mxu0 0.0
        %2000 = vmatprep.subr.mxu0 0.0
        %2001 = vmatpush1.msra.mxu0 0.0
        %2002 = vmatprep.subr.mxu0 0.0
        %2003 = vmatpush1.msra.mxu0 0.0
        %2004 = vmatprep.subr.mxu0 0.0
        %2005 = vmatpush1.msra.mxu0 0.0
        %2006 = vmatprep.subr.mxu0 0.0
        %2007 = vmatpush1.msra.mxu0 0.0
        %2008 = vmatprep.subr.mxu0 0.0
        %2009 = vmatpush1.msra.mxu0 0.0
        %2010 = vmatprep.subr.mxu0 0.0
        %2011 = vmatpush1.msra.mxu0 0.0
        %2012 = vmatprep.subr.mxu0 0.0
        %2013 = vmatpush1.msra.mxu0 0.0
        %2014 = vmatprep.subr.mxu0 0.0
        %2015 = vmatpush1.msra.mxu0 0.0
        %2016 = vmatprep.subr.mxu0 0.0
        %2017 = vmatpush1.msra.mxu0 0.0
        %2018 = vmatprep.subr.mxu0 0.0
        %2019 = vmatpush1.msra.mxu0 0.0
        %2020 = vmatprep.subr.mxu0 0.0
        %2021 = vmatpush1.msra.mxu0 0.0
        %2022 = vmatprep.subr.mxu0 0.0
        %2023 = vmatpush1.msra.mxu0 0.0
        %2024 = vmatprep.subr.mxu0 0.0
        %2025 = vmatpush1.msra.mxu0 0.0
        %2026 = vmatprep.subr.mxu0 0.0
        %2027 = vmatpush1.msra.mxu0 0.0
        %2028 = vmatprep.subr.mxu0 0.0
        %2029 = vmatpush1.msra.mxu0 0.0
        %2030 = vmatprep.subr.mxu0 0.0
        %2031 = vmatpush1.msra.mxu0 0.0
        %2032 = vmatprep.subr.mxu0 0.0
        %2033 = vmatpush1.msra.mxu0 0.0
        %2034 = vmatprep.subr.mxu0 0.0
        %2035 = vmatpush1.msra.mxu0 0.0
        %2036 = vmatprep.subr.mxu0 0.0
        %2037 = vmatpush1.msra.mxu0 0.0
        %2038 = vmatprep.subr.mxu0 0.0
        %2039 = vmatpush1.msra.mxu0 0.0
        %2040 = vmatprep.mubr.f32.mxu0 0.0
        %2041 = vmatmul.mubr.f32.gmra.mrb[0].mxu0 %v1355
        %v2042 = vpop.f32.mrb[0].mxu0
        %v2043 = vadd.f32 %v1966, %v2042
        %v2044 = vpop.f32.mrb[0].mxu0
        %v2045 = vadd.f32 %v1968, %v2044
        %2046 = vmatprep.mubr.f32.mxu0 0.0
        %2047 = vmatmul.mubr.f32.gmra.mrb[0].mxu0 %v1358
        %v2048 = vpop.f32.mrb[0].mxu0
        %v2049 = vadd.f32 %v1972, %v2048
        %v2050 = vpop.f32.mrb[0].mxu0
        %v2051 = vadd.f32 %v1974, %v2050
        %2052 = vdwg.mxu0
        %2053 = vmatprep.subr.mxu0 %v457
        %2054 = vmatpush1.msra.mxu0 %v456
        %2055 = vmatprep.subr.mxu0 %v469
        %2056 = vmatpush1.msra.mxu0 %v468
        %2057 = vmatprep.subr.mxu0 %v481
        %2058 = vmatpush1.msra.mxu0 %v480
        %2059 = vmatprep.subr.mxu0 %v493
        %2060 = vmatpush1.msra.mxu0 %v492
        %2061 = vmatprep.subr.mxu0 %v505
        %2062 = vmatpush1.msra.mxu0 %v504
        %2063 = vmatprep.subr.mxu0 %v517
        %2064 = vmatpush1.msra.mxu0 %v516
        %2065 = vmatprep.subr.mxu0 %v529
        %2066 = vmatpush1.msra.mxu0 %v528
        %2067 = vmatprep.subr.mxu0 %v541
        %2068 = vmatpush1.msra.mxu0 %v540
        %2069 = vmatprep.subr.mxu0 %v553
        %2070 = vmatpush1.msra.mxu0 %v552
        %2071 = vmatprep.subr.mxu0 %v565
        %2072 = vmatpush1.msra.mxu0 %v564
        %2073 = vmatprep.subr.mxu0 %v577
        %2074 = vmatpush1.msra.mxu0 %v576
        %2075 = vmatprep.subr.mxu0 %v589
        %2076 = vmatpush1.msra.mxu0 %v588
        %2077 = vmatprep.subr.mxu0 %v601
        %2078 = vmatpush1.msra.mxu0 %v600
        %2079 = vmatprep.subr.mxu0 %v613
        %2080 = vmatpush1.msra.mxu0 %v612
        %2081 = vmatprep.subr.mxu0 %v625
        %2082 = vmatpush1.msra.mxu0 %v624
        %2083 = vmatprep.subr.mxu0 %v637
        %2084 = vmatpush1.msra.mxu0 %v636
        %2085 = vmatprep.subr.mxu0 %v649
        %2086 = vmatpush1.msra.mxu0 %v648
        %2087 = vmatprep.subr.mxu0 %v661
        %2088 = vmatpush1.msra.mxu0 %v660
        %2089 = vmatprep.subr.mxu0 %v673
        %2090 = vmatpush1.msra.mxu0 %v672
        %2091 = vmatprep.subr.mxu0 %v685
        %2092 = vmatpush1.msra.mxu0 %v684
        %2093 = vmatprep.subr.mxu0 %v697
        %2094 = vmatpush1.msra.mxu0 %v696
        %2095 = vmatprep.subr.mxu0 %v709
        %2096 = vmatpush1.msra.mxu0 %v708
        %2097 = vmatprep.subr.mxu0 %v721
        %2098 = vmatpush1.msra.mxu0 %v720
        %2099 = vmatprep.subr.mxu0 %v733
        %2100 = vmatpush1.msra.mxu0 %v732
        %2101 = vmatprep.subr.mxu0 %v745
        %2102 = vmatpush1.msra.mxu0 %v744
        %2103 = vmatprep.subr.mxu0 %v757
        %2104 = vmatpush1.msra.mxu0 %v756
        %2105 = vmatprep.subr.mxu0 %v769
        %2106 = vmatpush1.msra.mxu0 %v768
        %2107 = vmatprep.subr.mxu0 %v781
        %2108 = vmatpush1.msra.mxu0 %v780
        %2109 = vmatprep.subr.mxu0 %v793
        %2110 = vmatpush1.msra.mxu0 %v792
        %2111 = vmatprep.subr.mxu0 %v805
        %2112 = vmatpush1.msra.mxu0 %v804
        %2113 = vmatprep.subr.mxu0 %v817
        %2114 = vmatpush1.msra.mxu0 %v816
        %2115 = vmatprep.subr.mxu0 %v829
        %2116 = vmatpush1.msra.mxu0 %v828
        %2117 = vmatprep.mubr.f32.mxu0 %v441
        %2118 = vmatmul.mubr.f32.gmra.mrb[0].mxu0 %v440
        %v2119 = vpop.f32.mrb[0].mxu0
        %v2120 = vadd.f32 %v1321, %v2119
        %v2121 = vpop.f32.mrb[0].mxu0
        %v2122 = vadd.f32 %v1325, %v2121
        %2123 = vmatprep.mubr.f32.mxu0 %v446
        %2124 = vmatmul.mubr.f32.gmra.mrb[0].mxu0 %v445
        %v2125 = vpop.f32.mrb[0].mxu0
        %v2126 = vadd.f32 %v1321, %v2125
        %v2127 = vpop.f32.mrb[0].mxu0
        %v2128 = vadd.f32 %v1325, %v2127
        %2129 = vdwg.mxu0
        %2130 = vmatprep.subr.mxu0 %v841
        %2131 = vmatpush1.msra.mxu0 %v840
        %2132 = vmatprep.subr.mxu0 %v853
        %2133 = vmatpush1.msra.mxu0 %v852
        %2134 = vmatprep.subr.mxu0 %v865
        %2135 = vmatpush1.msra.mxu0 %v864
        %2136 = vmatprep.subr.mxu0 %v877
        %2137 = vmatpush1.msra.mxu0 %v876
        %2138 = vmatprep.subr.mxu0 %v889
        %2139 = vmatpush1.msra.mxu0 %v888
        %2140 = vmatprep.subr.mxu0 %v901
        %2141 = vmatpush1.msra.mxu0 %v900
        %2142 = vmatprep.subr.mxu0 %v913
        %2143 = vmatpush1.msra.mxu0 %v912
        %2144 = vmatprep.subr.mxu0 %v925
        %2145 = vmatpush1.msra.mxu0 %v924
        %2146 = vmatprep.subr.mxu0 %v937
        %2147 = vmatpush1.msra.mxu0 %v936
        %2148 = vmatprep.subr.mxu0 %v949
        %2149 = vmatpush1.msra.mxu0 %v948
        %2150 = vmatprep.subr.mxu0 %v961
        %2151 = vmatpush1.msra.mxu0 %v960
        %2152 = vmatprep.subr.mxu0 %v973
        %2153 = vmatpush1.msra.mxu0 %v972
        %2154 = vmatprep.subr.mxu0 %v985
        %2155 = vmatpush1.msra.mxu0 %v984
        %2156 = vmatprep.subr.mxu0 %v997
        %2157 = vmatpush1.msra.mxu0 %v996
        %2158 = vmatprep.subr.mxu0 %v1009
        %2159 = vmatpush1.msra.mxu0 %v1008
        %2160 = vmatprep.subr.mxu0 %v1021
        %2161 = vmatpush1.msra.mxu0 %v1020
        %2162 = vmatprep.subr.mxu0 %v1033
        %2163 = vmatpush1.msra.mxu0 %v1032
        %2164 = vmatprep.subr.mxu0 %v1045
        %2165 = vmatpush1.msra.mxu0 %v1044
        %2166 = vmatprep.subr.mxu0 %v1057
        %2167 = vmatpush1.msra.mxu0 %v1056
        %2168 = vmatprep.subr.mxu0 %v1069
        %2169 = vmatpush1.msra.mxu0 %v1068
        %2170 = vmatprep.subr.mxu0 %v1081
        %2171 = vmatpush1.msra.mxu0 %v1080
        %2172 = vmatprep.subr.mxu0 %v1093
        %2173 = vmatpush1.msra.mxu0 %v1092
        %2174 = vmatprep.subr.mxu0 %v1105
        %2175 = vmatpush1.msra.mxu0 %v1104
        %2176 = vmatprep.subr.mxu0 %v1117
        %2177 = vmatpush1.msra.mxu0 %v1116
        %2178 = vmatprep.subr.mxu0 %v1129
        %2179 = vmatpush1.msra.mxu0 %v1128
        %2180 = vmatprep.subr.mxu0 %v1141
        %2181 = vmatpush1.msra.mxu0 %v1140
        %2182 = vmatprep.subr.mxu0 %v1153
        %2183 = vmatpush1.msra.mxu0 %v1152
        %2184 = vmatprep.subr.mxu0 %v1165
        %2185 = vmatpush1.msra.mxu0 %v1164
        %2186 = vmatprep.subr.mxu0 %v1177
        %2187 = vmatpush1.msra.mxu0 %v1176
        %2188 = vmatprep.subr.mxu0 %v1189
        %2189 = vmatpush1.msra.mxu0 %v1188
        %2190 = vmatprep.subr.mxu0 %v1201
        %2191 = vmatpush1.msra.mxu0 %v1200
        %2192 = vmatprep.subr.mxu0 %v1213
        %2193 = vmatpush1.msra.mxu0 %v1212
        %2194 = vmatprep.mubr.f32.mxu0 %v443
        %2195 = vmatmul.mubr.f32.gmra.mrb[0].mxu0 %v442
        %v2196 = vpop.f32.mrb[0].mxu0
        %v2197 = vadd.f32 %v2120, %v2196
        %v2198 = vpop.f32.mrb[0].mxu0
        %v2199 = vadd.f32 %v2122, %v2198
        %2200 = vmatprep.mubr.f32.mxu0 %v448
        %2201 = vmatmul.mubr.f32.gmra.mrb[0].mxu0 %v447
        %v2202 = vpop.f32.mrb[0].mxu0
        %v2203 = vadd.f32 %v2126, %v2202
        %v2204 = vpop.f32.mrb[0].mxu0
        %v2205 = vadd.f32 %v2128, %v2204
        %2206 = vdwg.mxu0
        %2207 = vmatprep.subr.mxu0 %v1225
        %2208 = vmatpush1.msra.mxu0 %v1224
        %2209 = vmatprep.subr.mxu0 %v1237
        %2210 = vmatpush1.msra.mxu0 %v1236
        %2211 = vmatprep.subr.mxu0 %v1249
        %2212 = vmatpush1.msra.mxu0 %v1248
        %2213 = vmatprep.subr.mxu0 %v1261
        %2214 = vmatpush1.msra.mxu0 %v1260
        %2215 = vmatprep.subr.mxu0 %v1273
        %2216 = vmatpush1.msra.mxu0 %v1272
        %2217 = vmatprep.subr.mxu0 %v1285
        %2218 = vmatpush1.msra.mxu0 %v1284
        %2219 = vmatprep.subr.mxu0 0.0
        %2220 = vmatpush1.msra.mxu0 0.0
        %2221 = vmatprep.subr.mxu0 0.0
        %2222 = vmatpush1.msra.mxu0 0.0
        %2223 = vmatprep.subr.mxu0 0.0
        %2224 = vmatpush1.msra.mxu0 0.0
        %2225 = vmatprep.subr.mxu0 0.0
        %2226 = vmatpush1.msra.mxu0 0.0
        %2227 = vmatprep.subr.mxu0 0.0
        %2228 = vmatpush1.msra.mxu0 0.0
        %2229 = vmatprep.subr.mxu0 0.0
        %2230 = vmatpush1.msra.mxu0 0.0
        %2231 = vmatprep.subr.mxu0 0.0
        %2232 = vmatpush1.msra.mxu0 0.0
        %2233 = vmatprep.subr.mxu0 0.0
        %2234 = vmatpush1.msra.mxu0 0.0
        %2235 = vmatprep.subr.mxu0 0.0
        %2236 = vmatpush1.msra.mxu0 0.0
        %2237 = vmatprep.subr.mxu0 0.0
        %2238 = vmatpush1.msra.mxu0 0.0
        %2239 = vmatprep.subr.mxu0 0.0
        %2240 = vmatpush1.msra.mxu0 0.0
        %2241 = vmatprep.subr.mxu0 0.0
        %2242 = vmatpush1.msra.mxu0 0.0
        %2243 = vmatprep.subr.mxu0 0.0
        %2244 = vmatpush1.msra.mxu0 0.0
        %2245 = vmatprep.subr.mxu0 0.0
        %2246 = vmatpush1.msra.mxu0 0.0
        %2247 = vmatprep.subr.mxu0 0.0
        %2248 = vmatpush1.msra.mxu0 0.0
        %2249 = vmatprep.subr.mxu0 0.0
        %2250 = vmatpush1.msra.mxu0 0.0
        %2251 = vmatprep.subr.mxu0 0.0
        %2252 = vmatpush1.msra.mxu0 0.0
        %2253 = vmatprep.subr.mxu0 0.0
        %2254 = vmatpush1.msra.mxu0 0.0
        %2255 = vmatprep.subr.mxu0 0.0
        %2256 = vmatpush1.msra.mxu0 0.0
        %2257 = vmatprep.subr.mxu0 0.0
        %2258 = vmatpush1.msra.mxu0 0.0
        %2259 = vmatprep.subr.mxu0 0.0
        %2260 = vmatpush1.msra.mxu0 0.0
        %2261 = vmatprep.subr.mxu0 0.0
        %2262 = vmatpush1.msra.mxu0 0.0
        %2263 = vmatprep.subr.mxu0 0.0
        %2264 = vmatpush1.msra.mxu0 0.0
        %2265 = vmatprep.subr.mxu0 0.0
        %2266 = vmatpush1.msra.mxu0 0.0
        %2267 = vmatprep.subr.mxu0 0.0
        %2268 = vmatpush1.msra.mxu0 0.0
        %2269 = vmatprep.subr.mxu0 0.0
        %2270 = vmatpush1.msra.mxu0 0.0
        %2271 = vmatprep.mubr.f32.mxu0 0.0
        %2272 = vmatmul.mubr.f32.gmra.mrb[0].mxu0 %v1355
        %v2273 = vpop.f32.mrb[0].mxu0
        %v2274 = vadd.f32 %v2197, %v2273
        %v2275 = vpop.f32.mrb[0].mxu0
        %v2276 = vadd.f32 %v2199, %v2275
        %2277 = vmatprep.mubr.f32.mxu0 0.0
        %2278 = vmatmul.mubr.f32.gmra.mrb[0].mxu0 %v1358
        %v2279 = vpop.f32.mrb[0].mxu0
        %v2280 = vadd.f32 %v2203, %v2279
        %v2281 = vpop.f32.mrb[0].mxu0
        %v2282 = vadd.f32 %v2205, %v2281
        %2283 = vdwg.mxu0
        %2284 = vmatprep.subr.mxu0 %v459
        %2285 = vmatpush1.msra.mxu0 %v458
        %2286 = vmatprep.subr.mxu0 %v471
        %2287 = vmatpush1.msra.mxu0 %v470
        %2288 = vmatprep.subr.mxu0 %v483
        %2289 = vmatpush1.msra.mxu0 %v482
        %2290 = vmatprep.subr.mxu0 %v495
        %2291 = vmatpush1.msra.mxu0 %v494
        %2292 = vmatprep.subr.mxu0 %v507
        %2293 = vmatpush1.msra.mxu0 %v506
        %2294 = vmatprep.subr.mxu0 %v519
        %2295 = vmatpush1.msra.mxu0 %v518
        %2296 = vmatprep.subr.mxu0 %v531
        %2297 = vmatpush1.msra.mxu0 %v530
        %2298 = vmatprep.subr.mxu0 %v543
        %2299 = vmatpush1.msra.mxu0 %v542
        %2300 = vmatprep.subr.mxu0 %v555
        %2301 = vmatpush1.msra.mxu0 %v554
        %2302 = vmatprep.subr.mxu0 %v567
        %2303 = vmatpush1.msra.mxu0 %v566
        %2304 = vmatprep.subr.mxu0 %v579
        %2305 = vmatpush1.msra.mxu0 %v578
        %2306 = vmatprep.subr.mxu0 %v591
        %2307 = vmatpush1.msra.mxu0 %v590
        %2308 = vmatprep.subr.mxu0 %v603
        %2309 = vmatpush1.msra.mxu0 %v602
        %2310 = vmatprep.subr.mxu0 %v615
        %2311 = vmatpush1.msra.mxu0 %v614
        %2312 = vmatprep.subr.mxu0 %v627
        %2313 = vmatpush1.msra.mxu0 %v626
        %2314 = vmatprep.subr.mxu0 %v639
        %2315 = vmatpush1.msra.mxu0 %v638
        %2316 = vmatprep.subr.mxu0 %v651
        %2317 = vmatpush1.msra.mxu0 %v650
        %2318 = vmatprep.subr.mxu0 %v663
        %2319 = vmatpush1.msra.mxu0 %v662
        %2320 = vmatprep.subr.mxu0 %v675
        %2321 = vmatpush1.msra.mxu0 %v674
        %2322 = vmatprep.subr.mxu0 %v687
        %2323 = vmatpush1.msra.mxu0 %v686
        %2324 = vmatprep.subr.mxu0 %v699
        %2325 = vmatpush1.msra.mxu0 %v698
        %2326 = vmatprep.subr.mxu0 %v711
        %2327 = vmatpush1.msra.mxu0 %v710
        %2328 = vmatprep.subr.mxu0 %v723
        %2329 = vmatpush1.msra.mxu0 %v722
        %2330 = vmatprep.subr.mxu0 %v735
        %2331 = vmatpush1.msra.mxu0 %v734
        %2332 = vmatprep.subr.mxu0 %v747
        %2333 = vmatpush1.msra.mxu0 %v746
        %2334 = vmatprep.subr.mxu0 %v759
        %2335 = vmatpush1.msra.mxu0 %v758
        %2336 = vmatprep.subr.mxu0 %v771
        %2337 = vmatpush1.msra.mxu0 %v770
        %2338 = vmatprep.subr.mxu0 %v783
        %2339 = vmatpush1.msra.mxu0 %v782
        %2340 = vmatprep.subr.mxu0 %v795
        %2341 = vmatpush1.msra.mxu0 %v794
        %2342 = vmatprep.subr.mxu0 %v807
        %2343 = vmatpush1.msra.mxu0 %v806
        %2344 = vmatprep.subr.mxu0 %v819
        %2345 = vmatpush1.msra.mxu0 %v818
        %2346 = vmatprep.subr.mxu0 %v831
        %2347 = vmatpush1.msra.mxu0 %v830
        %2348 = vmatprep.mubr.f32.mxu0 %v441
        %2349 = vmatmul.mubr.f32.gmra.mrb[0].mxu0 %v440
        %v2350 = vpop.f32.mrb[0].mxu0
        %v2351 = vadd.f32 %v1329, %v2350
        %v2352 = vpop.f32.mrb[0].mxu0
        %v2353 = vadd.f32 %v1333, %v2352
        %2354 = vmatprep.mubr.f32.mxu0 %v446
        %2355 = vmatmul.mubr.f32.gmra.mrb[0].mxu0 %v445
        %v2356 = vpop.f32.mrb[0].mxu0
        %v2357 = vadd.f32 %v1329, %v2356
        %v2358 = vpop.f32.mrb[0].mxu0
        %v2359 = vadd.f32 %v1333, %v2358
        %2360 = vdwg.mxu0
        %2361 = vmatprep.subr.mxu0 %v843
        %2362 = vmatpush1.msra.mxu0 %v842
        %2363 = vmatprep.subr.mxu0 %v855
        %2364 = vmatpush1.msra.mxu0 %v854
        %2365 = vmatprep.subr.mxu0 %v867
        %2366 = vmatpush1.msra.mxu0 %v866
        %2367 = vmatprep.subr.mxu0 %v879
        %2368 = vmatpush1.msra.mxu0 %v878
        %2369 = vmatprep.subr.mxu0 %v891
        %2370 = vmatpush1.msra.mxu0 %v890
        %2371 = vmatprep.subr.mxu0 %v903
        %2372 = vmatpush1.msra.mxu0 %v902
        %2373 = vmatprep.subr.mxu0 %v915
        %2374 = vmatpush1.msra.mxu0 %v914
        %2375 = vmatprep.subr.mxu0 %v927
        %2376 = vmatpush1.msra.mxu0 %v926
        %2377 = vmatprep.subr.mxu0 %v939
        %2378 = vmatpush1.msra.mxu0 %v938
        %2379 = vmatprep.subr.mxu0 %v951
        %2380 = vmatpush1.msra.mxu0 %v950
        %2381 = vmatprep.subr.mxu0 %v963
        %2382 = vmatpush1.msra.mxu0 %v962
        %2383 = vmatprep.subr.mxu0 %v975
        %2384 = vmatpush1.msra.mxu0 %v974
        %2385 = vmatprep.subr.mxu0 %v987
        %2386 = vmatpush1.msra.mxu0 %v986
        %2387 = vmatprep.subr.mxu0 %v999
        %2388 = vmatpush1.msra.mxu0 %v998
        %2389 = vmatprep.subr.mxu0 %v1011
        %2390 = vmatpush1.msra.mxu0 %v1010
        %2391 = vmatprep.subr.mxu0 %v1023
        %2392 = vmatpush1.msra.mxu0 %v1022
        %2393 = vmatprep.subr.mxu0 %v1035
        %2394 = vmatpush1.msra.mxu0 %v1034
        %2395 = vmatprep.subr.mxu0 %v1047
        %2396 = vmatpush1.msra.mxu0 %v1046
        %2397 = vmatprep.subr.mxu0 %v1059
        %2398 = vmatpush1.msra.mxu0 %v1058
        %2399 = vmatprep.subr.mxu0 %v1071
        %2400 = vmatpush1.msra.mxu0 %v1070
        %2401 = vmatprep.subr.mxu0 %v1083
        %2402 = vmatpush1.msra.mxu0 %v1082
        %2403 = vmatprep.subr.mxu0 %v1095
        %2404 = vmatpush1.msra.mxu0 %v1094
        %2405 = vmatprep.subr.mxu0 %v1107
        %2406 = vmatpush1.msra.mxu0 %v1106
        %2407 = vmatprep.subr.mxu0 %v1119
        %2408 = vmatpush1.msra.mxu0 %v1118
        %2409 = vmatprep.subr.mxu0 %v1131
        %2410 = vmatpush1.msra.mxu0 %v1130
        %2411 = vmatprep.subr.mxu0 %v1143
        %2412 = vmatpush1.msra.mxu0 %v1142
        %2413 = vmatprep.subr.mxu0 %v1155
        %2414 = vmatpush1.msra.mxu0 %v1154
        %2415 = vmatprep.subr.mxu0 %v1167
        %2416 = vmatpush1.msra.mxu0 %v1166
        %2417 = vmatprep.subr.mxu0 %v1179
        %2418 = vmatpush1.msra.mxu0 %v1178
        %2419 = vmatprep.subr.mxu0 %v1191
        %2420 = vmatpush1.msra.mxu0 %v1190
        %2421 = vmatprep.subr.mxu0 %v1203
        %2422 = vmatpush1.msra.mxu0 %v1202
        %2423 = vmatprep.subr.mxu0 %v1215
        %2424 = vmatpush1.msra.mxu0 %v1214
        %2425 = vmatprep.mubr.f32.mxu0 %v443
        %2426 = vmatmul.mubr.f32.gmra.mrb[0].mxu0 %v442
        %v2427 = vpop.f32.mrb[0].mxu0
        %v2428 = vadd.f32 %v2351, %v2427
        %v2429 = vpop.f32.mrb[0].mxu0
        %v2430 = vadd.f32 %v2353, %v2429
        %2431 = vmatprep.mubr.f32.mxu0 %v448
        %2432 = vmatmul.mubr.f32.gmra.mrb[0].mxu0 %v447
        %v2433 = vpop.f32.mrb[0].mxu0
        %v2434 = vadd.f32 %v2357, %v2433
        %v2435 = vpop.f32.mrb[0].mxu0
        %v2436 = vadd.f32 %v2359, %v2435
        %2437 = vdwg.mxu0
        %2438 = vmatprep.subr.mxu0 %v1227
        %2439 = vmatpush1.msra.mxu0 %v1226
        %2440 = vmatprep.subr.mxu0 %v1239
        %2441 = vmatpush1.msra.mxu0 %v1238
        %2442 = vmatprep.subr.mxu0 %v1251
        %2443 = vmatpush1.msra.mxu0 %v1250
        %2444 = vmatprep.subr.mxu0 %v1263
        %2445 = vmatpush1.msra.mxu0 %v1262
        %2446 = vmatprep.subr.mxu0 %v1275
        %2447 = vmatpush1.msra.mxu0 %v1274
        %2448 = vmatprep.subr.mxu0 %v1287
        %2449 = vmatpush1.msra.mxu0 %v1286
        %2450 = vmatprep.subr.mxu0 0.0
        %2451 = vmatpush1.msra.mxu0 0.0
        %2452 = vmatprep.subr.mxu0 0.0
        %2453 = vmatpush1.msra.mxu0 0.0
        %2454 = vmatprep.subr.mxu0 0.0
        %2455 = vmatpush1.msra.mxu0 0.0
        %2456 = vmatprep.subr.mxu0 0.0
        %2457 = vmatpush1.msra.mxu0 0.0
        %2458 = vmatprep.subr.mxu0 0.0
        %2459 = vmatpush1.msra.mxu0 0.0
        %2460 = vmatprep.subr.mxu0 0.0
        %2461 = vmatpush1.msra.mxu0 0.0
        %2462 = vmatprep.subr.mxu0 0.0
        %2463 = vmatpush1.msra.mxu0 0.0
        %2464 = vmatprep.subr.mxu0 0.0
        %2465 = vmatpush1.msra.mxu0 0.0
        %2466 = vmatprep.subr.mxu0 0.0
        %2467 = vmatpush1.msra.mxu0 0.0
        %2468 = vmatprep.subr.mxu0 0.0
        %2469 = vmatpush1.msra.mxu0 0.0
        %2470 = vmatprep.subr.mxu0 0.0
        %2471 = vmatpush1.msra.mxu0 0.0
        %2472 = vmatprep.subr.mxu0 0.0
        %2473 = vmatpush1.msra.mxu0 0.0
        %2474 = vmatprep.subr.mxu0 0.0
        %2475 = vmatpush1.msra.mxu0 0.0
        %2476 = vmatprep.subr.mxu0 0.0
        %2477 = vmatpush1.msra.mxu0 0.0
        %2478 = vmatprep.subr.mxu0 0.0
        %2479 = vmatpush1.msra.mxu0 0.0
        %2480 = vmatprep.subr.mxu0 0.0
        %2481 = vmatpush1.msra.mxu0 0.0
        %2482 = vmatprep.subr.mxu0 0.0
        %2483 = vmatpush1.msra.mxu0 0.0
        %2484 = vmatprep.subr.mxu0 0.0
        %2485 = vmatpush1.msra.mxu0 0.0
        %2486 = vmatprep.subr.mxu0 0.0
        %2487 = vmatpush1.msra.mxu0 0.0
        %2488 = vmatprep.subr.mxu0 0.0
        %2489 = vmatpush1.msra.mxu0 0.0
        %2490 = vmatprep.subr.mxu0 0.0
        %2491 = vmatpush1.msra.mxu0 0.0
        %2492 = vmatprep.subr.mxu0 0.0
        %2493 = vmatpush1.msra.mxu0 0.0
        %2494 = vmatprep.subr.mxu0 0.0
        %2495 = vmatpush1.msra.mxu0 0.0
        %2496 = vmatprep.subr.mxu0 0.0
        %2497 = vmatpush1.msra.mxu0 0.0
        %2498 = vmatprep.subr.mxu0 0.0
        %2499 = vmatpush1.msra.mxu0 0.0
        %2500 = vmatprep.subr.mxu0 0.0
        %2501 = vmatpush1.msra.mxu0 0.0
        %2502 = vmatprep.mubr.f32.mxu0 0.0
        %2503 = vmatmul.mubr.f32.gmra.mrb[0].mxu0 %v1355
        %v2504 = vpop.f32.mrb[0].mxu0
        %v2505 = vadd.f32 %v2428, %v2504
        %v2506 = vpop.f32.mrb[0].mxu0
        %v2507 = vadd.f32 %v2430, %v2506
        %2508 = vmatprep.mubr.f32.mxu0 0.0
        %2509 = vmatmul.mubr.f32.gmra.mrb[0].mxu0 %v1358
        %v2510 = vpop.f32.mrb[0].mxu0
        %v2511 = vadd.f32 %v2434, %v2510
        %v2512 = vpop.f32.mrb[0].mxu0
        %v2513 = vadd.f32 %v2436, %v2512
        %2514 = vdwg.mxu0
        %2515 = vmatprep.subr.mxu0 %v461
        %2516 = vmatpush1.msra.mxu0 %v460
        %2517 = vmatprep.subr.mxu0 %v473
        %2518 = vmatpush1.msra.mxu0 %v472
        %2519 = vmatprep.subr.mxu0 %v485
        %2520 = vmatpush1.msra.mxu0 %v484
        %2521 = vmatprep.subr.mxu0 %v497
        %2522 = vmatpush1.msra.mxu0 %v496
        %2523 = vmatprep.subr.mxu0 %v509
        %2524 = vmatpush1.msra.mxu0 %v508
        %2525 = vmatprep.subr.mxu0 %v521
        %2526 = vmatpush1.msra.mxu0 %v520
        %2527 = vmatprep.subr.mxu0 %v533
        %2528 = vmatpush1.msra.mxu0 %v532
        %2529 = vmatprep.subr.mxu0 %v545
        %2530 = vmatpush1.msra.mxu0 %v544
        %2531 = vmatprep.subr.mxu0 %v557
        %2532 = vmatpush1.msra.mxu0 %v556
        %2533 = vmatprep.subr.mxu0 %v569
        %2534 = vmatpush1.msra.mxu0 %v568
        %2535 = vmatprep.subr.mxu0 %v581
        %2536 = vmatpush1.msra.mxu0 %v580
        %2537 = vmatprep.subr.mxu0 %v593
        %2538 = vmatpush1.msra.mxu0 %v592
        %2539 = vmatprep.subr.mxu0 %v605
        %2540 = vmatpush1.msra.mxu0 %v604
        %2541 = vmatprep.subr.mxu0 %v617
        %2542 = vmatpush1.msra.mxu0 %v616
        %2543 = vmatprep.subr.mxu0 %v629
        %2544 = vmatpush1.msra.mxu0 %v628
        %2545 = vmatprep.subr.mxu0 %v641
        %2546 = vmatpush1.msra.mxu0 %v640
        %2547 = vmatprep.subr.mxu0 %v653
        %2548 = vmatpush1.msra.mxu0 %v652
        %2549 = vmatprep.subr.mxu0 %v665
        %2550 = vmatpush1.msra.mxu0 %v664
        %2551 = vmatprep.subr.mxu0 %v677
        %2552 = vmatpush1.msra.mxu0 %v676
        %2553 = vmatprep.subr.mxu0 %v689
        %2554 = vmatpush1.msra.mxu0 %v688
        %2555 = vmatprep.subr.mxu0 %v701
        %2556 = vmatpush1.msra.mxu0 %v700
        %2557 = vmatprep.subr.mxu0 %v713
        %2558 = vmatpush1.msra.mxu0 %v712
        %2559 = vmatprep.subr.mxu0 %v725
        %2560 = vmatpush1.msra.mxu0 %v724
        %2561 = vmatprep.subr.mxu0 %v737
        %2562 = vmatpush1.msra.mxu0 %v736
        %2563 = vmatprep.subr.mxu0 %v749
        %2564 = vmatpush1.msra.mxu0 %v748
        %2565 = vmatprep.subr.mxu0 %v761
        %2566 = vmatpush1.msra.mxu0 %v760
        %2567 = vmatprep.subr.mxu0 %v773
        %2568 = vmatpush1.msra.mxu0 %v772
        %2569 = vmatprep.subr.mxu0 %v785
        %2570 = vmatpush1.msra.mxu0 %v784
        %2571 = vmatprep.subr.mxu0 %v797
        %2572 = vmatpush1.msra.mxu0 %v796
        %2573 = vmatprep.subr.mxu0 %v809
        %2574 = vmatpush1.msra.mxu0 %v808
        %2575 = vmatprep.subr.mxu0 %v821
        %2576 = vmatpush1.msra.mxu0 %v820
        %2577 = vmatprep.subr.mxu0 %v833
        %2578 = vmatpush1.msra.mxu0 %v832
        %2579 = vmatprep.mubr.f32.mxu0 %v441
        %2580 = vmatmul.mubr.f32.gmra.mrb[0].mxu0 %v440
        %v2581 = vpop.f32.mrb[0].mxu0
        %v2582 = vadd.f32 %v1337, %v2581
        %v2583 = vpop.f32.mrb[0].mxu0
        %v2584 = vadd.f32 %v1341, %v2583
        %2585 = vmatprep.mubr.f32.mxu0 %v446
        %2586 = vmatmul.mubr.f32.gmra.mrb[0].mxu0 %v445
        %v2587 = vpop.f32.mrb[0].mxu0
        %v2588 = vadd.f32 %v1337, %v2587
        %v2589 = vpop.f32.mrb[0].mxu0
        %v2590 = vadd.f32 %v1341, %v2589
        %2591 = vdwg.mxu0
        %2592 = vmatprep.subr.mxu0 %v845
        %2593 = vmatpush1.msra.mxu0 %v844
        %2594 = vmatprep.subr.mxu0 %v857
        %2595 = vmatpush1.msra.mxu0 %v856
        %2596 = vmatprep.subr.mxu0 %v869
        %2597 = vmatpush1.msra.mxu0 %v868
        %2598 = vmatprep.subr.mxu0 %v881
        %2599 = vmatpush1.msra.mxu0 %v880
        %2600 = vmatprep.subr.mxu0 %v893
        %2601 = vmatpush1.msra.mxu0 %v892
        %2602 = vmatprep.subr.mxu0 %v905
        %2603 = vmatpush1.msra.mxu0 %v904
        %2604 = vmatprep.subr.mxu0 %v917
        %2605 = vmatpush1.msra.mxu0 %v916
        %2606 = vmatprep.subr.mxu0 %v929
        %2607 = vmatpush1.msra.mxu0 %v928
        %2608 = vmatprep.subr.mxu0 %v941
        %2609 = vmatpush1.msra.mxu0 %v940
        %2610 = vmatprep.subr.mxu0 %v953
        %2611 = vmatpush1.msra.mxu0 %v952
        %2612 = vmatprep.subr.mxu0 %v965
        %2613 = vmatpush1.msra.mxu0 %v964
        %2614 = vmatprep.subr.mxu0 %v977
        %2615 = vmatpush1.msra.mxu0 %v976
        %2616 = vmatprep.subr.mxu0 %v989
        %2617 = vmatpush1.msra.mxu0 %v988
        %2618 = vmatprep.subr.mxu0 %v1001
        %2619 = vmatpush1.msra.mxu0 %v1000
        %2620 = vmatprep.subr.mxu0 %v1013
        %2621 = vmatpush1.msra.mxu0 %v1012
        %2622 = vmatprep.subr.mxu0 %v1025
        %2623 = vmatpush1.msra.mxu0 %v1024
        %2624 = vmatprep.subr.mxu0 %v1037
        %2625 = vmatpush1.msra.mxu0 %v1036
        %2626 = vmatprep.subr.mxu0 %v1049
        %2627 = vmatpush1.msra.mxu0 %v1048
        %2628 = vmatprep.subr.mxu0 %v1061
        %2629 = vmatpush1.msra.mxu0 %v1060
        %2630 = vmatprep.subr.mxu0 %v1073
        %2631 = vmatpush1.msra.mxu0 %v1072
        %2632 = vmatprep.subr.mxu0 %v1085
        %2633 = vmatpush1.msra.mxu0 %v1084
        %2634 = vmatprep.subr.mxu0 %v1097
        %2635 = vmatpush1.msra.mxu0 %v1096
        %2636 = vmatprep.subr.mxu0 %v1109
        %2637 = vmatpush1.msra.mxu0 %v1108
        %2638 = vmatprep.subr.mxu0 %v1121
        %2639 = vmatpush1.msra.mxu0 %v1120
        %2640 = vmatprep.subr.mxu0 %v1133
        %2641 = vmatpush1.msra.mxu0 %v1132
        %2642 = vmatprep.subr.mxu0 %v1145
        %2643 = vmatpush1.msra.mxu0 %v1144
        %2644 = vmatprep.subr.mxu0 %v1157
        %2645 = vmatpush1.msra.mxu0 %v1156
        %2646 = vmatprep.subr.mxu0 %v1169
        %2647 = vmatpush1.msra.mxu0 %v1168
        %2648 = vmatprep.subr.mxu0 %v1181
        %2649 = vmatpush1.msra.mxu0 %v1180
        %2650 = vmatprep.subr.mxu0 %v1193
        %2651 = vmatpush1.msra.mxu0 %v1192
        %2652 = vmatprep.subr.mxu0 %v1205
        %2653 = vmatpush1.msra.mxu0 %v1204
        %2654 = vmatprep.subr.mxu0 %v1217
        %2655 = vmatpush1.msra.mxu0 %v1216
        %2656 = vmatprep.mubr.f32.mxu0 %v443
        %2657 = vmatmul.mubr.f32.gmra.mrb[0].mxu0 %v442
        %v2658 = vpop.f32.mrb[0].mxu0
        %v2659 = vadd.f32 %v2582, %v2658
        %v2660 = vpop.f32.mrb[0].mxu0
        %v2661 = vadd.f32 %v2584, %v2660
        %2662 = vmatprep.mubr.f32.mxu0 %v448
        %2663 = vmatmul.mubr.f32.gmra.mrb[0].mxu0 %v447
        %v2664 = vpop.f32.mrb[0].mxu0
        %v2665 = vadd.f32 %v2588, %v2664
        %v2666 = vpop.f32.mrb[0].mxu0
        %v2667 = vadd.f32 %v2590, %v2666
        %2668 = vdwg.mxu0
        %2669 = vmatprep.subr.mxu0 %v1229
        %2670 = vmatpush1.msra.mxu0 %v1228
        %2671 = vmatprep.subr.mxu0 %v1241
        %2672 = vmatpush1.msra.mxu0 %v1240
        %2673 = vmatprep.subr.mxu0 %v1253
        %2674 = vmatpush1.msra.mxu0 %v1252
        %2675 = vmatprep.subr.mxu0 %v1265
        %2676 = vmatpush1.msra.mxu0 %v1264
        %2677 = vmatprep.subr.mxu0 %v1277
        %2678 = vmatpush1.msra.mxu0 %v1276
        %2679 = vmatprep.subr.mxu0 %v1289
        %2680 = vmatpush1.msra.mxu0 %v1288
        %2681 = vmatprep.subr.mxu0 0.0
        %2682 = vmatpush1.msra.mxu0 0.0
        %2683 = vmatprep.subr.mxu0 0.0
        %2684 = vmatpush1.msra.mxu0 0.0
        %2685 = vmatprep.subr.mxu0 0.0
        %2686 = vmatpush1.msra.mxu0 0.0
        %2687 = vmatprep.subr.mxu0 0.0
        %2688 = vmatpush1.msra.mxu0 0.0
        %2689 = vmatprep.subr.mxu0 0.0
        %2690 = vmatpush1.msra.mxu0 0.0
        %2691 = vmatprep.subr.mxu0 0.0
        %2692 = vmatpush1.msra.mxu0 0.0
        %2693 = vmatprep.subr.mxu0 0.0
        %2694 = vmatpush1.msra.mxu0 0.0
        %2695 = vmatprep.subr.mxu0 0.0
        %2696 = vmatpush1.msra.mxu0 0.0
        %2697 = vmatprep.subr.mxu0 0.0
        %2698 = vmatpush1.msra.mxu0 0.0
        %2699 = vmatprep.subr.mxu0 0.0
        %2700 = vmatpush1.msra.mxu0 0.0
        %2701 = vmatprep.subr.mxu0 0.0
        %2702 = vmatpush1.msra.mxu0 0.0
        %2703 = vmatprep.subr.mxu0 0.0
        %2704 = vmatpush1.msra.mxu0 0.0
        %2705 = vmatprep.subr.mxu0 0.0
        %2706 = vmatpush1.msra.mxu0 0.0
        %2707 = vmatprep.subr.mxu0 0.0
        %2708 = vmatpush1.msra.mxu0 0.0
        %2709 = vmatprep.subr.mxu0 0.0
        %2710 = vmatpush1.msra.mxu0 0.0
        %2711 = vmatprep.subr.mxu0 0.0
        %2712 = vmatpush1.msra.mxu0 0.0
        %2713 = vmatprep.subr.mxu0 0.0
        %2714 = vmatpush1.msra.mxu0 0.0
        %2715 = vmatprep.subr.mxu0 0.0
        %2716 = vmatpush1.msra.mxu0 0.0
        %2717 = vmatprep.subr.mxu0 0.0
        %2718 = vmatpush1.msra.mxu0 0.0
        %2719 = vmatprep.subr.mxu0 0.0
        %2720 = vmatpush1.msra.mxu0 0.0
        %2721 = vmatprep.subr.mxu0 0.0
        %2722 = vmatpush1.msra.mxu0 0.0
        %2723 = vmatprep.subr.mxu0 0.0
        %2724 = vmatpush1.msra.mxu0 0.0
        %2725 = vmatprep.subr.mxu0 0.0
        %2726 = vmatpush1.msra.mxu0 0.0
        %2727 = vmatprep.subr.mxu0 0.0
        %2728 = vmatpush1.msra.mxu0 0.0
        %2729 = vmatprep.subr.mxu0 0.0
        %2730 = vmatpush1.msra.mxu0 0.0
        %2731 = vmatprep.subr.mxu0 0.0
        %2732 = vmatpush1.msra.mxu0 0.0
        %2733 = vmatprep.mubr.f32.mxu0 0.0
        %2734 = vmatmul.mubr.f32.gmra.mrb[0].mxu0 %v1355
        %v2735 = vpop.f32.mrb[0].mxu0
        %v2736 = vadd.f32 %v2659, %v2735
        %v2737 = vpop.f32.mrb[0].mxu0
        %v2738 = vadd.f32 %v2661, %v2737
        %2739 = vmatprep.mubr.f32.mxu0 0.0
        %2740 = vmatmul.mubr.f32.gmra.mrb[0].mxu0 %v1358
        %v2741 = vpop.f32.mrb[0].mxu0
        %v2742 = vadd.f32 %v2665, %v2741
        %v2743 = vpop.f32.mrb[0].mxu0
        %v2744 = vadd.f32 %v2667, %v2743
        %2745 = vdwg.mxu0
        %2746 = vst [vmem:[%s295] sm:$0xff] %v1581
        %2747 = vst [vmem:[%s295 + $0x8] sm:$0xff] %v1583
        %2748 = vst [vmem:[%s295 + $0x10] sm:$0xff] %v1812
        %2749 = vst [vmem:[%s295 + $0x18] sm:$0xff] %v1814
        %2750 = vst [vmem:[%s295 + $0x20] sm:$0xff] %v2043
        %2751 = vst [vmem:[%s295 + $0x28] sm:$0xff] %v2045
        %2752 = vst [vmem:[%s295 + $0x30] sm:$0xff] %v2274
        %2753 = vst [vmem:[%s295 + $0x38] sm:$0xff] %v2276
        %2754 = vst [vmem:[%s295 + $0x40] sm:$0xff] %v2505
        %2755 = vst [vmem:[%s295 + $0x48] sm:$0xff] %v2507
        %2756 = vst [vmem:[%s295 + $0x50] sm:$0xff] %v2736
        %2757 = vst [vmem:[%s295 + $0x58] sm:$0xff] %v2738
        %2758 = vst [vmem:[%s295 + $0x60] sm:$0xff] %v1587
        %2759 = vst [vmem:[%s295 + $0x68] sm:$0xff] %v1589
        %2760 = vst [vmem:[%s295 + $0x70] sm:$0xff] %v1818
        %2761 = vst [vmem:[%s295 + $0x78] sm:$0xff] %v1820
        %2762 = vst [vmem:[%s295 + $0x80] sm:$0xff] %v2049
        %2763 = vst [vmem:[%s295 + $0x88] sm:$0xff] %v2051
        %2764 = vst [vmem:[%s295 + $0x90] sm:$0xff] %v2280
        %2765 = vst [vmem:[%s295 + $0x98] sm:$0xff] %v2282
        %2766 = vst [vmem:[%s295 + $0xa0] sm:$0xff] %v2511
        %2767 = vst [vmem:[%s295 + $0xa8] sm:$0xff] %v2513
        %2768 = vst [vmem:[%s295 + $0xb0] sm:$0xff] %v2742
        %2769 = vst [vmem:[%s295 + $0xb8] sm:$0xff] %v2744
        %s2770 = sand.u32 %s142, 1
        %s2771 = scalar_lea.sflag [#allocation4], %s2770
        %s2772 = sand.u32 %s142, 1
        %s2773 = smul.addr %s2772, 192
        %s2774 = scalar_lea.vmem [#allocation11], %s2773
        // Predicated region
        $region61: #{tpu_custom_call.1} parent=39 // pred_check
          %p2775 = pneg %p152
        $region62: #{tpu_custom_call.1} parent=39 // pred_check_branch
          %2777 = sbr.rel (%p2775) target = $region64
        $region63: #{tpu_custom_call.1} parent=39 // pred_region
          %s2778 = smul.u32 2, %s24
          %s2780 = ssub.s32 3072, 3072
          %2781 = vsyncadd %s2771, %s2780
          %s2782 = smul.addr %s2778, 12
          %s2783 = smul.addr %s2782, 128
          %s2784 = scalar_lea.hbm %s5, %s2783
          %s2785 = sshll.u32 %s2774, 4
          %s2786 = int_to_ptr.vmem [resolvable:$true] %s2785
          %2791 = dma.vmem_to_hbm [thread:$0]  %s2786, 3072, %s2784, %s2771, 1536, 1536, 96
        $region64: #{tpu_custom_call.1} parent=39 // pred_fallthru
          _
      $region40: #{tpu_custom_call.1} parent=5 // pred_fallthru
        _
      %p2792 = scmp.le.s32.totalorder 2, %s19
      // Predicated region
      $region65: #{tpu_custom_call.1} parent=5 // pred_check
        %p2793 = pneg %p2792
      $region66: #{tpu_custom_call.1} parent=5 // pred_check_branch
        %2795 = sbr.rel (%p2793) target = $region68
      $region67: #{tpu_custom_call.1} parent=5 // pred_region
        %s2796 = ssub.s32 %s19, 2
        // Predicated region
        $region69: #{tpu_custom_call.1} parent=67 // pred_check
          %p2797 = pneg %p158
        $region70: #{tpu_custom_call.1} parent=67 // pred_check_branch
          %2799 = sbr.rel (%p2797) target = $region72
        $region71: #{tpu_custom_call.1} parent=67 // pred_region
          %s2800 = sand.u32 %s143, 1
          %s2801 = scalar_lea.sflag [#allocation4], %s2800
          %s2802 = sand.u32 %s143, 1
          %s2803 = smul.addr %s2802, 192
          %s2804 = scalar_lea.vmem [#allocation11], %s2803
          %2805 = dma.done %s2801, 3072
        $region72: #{tpu_custom_call.1} parent=67 // pred_fallthru
          _
      $region68: #{tpu_custom_call.1} parent=5 // pred_fallthru
        _
    $region6: #{tpu_custom_call.1} parent=1 // loop_footer
      %s23 = sadd.s32 1, %s19
    $region7: #{tpu_custom_call.1} parent=1 // loop_footer_branch
      %18 = sbr.rel target = $region3
    $region8: #{tpu_custom_call.1} parent=1 // loop_exit
      _
    %2806 = vsyncpa [#allocation3], 1
    %s2807 = scalar_lea.sflag [#allocation3], 1
    %2808 = vsyncpa %s2807, 1
    %2809 = vsyncpa [#allocation6], 1
    %2810 = vsyncpa [#allocation9], 1
    %2811 = vsyncpa [#allocation4], 1
    %s2812 = scalar_lea.sflag [#allocation4], 1
    %2813 = vsyncpa %s2812, 1

</llo_original>
